<compile_context>
chip_gen: v7x
topology: tpu7x:2x2x1
jax: 0.10.0
libtpu: 0.0.40
codegen_flags: <defaults>
</compile_context>

<pallas_src>
import numpy as np
import jax
import jax.numpy as jnp
from jax import lax
from jax.experimental import pallas as pl
from jax.experimental.pallas import tpu as pltpu


def _round_up(x, m):
    return ((x + m - 1) // m) * m


def _prosody_kernel(x_ref, wih_t_ref, wih_p_ref, whh_ref, bih_ref, bhh_ref,
                    wp_ref, bp_ref, out_ref, h_scr, prev_scr):
    """One grid step = one (batch-block, time-chunk).

    The time recurrence is an unrolled in-kernel loop; the GRU hidden state and
    the previous (projected) prosody vector are carried across time-chunks in
    VMEM scratch (time-chunk is the innermost, 'arbitrary', grid axis)."""
    chunk = pl.program_id(1)

    @pl.when(chunk == 0)
    def _():
        h_scr[...] = jnp.zeros_like(h_scr)
        prev_scr[...] = jnp.zeros_like(prev_scr)

    hp = h_scr.shape[-1]          # padded GRU hidden size (multiple of 128)
    t_chunk = out_ref.shape[0]

    # Hoist weight loads out of the unrolled time loop.
    wih_t = wih_t_ref[...]        # (D_text,  3*H_pad)   fused gates r|z|n
    wih_p = wih_p_ref[...]        # (HP_pad,  3*H_pad)
    whh = whh_ref[...]            # (H_pad,   3*H_pad)
    bih = bih_ref[...]            # (1, 3*H_pad)
    bhh = bhh_ref[...]            # (1, 3*H_pad)
    wp = wp_ref[...]              # (H_pad, HP_pad)
    bp = bp_ref[...]              # (1, HP_pad)

    def step(t, carry):
        h, prev = carry
        x_t = x_ref[t]                                          # (N_blk, D_text)
        # Fused input / hidden gates (r|z|n along the lane axis).
        gi = (jnp.dot(x_t, wih_t, preferred_element_type=jnp.float32)
              + jnp.dot(prev, wih_p, preferred_element_type=jnp.float32)
              + bih)
        gh = jnp.dot(h, whh, preferred_element_type=jnp.float32) + bhh
        r = jax.nn.sigmoid(gi[:, :hp] + gh[:, :hp])
        z = jax.nn.sigmoid(gi[:, hp:2 * hp] + gh[:, hp:2 * hp])
        n = jnp.tanh(gi[:, 2 * hp:] + r * gh[:, 2 * hp:])
        h_new = (1.0 - z) * n + z * h
        pred = jnp.dot(h_new, wp, preferred_element_type=jnp.float32) + bp
        out_ref[t] = pred
        return h_new, pred

    h_fin, p_fin = lax.fori_loop(0, t_chunk, step,
                                 (h_scr[...], prev_scr[...]), unroll=True)
    h_scr[...] = h_fin
    prev_scr[...] = p_fin


def prosody_predictor_forward(text_encoding, text_lengths, kernel_params,
                              out_dim, *, t_chunk=16, n_block=8):
    """Eval-mode forward.

    text_encoding: (N, T, D_text) float32, batch-first (same as PyTorch).
    Returns (N, T_max, out_dim) with T_max = max(text_lengths)."""
    N, T, D_text = text_encoding.shape
    wih_text_f, wih_pros_f, whh_f, bih_f, bhh_f, wp_f, bp_f = kernel_params
    H_pad = whh_f.shape[0]
    HP_pad = wp_f.shape[1]

    # T_max is host-computed -> retraced per distinct max length (acceptable).
    T_max = int(max(int(l) for l in np.asarray(text_lengths)))
    t_chunk = max(1, min(t_chunk, T_max))
    T_pad = _round_up(T_max, t_chunk)
    N_pad = _round_up(N, n_block)

    # Time-major, zero-padded text encoding: (T_pad, N_pad, D_text).
    x = jnp.transpose(text_encoding[:, :T_max].astype(jnp.float32), (1, 0, 2))
    x = jnp.pad(x, ((0, T_pad - T_max), (0, N_pad - N), (0, 0)))

    grid = (N_pad // n_block, T_pad // t_chunk)

    def const_spec(arr):
        nd = arr.ndim
        return pl.BlockSpec(arr.shape, lambda b, c, _nd=nd: (0,) * _nd)

    out_tm = pl.pallas_call(
        _prosody_kernel,
        out_shape=jax.ShapeDtypeStruct((T_pad, N_pad, HP_pad), jnp.float32),
        grid_spec=pltpu.PrefetchScalarGridSpec(
            num_scalar_prefetch=0,
            grid=grid,
            in_specs=[
                pl.BlockSpec((t_chunk, n_block, D_text),
                             lambda b, c: (c, b, 0)),            # text chunk
                const_spec(wih_text_f),   # (D_text, 3*H_pad)
                const_spec(wih_pros_f),   # (HP_pad, 3*H_pad)
                const_spec(whh_f),        # (H_pad,  3*H_pad)
                const_spec(bih_f),        # (1, 3*H_pad)
                const_spec(bhh_f),        # (1, 3*H_pad)
                const_spec(wp_f),         # (H_pad, HP_pad)
                const_spec(bp_f),         # (1, HP_pad)
            ],
            out_specs=pl.BlockSpec((t_chunk, n_block, HP_pad),
                                   lambda b, c: (c, b, 0)),
            scratch_shapes=[
                pltpu.VMEM((n_block, H_pad), jnp.float32),   # GRU hidden carry
                pltpu.VMEM((n_block, HP_pad), jnp.float32),  # prev prosody carry
            ],
        ),
        compiler_params=pltpu.CompilerParams(
            # Batch blocks are independent (v7x megacore-shardable); the
            # time-chunk axis carries the recurrence -> sequential.
            dimension_semantics=("parallel", "arbitrary")),
    )(x, wih_text_f, wih_pros_f, whh_f, bih_f, bhh_f, wp_f, bp_f)

    # Back to batch-first, drop the time/batch/lane padding.
    return jnp.transpose(out_tm[:T_max, :N, :out_dim], (1, 0, 2))


def make_params(key, text_hidden, seq_prosody_hidden, prosody_predictor_dim):
    """Deterministic synthetic parameters matching nn.GRU + nn.Linear shapes,
    plus fused / zero-padded kernel-friendly versions."""
    D_in = text_hidden + seq_prosody_hidden
    H = prosody_predictor_dim
    ks = jax.random.split(key, 6)
    scale = 0.2
    W_ih = scale * jax.random.normal(ks[0], (3 * H, D_in), jnp.float32)   # GRU weight_ih_l0
    W_hh = scale * jax.random.normal(ks[1], (3 * H, H), jnp.float32)      # GRU weight_hh_l0
    b_ih = scale * jax.random.normal(ks[2], (3 * H,), jnp.float32)        # GRU bias_ih_l0
    b_hh = scale * jax.random.normal(ks[3], (3 * H,), jnp.float32)        # GRU bias_hh_l0
    W_p = scale * jax.random.normal(ks[4], (seq_prosody_hidden, H), jnp.float32)  # Linear weight
    b_p = scale * jax.random.normal(ks[5], (seq_prosody_hidden,), jnp.float32)    # Linear bias
    raw = (W_ih, W_hh, b_ih, b_hh, W_p, b_p)

    H_pad = _round_up(H, 128)                     # lane-aligned GRU hidden
    HP_pad = _round_up(seq_prosody_hidden, 128)   # lane-aligned prosody dim
    # NOTE: on v6e/v7x the fused weights could be cast to bf16 (keep f32
    # accumulation) once H reaches 256-512; kept f32 here for exact check.

    def fuse_w(w, d_pad):
        # w: (3H, D) PyTorch layout -> (d_pad, 3*H_pad), gate order r|z|n,
        # zero-padded rows (input) and per-gate columns (output).
        D = w.shape[1]
        w3 = w.reshape(3, H, D)
        out = jnp.zeros((d_pad, 3 * H_pad), jnp.float32)
        for g in range(3):
            out = out.at[:D, g * H_pad:g * H_pad + H].set(w3[g].T)
        return out

    def fuse_b(b):
        b3 = b.reshape(3, H)
        out = jnp.zeros((1, 3 * H_pad), jnp.float32)
        for g in range(3):
            out = out.at[0, g * H_pad:g * H_pad + H].set(b3[g])
        return out

    wih_text_f = fuse_w(W_ih[:, :text_hidden], text_hidden)   # (D_text, 3*H_pad)
    wih_pros_f = fuse_w(W_ih[:, text_hidden:], HP_pad)        # (HP_pad, 3*H_pad)
    whh_f = fuse_w(W_hh, H_pad)                               # (H_pad,  3*H_pad)
    bih_f = fuse_b(b_ih)                                      # (1, 3*H_pad)
    bhh_f = fuse_b(b_hh)                                      # (1, 3*H_pad)
    wp_f = jnp.zeros((H_pad, HP_pad), jnp.float32).at[:H, :seq_prosody_hidden].set(W_p.T)
    bp_f = jnp.zeros((1, HP_pad), jnp.float32).at[0, :seq_prosody_hidden].set(b_p)

    kernel_params = (wih_text_f, wih_pros_f, whh_f, bih_f, bhh_f, wp_f, bp_f)
    return raw, kernel_params


def reference_forward(text_encoding, text_lengths, raw_params,
                      seq_prosody_hidden, prosody_predictor_dim):
    """Pure-JAX reference of the PyTorch eval path."""
    W_ih, W_hh, b_ih, b_hh, W_p, b_p = raw_params
    N, T, _ = text_encoding.shape
    H = prosody_predictor_dim
    T_max = int(max(int(l) for l in np.asarray(text_lengths)))
    h = jnp.zeros((N, H), jnp.float32)
    prev = jnp.zeros((N, seq_prosody_hidden), jnp.float32)
    outs = []
    for t in range(T_max):
        x = jnp.concatenate([text_encoding[:, t], prev], axis=-1)
        gi = x @ W_ih.T + b_ih
        gh = h @ W_hh.T + b_hh
        r = jax.nn.sigmoid(gi[:, :H] + gh[:, :H])
        z = jax.nn.sigmoid(gi[:, H:2 * H] + gh[:, H:2 * H])
        n = jnp.tanh(gi[:, 2 * H:] + r * gh[:, 2 * H:])
        h = (1.0 - z) * n + z * h
        prev = h @ W_p.T + b_p
        outs.append(prev[:, None, :])
    return jnp.concatenate(outs, axis=1)


if __name__ == "__main__":
    # Small shapes consistent with the module's forward.
    N = 2                       # batch
    T = 8                       # sequence length
    text_hidden = 16            # text encoder dim
    seq_prosody_hidden = 8      # prosody vector dim
    prosody_predictor_dim = 32  # GRU hidden dim

    key = jax.random.PRNGKey(0)
    k_x, k_p = jax.random.split(key)
    text_encoding = jax.random.normal(k_x, (N, T, text_hidden), jnp.float32)
    text_lengths = np.array([8, 6], dtype=np.int32)

    raw_params, kernel_params = make_params(
        k_p, text_hidden, seq_prosody_hidden, prosody_predictor_dim)

    out = prosody_predictor_forward(text_encoding, text_lengths, kernel_params,
                                    out_dim=seq_prosody_hidden)
    out = jax.block_until_ready(out)

    ref = reference_forward(text_encoding, text_lengths, raw_params,
                            seq_prosody_hidden, prosody_predictor_dim)
    np.testing.assert_allclose(np.asarray(out), np.asarray(ref),
                               rtol=1e-4, atol=1e-5)
    print("KERNEL_OK")
</pallas_src>

<mosaic_0001>
module attributes {stable_mosaic.version = 11 : i64} {
  func.func @_prosody_kernel(%arg0: i32, %arg1: i32, %arg2: memref<8x8x16xf32, #tpu.memory_space<vmem>>, %arg3: memref<16x384xf32, #tpu.memory_space<vmem>>, %arg4: memref<128x384xf32, #tpu.memory_space<vmem>>, %arg5: memref<128x384xf32, #tpu.memory_space<vmem>>, %arg6: memref<1x384xf32, #tpu.memory_space<vmem>>, %arg7: memref<1x384xf32, #tpu.memory_space<vmem>>, %arg8: memref<128x128xf32, #tpu.memory_space<vmem>>, %arg9: memref<1x128xf32, #tpu.memory_space<vmem>>, %arg10: memref<8x8x128xf32, #tpu.memory_space<vmem>>, %arg11: memref<8x128xf32, #tpu.memory_space<vmem>>, %arg12: memref<8x128xf32, #tpu.memory_space<vmem>>) attributes {dimension_semantics = [#tpu.dimension_semantics<parallel>, #tpu.dimension_semantics<arbitrary>], iteration_bounds = array<i64: 1, 1>, scalar_prefetch = 0 : i64, scratch_operands = 2 : i64, tpu.core_type = #tpu.core_type<tc>, window_params = [{transform_indices = @transform_0, window_bounds = array<i64: 8, 8, 16>}, {pipeline_mode = #tpu.pipeline_mode<synchronous>, transform_indices = @transform_1, window_bounds = array<i64: 16, 384>}, {pipeline_mode = #tpu.pipeline_mode<synchronous>, transform_indices = @transform_2, window_bounds = array<i64: 128, 384>}, {pipeline_mode = #tpu.pipeline_mode<synchronous>, transform_indices = @transform_3, window_bounds = array<i64: 128, 384>}, {pipeline_mode = #tpu.pipeline_mode<synchronous>, transform_indices = @transform_4, window_bounds = array<i64: 1, 384>}, {pipeline_mode = #tpu.pipeline_mode<synchronous>, transform_indices = @transform_5, window_bounds = array<i64: 1, 384>}, {pipeline_mode = #tpu.pipeline_mode<synchronous>, transform_indices = @transform_6, window_bounds = array<i64: 128, 128>}, {pipeline_mode = #tpu.pipeline_mode<synchronous>, transform_indices = @transform_7, window_bounds = array<i64: 1, 128>}, {transform_indices = @transform_8, window_bounds = array<i64: 8, 8, 128>}]} {
    %c0_i32 = arith.constant 0 : i32
    %0 = arith.cmpi eq, %arg1, %c0_i32 : i32
    %1 = arith.extui %0 : i1 to i32
    %c0_i32_0 = arith.constant 0 : i32
    %2 = arith.cmpi ne, %1, %c0_i32_0 : i32
    scf.if %2 {
      %cst_110 = arith.constant 0.000000e+00 : f32
      %366 = vector.broadcast %cst_110 : f32 to vector<8x128xf32>
      %c0_111 = arith.constant 0 : index
      %c0_112 = arith.constant 0 : index
      %367 = vector.load %arg11[%c0_111, %c0_112] : memref<8x128xf32, #tpu.memory_space<vmem>>, vector<8x128xf32>
      tpu.vector_store %arg11[%c0_111, %c0_112], %366 {strides = array<i32>} : memref<8x128xf32, #tpu.memory_space<vmem>>, vector<8x128xf32>,
      %cst_113 = arith.constant 0.000000e+00 : f32
      %368 = vector.broadcast %cst_113 : f32 to vector<8x128xf32>
      %c0_114 = arith.constant 0 : index
      %c0_115 = arith.constant 0 : index
      %369 = vector.load %arg12[%c0_114, %c0_115] : memref<8x128xf32, #tpu.memory_space<vmem>>, vector<8x128xf32>
      tpu.vector_store %arg12[%c0_114, %c0_115], %368 {strides = array<i32>} : memref<8x128xf32, #tpu.memory_space<vmem>>, vector<8x128xf32>,
    } else {
    }
    %c0 = arith.constant 0 : index
    %c0_1 = arith.constant 0 : index
    %3 = vector.load %arg3[%c0, %c0_1] : memref<16x384xf32, #tpu.memory_space<vmem>>, vector<16x384xf32>
    %c0_2 = arith.constant 0 : index
    %c0_3 = arith.constant 0 : index
    %4 = vector.load %arg4[%c0_2, %c0_3] : memref<128x384xf32, #tpu.memory_space<vmem>>, vector<128x384xf32>
    %c0_4 = arith.constant 0 : index
    %c0_5 = arith.constant 0 : index
    %5 = vector.load %arg5[%c0_4, %c0_5] : memref<128x384xf32, #tpu.memory_space<vmem>>, vector<128x384xf32>
    %c0_6 = arith.constant 0 : index
    %c0_7 = arith.constant 0 : index
    %6 = vector.load %arg6[%c0_6, %c0_7] : memref<1x384xf32, #tpu.memory_space<vmem>>, vector<1x384xf32>
    %c0_8 = arith.constant 0 : index
    %c0_9 = arith.constant 0 : index
    %7 = vector.load %arg7[%c0_8, %c0_9] : memref<1x384xf32, #tpu.memory_space<vmem>>, vector<1x384xf32>
    %c0_10 = arith.constant 0 : index
    %c0_11 = arith.constant 0 : index
    %8 = vector.load %arg8[%c0_10, %c0_11] : memref<128x128xf32, #tpu.memory_space<vmem>>, vector<128x128xf32>
    %c0_12 = arith.constant 0 : index
    %c0_13 = arith.constant 0 : index
    %9 = vector.load %arg9[%c0_12, %c0_13] : memref<1x128xf32, #tpu.memory_space<vmem>>, vector<1x128xf32>
    %c0_14 = arith.constant 0 : index
    %c0_15 = arith.constant 0 : index
    %10 = vector.load %arg11[%c0_14, %c0_15] : memref<8x128xf32, #tpu.memory_space<vmem>>, vector<8x128xf32>
    %c0_16 = arith.constant 0 : index
    %c0_17 = arith.constant 0 : index
    %11 = vector.load %arg12[%c0_16, %c0_17] : memref<8x128xf32, #tpu.memory_space<vmem>>, vector<8x128xf32>
    %c0_i32_18 = arith.constant 0 : i32
    %12 = arith.index_cast %c0_i32_18 : i32 to index
    %c0_19 = arith.constant 0 : index
    %c0_20 = arith.constant 0 : index
    %13 = vector.load %arg2[%12, %c0_19, %c0_20] : memref<8x8x16xf32, #tpu.memory_space<vmem>>, vector<1x8x16xf32>
    %14 = vector.shape_cast %13 : vector<1x8x16xf32> to vector<8x16xf32>
    %cst = arith.constant dense<0.000000e+00> : vector<8x384xf32>
    %15 = tpu.matmul %14, %3, %cst {dimension_numbers = #tpu.dot_dimension_numbers<[1], [0], [0], [1], [0, 0, 1, 1], [], []>} : vector<8x16xf32>, vector<16x384xf32>, vector<8x384xf32> -> vector<8x384xf32>
    %cst_21 = arith.constant dense<0.000000e+00> : vector<8x384xf32>
    %16 = tpu.matmul %11, %4, %cst_21 {dimension_numbers = #tpu.dot_dimension_numbers<[1], [0], [0], [1], [0, 0, 1, 1], [], []>} : vector<8x128xf32>, vector<128x384xf32>, vector<8x384xf32> -> vector<8x384xf32>
    %17 = arith.addf %15, %16 : vector<8x384xf32>
    %18 = vector.broadcast %6 : vector<1x384xf32> to vector<8x384xf32>
    %19 = arith.addf %17, %18 : vector<8x384xf32>
    %cst_22 = arith.constant dense<0.000000e+00> : vector<8x384xf32>
    %20 = tpu.matmul %10, %5, %cst_22 {dimension_numbers = #tpu.dot_dimension_numbers<[1], [0], [0], [1], [0, 0, 1, 1], [], []>} : vector<8x128xf32>, vector<128x384xf32>, vector<8x384xf32> -> vector<8x384xf32>
    %21 = vector.broadcast %7 : vector<1x384xf32> to vector<8x384xf32>
    %22 = arith.addf %20, %21 : vector<8x384xf32>
    %23 = vector.extract_strided_slice %19 {offsets = [0, 0], sizes = [8, 128], strides = [1, 1]} : vector<8x384xf32> to vector<8x128xf32>
    %24 = vector.extract_strided_slice %22 {offsets = [0, 0], sizes = [8, 128], strides = [1, 1]} : vector<8x384xf32> to vector<8x128xf32>
    %25 = arith.addf %23, %24 : vector<8x128xf32>
    %26 = arith.negf %25 : vector<8x128xf32>
    %27 = math.exp %26 : vector<8x128xf32>
    %cst_23 = arith.constant 1.000000e+00 : f32
    %28 = vector.broadcast %cst_23 : f32 to vector<8x128xf32>
    %29 = arith.addf %28, %27 : vector<8x128xf32>
    %30 = arith.divf %28, %29 : vector<8x128xf32>
    %31 = vector.extract_strided_slice %19 {offsets = [0, 128], sizes = [8, 128], strides = [1, 1]} : vector<8x384xf32> to vector<8x128xf32>
    %32 = vector.extract_strided_slice %22 {offsets = [0, 128], sizes = [8, 128], strides = [1, 1]} : vector<8x384xf32> to vector<8x128xf32>
    %33 = arith.addf %31, %32 : vector<8x128xf32>
    %34 = arith.negf %33 : vector<8x128xf32>
    %35 = math.exp %34 : vector<8x128xf32>
    %cst_24 = arith.constant 1.000000e+00 : f32
    %36 = vector.broadcast %cst_24 : f32 to vector<8x128xf32>
    %37 = arith.addf %36, %35 : vector<8x128xf32>
    %38 = arith.divf %36, %37 : vector<8x128xf32>
    %39 = vector.extract_strided_slice %19 {offsets = [0, 256], sizes = [8, 128], strides = [1, 1]} : vector<8x384xf32> to vector<8x128xf32>
    %40 = vector.extract_strided_slice %22 {offsets = [0, 256], sizes = [8, 128], strides = [1, 1]} : vector<8x384xf32> to vector<8x128xf32>
    %41 = arith.mulf %30, %40 : vector<8x128xf32>
    %42 = arith.addf %39, %41 : vector<8x128xf32>
    %43 = math.tanh %42 : vector<8x128xf32>
    %cst_25 = arith.constant 1.000000e+00 : f32
    %44 = vector.broadcast %cst_25 : f32 to vector<8x128xf32>
    %45 = arith.subf %44, %38 : vector<8x128xf32>
    %46 = arith.mulf %45, %43 : vector<8x128xf32>
    %47 = arith.mulf %38, %10 : vector<8x128xf32>
    %48 = arith.addf %46, %47 : vector<8x128xf32>
    %cst_26 = arith.constant dense<0.000000e+00> : vector<8x128xf32>
    %49 = tpu.matmul %48, %8, %cst_26 {dimension_numbers = #tpu.dot_dimension_numbers<[1], [0], [0], [1], [0, 0, 1, 1], [], []>} : vector<8x128xf32>, vector<128x128xf32>, vector<8x128xf32> -> vector<8x128xf32>
    %50 = vector.broadcast %9 : vector<1x128xf32> to vector<8x128xf32>
    %51 = arith.addf %49, %50 : vector<8x128xf32>
    %52 = arith.index_cast %c0_i32_18 : i32 to index
    %c0_27 = arith.constant 0 : index
    %c0_28 = arith.constant 0 : index
    %53 = vector.load %arg10[%52, %c0_27, %c0_28] : memref<8x8x128xf32, #tpu.memory_space<vmem>>, vector<1x8x128xf32>
    %54 = vector.shape_cast %53 : vector<1x8x128xf32> to vector<8x128xf32>
    %55 = vector.shape_cast %51 : vector<8x128xf32> to vector<1x8x128xf32>
    tpu.vector_store %arg10[%52, %c0_27, %c0_28], %55 {strides = array<i32>} : memref<8x8x128xf32, #tpu.memory_space<vmem>>, vector<1x8x128xf32>,
    %c1_i32 = arith.constant 1 : i32
    %56 = arith.index_cast %c1_i32 : i32 to index
    %c0_29 = arith.constant 0 : index
    %c0_30 = arith.constant 0 : index
    %57 = vector.load %arg2[%56, %c0_29, %c0_30] : memref<8x8x16xf32, #tpu.memory_space<vmem>>, vector<1x8x16xf32>
    %58 = vector.shape_cast %57 : vector<1x8x16xf32> to vector<8x16xf32>
    %cst_31 = arith.constant dense<0.000000e+00> : vector<8x384xf32>
    %59 = tpu.matmul %58, %3, %cst_31 {dimension_numbers = #tpu.dot_dimension_numbers<[1], [0], [0], [1], [0, 0, 1, 1], [], []>} : vector<8x16xf32>, vector<16x384xf32>, vector<8x384xf32> -> vector<8x384xf32>
    %cst_32 = arith.constant dense<0.000000e+00> : vector<8x384xf32>
    %60 = tpu.matmul %51, %4, %cst_32 {dimension_numbers = #tpu.dot_dimension_numbers<[1], [0], [0], [1], [0, 0, 1, 1], [], []>} : vector<8x128xf32>, vector<128x384xf32>, vector<8x384xf32> -> vector<8x384xf32>
    %61 = arith.addf %59, %60 : vector<8x384xf32>
    %62 = vector.broadcast %6 : vector<1x384xf32> to vector<8x384xf32>
    %63 = arith.addf %61, %62 : vector<8x384xf32>
    %cst_33 = arith.constant dense<0.000000e+00> : vector<8x384xf32>
    %64 = tpu.matmul %48, %5, %cst_33 {dimension_numbers = #tpu.dot_dimension_numbers<[1], [0], [0], [1], [0, 0, 1, 1], [], []>} : vector<8x128xf32>, vector<128x384xf32>, vector<8x384xf32> -> vector<8x384xf32>
    %65 = vector.broadcast %7 : vector<1x384xf32> to vector<8x384xf32>
    %66 = arith.addf %64, %65 : vector<8x384xf32>
    %67 = vector.extract_strided_slice %63 {offsets = [0, 0], sizes = [8, 128], strides = [1, 1]} : vector<8x384xf32> to vector<8x128xf32>
    %68 = vector.extract_strided_slice %66 {offsets = [0, 0], sizes = [8, 128], strides = [1, 1]} : vector<8x384xf32> to vector<8x128xf32>
    %69 = arith.addf %67, %68 : vector<8x128xf32>
    %70 = arith.negf %69 : vector<8x128xf32>
    %71 = math.exp %70 : vector<8x128xf32>
    %cst_34 = arith.constant 1.000000e+00 : f32
    %72 = vector.broadcast %cst_34 : f32 to vector<8x128xf32>
    %73 = arith.addf %72, %71 : vector<8x128xf32>
    %74 = arith.divf %72, %73 : vector<8x128xf32>
    %75 = vector.extract_strided_slice %63 {offsets = [0, 128], sizes = [8, 128], strides = [1, 1]} : vector<8x384xf32> to vector<8x128xf32>
    %76 = vector.extract_strided_slice %66 {offsets = [0, 128], sizes = [8, 128], strides = [1, 1]} : vector<8x384xf32> to vector<8x128xf32>
    %77 = arith.addf %75, %76 : vector<8x128xf32>
    %78 = arith.negf %77 : vector<8x128xf32>
    %79 = math.exp %78 : vector<8x128xf32>
    %cst_35 = arith.constant 1.000000e+00 : f32
    %80 = vector.broadcast %cst_35 : f32 to vector<8x128xf32>
    %81 = arith.addf %80, %79 : vector<8x128xf32>
    %82 = arith.divf %80, %81 : vector<8x128xf32>
    %83 = vector.extract_strided_slice %63 {offsets = [0, 256], sizes = [8, 128], strides = [1, 1]} : vector<8x384xf32> to vector<8x128xf32>
    %84 = vector.extract_strided_slice %66 {offsets = [0, 256], sizes = [8, 128], strides = [1, 1]} : vector<8x384xf32> to vector<8x128xf32>
    %85 = arith.mulf %74, %84 : vector<8x128xf32>
    %86 = arith.addf %83, %85 : vector<8x128xf32>
    %87 = math.tanh %86 : vector<8x128xf32>
    %cst_36 = arith.constant 1.000000e+00 : f32
    %88 = vector.broadcast %cst_36 : f32 to vector<8x128xf32>
    %89 = arith.subf %88, %82 : vector<8x128xf32>
    %90 = arith.mulf %89, %87 : vector<8x128xf32>
    %91 = arith.mulf %82, %48 : vector<8x128xf32>
    %92 = arith.addf %90, %91 : vector<8x128xf32>
    %cst_37 = arith.constant dense<0.000000e+00> : vector<8x128xf32>
    %93 = tpu.matmul %92, %8, %cst_37 {dimension_numbers = #tpu.dot_dimension_numbers<[1], [0], [0], [1], [0, 0, 1, 1], [], []>} : vector<8x128xf32>, vector<128x128xf32>, vector<8x128xf32> -> vector<8x128xf32>
    %94 = vector.broadcast %9 : vector<1x128xf32> to vector<8x128xf32>
    %95 = arith.addf %93, %94 : vector<8x128xf32>
    %96 = arith.index_cast %c1_i32 : i32 to index
    %c0_38 = arith.constant 0 : index
    %c0_39 = arith.constant 0 : index
    %97 = vector.load %arg10[%96, %c0_38, %c0_39] : memref<8x8x128xf32, #tpu.memory_space<vmem>>, vector<1x8x128xf32>
    %98 = vector.shape_cast %97 : vector<1x8x128xf32> to vector<8x128xf32>
    %99 = vector.shape_cast %95 : vector<8x128xf32> to vector<1x8x128xf32>
    tpu.vector_store %arg10[%96, %c0_38, %c0_39], %99 {strides = array<i32>} : memref<8x8x128xf32, #tpu.memory_space<vmem>>, vector<1x8x128xf32>,
    %c2_i32 = arith.constant 2 : i32
    %100 = arith.index_cast %c2_i32 : i32 to index
    %c0_40 = arith.constant 0 : index
    %c0_41 = arith.constant 0 : index
    %101 = vector.load %arg2[%100, %c0_40, %c0_41] : memref<8x8x16xf32, #tpu.memory_space<vmem>>, vector<1x8x16xf32>
    %102 = vector.shape_cast %101 : vector<1x8x16xf32> to vector<8x16xf32>
    %cst_42 = arith.constant dense<0.000000e+00> : vector<8x384xf32>
    %103 = tpu.matmul %102, %3, %cst_42 {dimension_numbers = #tpu.dot_dimension_numbers<[1], [0], [0], [1], [0, 0, 1, 1], [], []>} : vector<8x16xf32>, vector<16x384xf32>, vector<8x384xf32> -> vector<8x384xf32>
    %cst_43 = arith.constant dense<0.000000e+00> : vector<8x384xf32>
    %104 = tpu.matmul %95, %4, %cst_43 {dimension_numbers = #tpu.dot_dimension_numbers<[1], [0], [0], [1], [0, 0, 1, 1], [], []>} : vector<8x128xf32>, vector<128x384xf32>, vector<8x384xf32> -> vector<8x384xf32>
    %105 = arith.addf %103, %104 : vector<8x384xf32>
    %106 = vector.broadcast %6 : vector<1x384xf32> to vector<8x384xf32>
    %107 = arith.addf %105, %106 : vector<8x384xf32>
    %cst_44 = arith.constant dense<0.000000e+00> : vector<8x384xf32>
    %108 = tpu.matmul %92, %5, %cst_44 {dimension_numbers = #tpu.dot_dimension_numbers<[1], [0], [0], [1], [0, 0, 1, 1], [], []>} : vector<8x128xf32>, vector<128x384xf32>, vector<8x384xf32> -> vector<8x384xf32>
    %109 = vector.broadcast %7 : vector<1x384xf32> to vector<8x384xf32>
    %110 = arith.addf %108, %109 : vector<8x384xf32>
    %111 = vector.extract_strided_slice %107 {offsets = [0, 0], sizes = [8, 128], strides = [1, 1]} : vector<8x384xf32> to vector<8x128xf32>
    %112 = vector.extract_strided_slice %110 {offsets = [0, 0], sizes = [8, 128], strides = [1, 1]} : vector<8x384xf32> to vector<8x128xf32>
    %113 = arith.addf %111, %112 : vector<8x128xf32>
    %114 = arith.negf %113 : vector<8x128xf32>
    %115 = math.exp %114 : vector<8x128xf32>
    %cst_45 = arith.constant 1.000000e+00 : f32
    %116 = vector.broadcast %cst_45 : f32 to vector<8x128xf32>
    %117 = arith.addf %116, %115 : vector<8x128xf32>
    %118 = arith.divf %116, %117 : vector<8x128xf32>
    %119 = vector.extract_strided_slice %107 {offsets = [0, 128], sizes = [8, 128], strides = [1, 1]} : vector<8x384xf32> to vector<8x128xf32>
    %120 = vector.extract_strided_slice %110 {offsets = [0, 128], sizes = [8, 128], strides = [1, 1]} : vector<8x384xf32> to vector<8x128xf32>
    %121 = arith.addf %119, %120 : vector<8x128xf32>
    %122 = arith.negf %121 : vector<8x128xf32>
    %123 = math.exp %122 : vector<8x128xf32>
    %cst_46 = arith.constant 1.000000e+00 : f32
    %124 = vector.broadcast %cst_46 : f32 to vector<8x128xf32>
    %125 = arith.addf %124, %123 : vector<8x128xf32>
    %126 = arith.divf %124, %125 : vector<8x128xf32>
    %127 = vector.extract_strided_slice %107 {offsets = [0, 256], sizes = [8, 128], strides = [1, 1]} : vector<8x384xf32> to vector<8x128xf32>
    %128 = vector.extract_strided_slice %110 {offsets = [0, 256], sizes = [8, 128], strides = [1, 1]} : vector<8x384xf32> to vector<8x128xf32>
    %129 = arith.mulf %118, %128 : vector<8x128xf32>
    %130 = arith.addf %127, %129 : vector<8x128xf32>
    %131 = math.tanh %130 : vector<8x128xf32>
    %cst_47 = arith.constant 1.000000e+00 : f32
    %132 = vector.broadcast %cst_47 : f32 to vector<8x128xf32>
    %133 = arith.subf %132, %126 : vector<8x128xf32>
    %134 = arith.mulf %133, %131 : vector<8x128xf32>
    %135 = arith.mulf %126, %92 : vector<8x128xf32>
    %136 = arith.addf %134, %135 : vector<8x128xf32>
    %cst_48 = arith.constant dense<0.000000e+00> : vector<8x128xf32>
    %137 = tpu.matmul %136, %8, %cst_48 {dimension_numbers = #tpu.dot_dimension_numbers<[1], [0], [0], [1], [0, 0, 1, 1], [], []>} : vector<8x128xf32>, vector<128x128xf32>, vector<8x128xf32> -> vector<8x128xf32>
    %138 = vector.broadcast %9 : vector<1x128xf32> to vector<8x128xf32>
    %139 = arith.addf %137, %138 : vector<8x128xf32>
    %140 = arith.index_cast %c2_i32 : i32 to index
    %c0_49 = arith.constant 0 : index
    %c0_50 = arith.constant 0 : index
    %141 = vector.load %arg10[%140, %c0_49, %c0_50] : memref<8x8x128xf32, #tpu.memory_space<vmem>>, vector<1x8x128xf32>
    %142 = vector.shape_cast %141 : vector<1x8x128xf32> to vector<8x128xf32>
    %143 = vector.shape_cast %139 : vector<8x128xf32> to vector<1x8x128xf32>
    tpu.vector_store %arg10[%140, %c0_49, %c0_50], %143 {strides = array<i32>} : memref<8x8x128xf32, #tpu.memory_space<vmem>>, vector<1x8x128xf32>,
    %c3_i32 = arith.constant 3 : i32
    %144 = arith.index_cast %c3_i32 : i32 to index
    %c0_51 = arith.constant 0 : index
    %c0_52 = arith.constant 0 : index
    %145 = vector.load %arg2[%144, %c0_51, %c0_52] : memref<8x8x16xf32, #tpu.memory_space<vmem>>, vector<1x8x16xf32>
    %146 = vector.shape_cast %145 : vector<1x8x16xf32> to vector<8x16xf32>
    %cst_53 = arith.constant dense<0.000000e+00> : vector<8x384xf32>
    %147 = tpu.matmul %146, %3, %cst_53 {dimension_numbers = #tpu.dot_dimension_numbers<[1], [0], [0], [1], [0, 0, 1, 1], [], []>} : vector<8x16xf32>, vector<16x384xf32>, vector<8x384xf32> -> vector<8x384xf32>
    %cst_54 = arith.constant dense<0.000000e+00> : vector<8x384xf32>
    %148 = tpu.matmul %139, %4, %cst_54 {dimension_numbers = #tpu.dot_dimension_numbers<[1], [0], [0], [1], [0, 0, 1, 1], [], []>} : vector<8x128xf32>, vector<128x384xf32>, vector<8x384xf32> -> vector<8x384xf32>
    %149 = arith.addf %147, %148 : vector<8x384xf32>
    %150 = vector.broadcast %6 : vector<1x384xf32> to vector<8x384xf32>
    %151 = arith.addf %149, %150 : vector<8x384xf32>
    %cst_55 = arith.constant dense<0.000000e+00> : vector<8x384xf32>
    %152 = tpu.matmul %136, %5, %cst_55 {dimension_numbers = #tpu.dot_dimension_numbers<[1], [0], [0], [1], [0, 0, 1, 1], [], []>} : vector<8x128xf32>, vector<128x384xf32>, vector<8x384xf32> -> vector<8x384xf32>
    %153 = vector.broadcast %7 : vector<1x384xf32> to vector<8x384xf32>
    %154 = arith.addf %152, %153 : vector<8x384xf32>
    %155 = vector.extract_strided_slice %151 {offsets = [0, 0], sizes = [8, 128], strides = [1, 1]} : vector<8x384xf32> to vector<8x128xf32>
    %156 = vector.extract_strided_slice %154 {offsets = [0, 0], sizes = [8, 128], strides = [1, 1]} : vector<8x384xf32> to vector<8x128xf32>
    %157 = arith.addf %155, %156 : vector<8x128xf32>
    %158 = arith.negf %157 : vector<8x128xf32>
    %159 = math.exp %158 : vector<8x128xf32>
    %cst_56 = arith.constant 1.000000e+00 : f32
    %160 = vector.broadcast %cst_56 : f32 to vector<8x128xf32>
    %161 = arith.addf %160, %159 : vector<8x128xf32>
    %162 = arith.divf %160, %161 : vector<8x128xf32>
    %163 = vector.extract_strided_slice %151 {offsets = [0, 128], sizes = [8, 128], strides = [1, 1]} : vector<8x384xf32> to vector<8x128xf32>
    %164 = vector.extract_strided_slice %154 {offsets = [0, 128], sizes = [8, 128], strides = [1, 1]} : vector<8x384xf32> to vector<8x128xf32>
    %165 = arith.addf %163, %164 : vector<8x128xf32>
    %166 = arith.negf %165 : vector<8x128xf32>
    %167 = math.exp %166 : vector<8x128xf32>
    %cst_57 = arith.constant 1.000000e+00 : f32
    %168 = vector.broadcast %cst_57 : f32 to vector<8x128xf32>
    %169 = arith.addf %168, %167 : vector<8x128xf32>
    %170 = arith.divf %168, %169 : vector<8x128xf32>
    %171 = vector.extract_strided_slice %151 {offsets = [0, 256], sizes = [8, 128], strides = [1, 1]} : vector<8x384xf32> to vector<8x128xf32>
    %172 = vector.extract_strided_slice %154 {offsets = [0, 256], sizes = [8, 128], strides = [1, 1]} : vector<8x384xf32> to vector<8x128xf32>
    %173 = arith.mulf %162, %172 : vector<8x128xf32>
    %174 = arith.addf %171, %173 : vector<8x128xf32>
    %175 = math.tanh %174 : vector<8x128xf32>
    %cst_58 = arith.constant 1.000000e+00 : f32
    %176 = vector.broadcast %cst_58 : f32 to vector<8x128xf32>
    %177 = arith.subf %176, %170 : vector<8x128xf32>
    %178 = arith.mulf %177, %175 : vector<8x128xf32>
    %179 = arith.mulf %170, %136 : vector<8x128xf32>
    %180 = arith.addf %178, %179 : vector<8x128xf32>
    %cst_59 = arith.constant dense<0.000000e+00> : vector<8x128xf32>
    %181 = tpu.matmul %180, %8, %cst_59 {dimension_numbers = #tpu.dot_dimension_numbers<[1], [0], [0], [1], [0, 0, 1, 1], [], []>} : vector<8x128xf32>, vector<128x128xf32>, vector<8x128xf32> -> vector<8x128xf32>
    %182 = vector.broadcast %9 : vector<1x128xf32> to vector<8x128xf32>
    %183 = arith.addf %181, %182 : vector<8x128xf32>
    %184 = arith.index_cast %c3_i32 : i32 to index
    %c0_60 = arith.constant 0 : index
    %c0_61 = arith.constant 0 : index
    %185 = vector.load %arg10[%184, %c0_60, %c0_61] : memref<8x8x128xf32, #tpu.memory_space<vmem>>, vector<1x8x128xf32>
    %186 = vector.shape_cast %185 : vector<1x8x128xf32> to vector<8x128xf32>
    %187 = vector.shape_cast %183 : vector<8x128xf32> to vector<1x8x128xf32>
    tpu.vector_store %arg10[%184, %c0_60, %c0_61], %187 {strides = array<i32>} : memref<8x8x128xf32, #tpu.memory_space<vmem>>, vector<1x8x128xf32>,
    %c4_i32 = arith.constant 4 : i32
    %188 = arith.index_cast %c4_i32 : i32 to index
    %c0_62 = arith.constant 0 : index
    %c0_63 = arith.constant 0 : index
    %189 = vector.load %arg2[%188, %c0_62, %c0_63] : memref<8x8x16xf32, #tpu.memory_space<vmem>>, vector<1x8x16xf32>
    %190 = vector.shape_cast %189 : vector<1x8x16xf32> to vector<8x16xf32>
    %cst_64 = arith.constant dense<0.000000e+00> : vector<8x384xf32>
    %191 = tpu.matmul %190, %3, %cst_64 {dimension_numbers = #tpu.dot_dimension_numbers<[1], [0], [0], [1], [0, 0, 1, 1], [], []>} : vector<8x16xf32>, vector<16x384xf32>, vector<8x384xf32> -> vector<8x384xf32>
    %cst_65 = arith.constant dense<0.000000e+00> : vector<8x384xf32>
    %192 = tpu.matmul %183, %4, %cst_65 {dimension_numbers = #tpu.dot_dimension_numbers<[1], [0], [0], [1], [0, 0, 1, 1], [], []>} : vector<8x128xf32>, vector<128x384xf32>, vector<8x384xf32> -> vector<8x384xf32>
    %193 = arith.addf %191, %192 : vector<8x384xf32>
    %194 = vector.broadcast %6 : vector<1x384xf32> to vector<8x384xf32>
    %195 = arith.addf %193, %194 : vector<8x384xf32>
    %cst_66 = arith.constant dense<0.000000e+00> : vector<8x384xf32>
    %196 = tpu.matmul %180, %5, %cst_66 {dimension_numbers = #tpu.dot_dimension_numbers<[1], [0], [0], [1], [0, 0, 1, 1], [], []>} : vector<8x128xf32>, vector<128x384xf32>, vector<8x384xf32> -> vector<8x384xf32>
    %197 = vector.broadcast %7 : vector<1x384xf32> to vector<8x384xf32>
    %198 = arith.addf %196, %197 : vector<8x384xf32>
    %199 = vector.extract_strided_slice %195 {offsets = [0, 0], sizes = [8, 128], strides = [1, 1]} : vector<8x384xf32> to vector<8x128xf32>
    %200 = vector.extract_strided_slice %198 {offsets = [0, 0], sizes = [8, 128], strides = [1, 1]} : vector<8x384xf32> to vector<8x128xf32>
    %201 = arith.addf %199, %200 : vector<8x128xf32>
    %202 = arith.negf %201 : vector<8x128xf32>
    %203 = math.exp %202 : vector<8x128xf32>
    %cst_67 = arith.constant 1.000000e+00 : f32
    %204 = vector.broadcast %cst_67 : f32 to vector<8x128xf32>
    %205 = arith.addf %204, %203 : vector<8x128xf32>
    %206 = arith.divf %204, %205 : vector<8x128xf32>
    %207 = vector.extract_strided_slice %195 {offsets = [0, 128], sizes = [8, 128], strides = [1, 1]} : vector<8x384xf32> to vector<8x128xf32>
    %208 = vector.extract_strided_slice %198 {offsets = [0, 128], sizes = [8, 128], strides = [1, 1]} : vector<8x384xf32> to vector<8x128xf32>
    %209 = arith.addf %207, %208 : vector<8x128xf32>
    %210 = arith.negf %209 : vector<8x128xf32>
    %211 = math.exp %210 : vector<8x128xf32>
    %cst_68 = arith.constant 1.000000e+00 : f32
    %212 = vector.broadcast %cst_68 : f32 to vector<8x128xf32>
    %213 = arith.addf %212, %211 : vector<8x128xf32>
    %214 = arith.divf %212, %213 : vector<8x128xf32>
    %215 = vector.extract_strided_slice %195 {offsets = [0, 256], sizes = [8, 128], strides = [1, 1]} : vector<8x384xf32> to vector<8x128xf32>
    %216 = vector.extract_strided_slice %198 {offsets = [0, 256], sizes = [8, 128], strides = [1, 1]} : vector<8x384xf32> to vector<8x128xf32>
    %217 = arith.mulf %206, %216 : vector<8x128xf32>
    %218 = arith.addf %215, %217 : vector<8x128xf32>
    %219 = math.tanh %218 : vector<8x128xf32>
    %cst_69 = arith.constant 1.000000e+00 : f32
    %220 = vector.broadcast %cst_69 : f32 to vector<8x128xf32>
    %221 = arith.subf %220, %214 : vector<8x128xf32>
    %222 = arith.mulf %221, %219 : vector<8x128xf32>
    %223 = arith.mulf %214, %180 : vector<8x128xf32>
    %224 = arith.addf %222, %223 : vector<8x128xf32>
    %cst_70 = arith.constant dense<0.000000e+00> : vector<8x128xf32>
    %225 = tpu.matmul %224, %8, %cst_70 {dimension_numbers = #tpu.dot_dimension_numbers<[1], [0], [0], [1], [0, 0, 1, 1], [], []>} : vector<8x128xf32>, vector<128x128xf32>, vector<8x128xf32> -> vector<8x128xf32>
    %226 = vector.broadcast %9 : vector<1x128xf32> to vector<8x128xf32>
    %227 = arith.addf %225, %226 : vector<8x128xf32>
    %228 = arith.index_cast %c4_i32 : i32 to index
    %c0_71 = arith.constant 0 : index
    %c0_72 = arith.constant 0 : index
    %229 = vector.load %arg10[%228, %c0_71, %c0_72] : memref<8x8x128xf32, #tpu.memory_space<vmem>>, vector<1x8x128xf32>
    %230 = vector.shape_cast %229 : vector<1x8x128xf32> to vector<8x128xf32>
    %231 = vector.shape_cast %227 : vector<8x128xf32> to vector<1x8x128xf32>
    tpu.vector_store %arg10[%228, %c0_71, %c0_72], %231 {strides = array<i32>} : memref<8x8x128xf32, #tpu.memory_space<vmem>>, vector<1x8x128xf32>,
    %c5_i32 = arith.constant 5 : i32
    %232 = arith.index_cast %c5_i32 : i32 to index
    %c0_73 = arith.constant 0 : index
    %c0_74 = arith.constant 0 : index
    %233 = vector.load %arg2[%232, %c0_73, %c0_74] : memref<8x8x16xf32, #tpu.memory_space<vmem>>, vector<1x8x16xf32>
    %234 = vector.shape_cast %233 : vector<1x8x16xf32> to vector<8x16xf32>
    %cst_75 = arith.constant dense<0.000000e+00> : vector<8x384xf32>
    %235 = tpu.matmul %234, %3, %cst_75 {dimension_numbers = #tpu.dot_dimension_numbers<[1], [0], [0], [1], [0, 0, 1, 1], [], []>} : vector<8x16xf32>, vector<16x384xf32>, vector<8x384xf32> -> vector<8x384xf32>
    %cst_76 = arith.constant dense<0.000000e+00> : vector<8x384xf32>
    %236 = tpu.matmul %227, %4, %cst_76 {dimension_numbers = #tpu.dot_dimension_numbers<[1], [0], [0], [1], [0, 0, 1, 1], [], []>} : vector<8x128xf32>, vector<128x384xf32>, vector<8x384xf32> -> vector<8x384xf32>
    %237 = arith.addf %235, %236 : vector<8x384xf32>
    %238 = vector.broadcast %6 : vector<1x384xf32> to vector<8x384xf32>
    %239 = arith.addf %237, %238 : vector<8x384xf32>
    %cst_77 = arith.constant dense<0.000000e+00> : vector<8x384xf32>
    %240 = tpu.matmul %224, %5, %cst_77 {dimension_numbers = #tpu.dot_dimension_numbers<[1], [0], [0], [1], [0, 0, 1, 1], [], []>} : vector<8x128xf32>, vector<128x384xf32>, vector<8x384xf32> -> vector<8x384xf32>
    %241 = vector.broadcast %7 : vector<1x384xf32> to vector<8x384xf32>
    %242 = arith.addf %240, %241 : vector<8x384xf32>
    %243 = vector.extract_strided_slice %239 {offsets = [0, 0], sizes = [8, 128], strides = [1, 1]} : vector<8x384xf32> to vector<8x128xf32>
    %244 = vector.extract_strided_slice %242 {offsets = [0, 0], sizes = [8, 128], strides = [1, 1]} : vector<8x384xf32> to vector<8x128xf32>
    %245 = arith.addf %243, %244 : vector<8x128xf32>
    %246 = arith.negf %245 : vector<8x128xf32>
    %247 = math.exp %246 : vector<8x128xf32>
    %cst_78 = arith.constant 1.000000e+00 : f32
    %248 = vector.broadcast %cst_78 : f32 to vector<8x128xf32>
    %249 = arith.addf %248, %247 : vector<8x128xf32>
    %250 = arith.divf %248, %249 : vector<8x128xf32>
    %251 = vector.extract_strided_slice %239 {offsets = [0, 128], sizes = [8, 128], strides = [1, 1]} : vector<8x384xf32> to vector<8x128xf32>
    %252 = vector.extract_strided_slice %242 {offsets = [0, 128], sizes = [8, 128], strides = [1, 1]} : vector<8x384xf32> to vector<8x128xf32>
    %253 = arith.addf %251, %252 : vector<8x128xf32>
    %254 = arith.negf %253 : vector<8x128xf32>
    %255 = math.exp %254 : vector<8x128xf32>
    %cst_79 = arith.constant 1.000000e+00 : f32
    %256 = vector.broadcast %cst_79 : f32 to vector<8x128xf32>
    %257 = arith.addf %256, %255 : vector<8x128xf32>
    %258 = arith.divf %256, %257 : vector<8x128xf32>
    %259 = vector.extract_strided_slice %239 {offsets = [0, 256], sizes = [8, 128], strides = [1, 1]} : vector<8x384xf32> to vector<8x128xf32>
    %260 = vector.extract_strided_slice %242 {offsets = [0, 256], sizes = [8, 128], strides = [1, 1]} : vector<8x384xf32> to vector<8x128xf32>
    %261 = arith.mulf %250, %260 : vector<8x128xf32>
    %262 = arith.addf %259, %261 : vector<8x128xf32>
    %263 = math.tanh %262 : vector<8x128xf32>
    %cst_80 = arith.constant 1.000000e+00 : f32
    %264 = vector.broadcast %cst_80 : f32 to vector<8x128xf32>
    %265 = arith.subf %264, %258 : vector<8x128xf32>
    %266 = arith.mulf %265, %263 : vector<8x128xf32>
    %267 = arith.mulf %258, %224 : vector<8x128xf32>
    %268 = arith.addf %266, %267 : vector<8x128xf32>
    %cst_81 = arith.constant dense<0.000000e+00> : vector<8x128xf32>
    %269 = tpu.matmul %268, %8, %cst_81 {dimension_numbers = #tpu.dot_dimension_numbers<[1], [0], [0], [1], [0, 0, 1, 1], [], []>} : vector<8x128xf32>, vector<128x128xf32>, vector<8x128xf32> -> vector<8x128xf32>
    %270 = vector.broadcast %9 : vector<1x128xf32> to vector<8x128xf32>
    %271 = arith.addf %269, %270 : vector<8x128xf32>
    %272 = arith.index_cast %c5_i32 : i32 to index
    %c0_82 = arith.constant 0 : index
    %c0_83 = arith.constant 0 : index
    %273 = vector.load %arg10[%272, %c0_82, %c0_83] : memref<8x8x128xf32, #tpu.memory_space<vmem>>, vector<1x8x128xf32>
    %274 = vector.shape_cast %273 : vector<1x8x128xf32> to vector<8x128xf32>
    %275 = vector.shape_cast %271 : vector<8x128xf32> to vector<1x8x128xf32>
    tpu.vector_store %arg10[%272, %c0_82, %c0_83], %275 {strides = array<i32>} : memref<8x8x128xf32, #tpu.memory_space<vmem>>, vector<1x8x128xf32>,
    %c6_i32 = arith.constant 6 : i32
    %276 = arith.index_cast %c6_i32 : i32 to index
    %c0_84 = arith.constant 0 : index
    %c0_85 = arith.constant 0 : index
    %277 = vector.load %arg2[%276, %c0_84, %c0_85] : memref<8x8x16xf32, #tpu.memory_space<vmem>>, vector<1x8x16xf32>
    %278 = vector.shape_cast %277 : vector<1x8x16xf32> to vector<8x16xf32>
    %cst_86 = arith.constant dense<0.000000e+00> : vector<8x384xf32>
    %279 = tpu.matmul %278, %3, %cst_86 {dimension_numbers = #tpu.dot_dimension_numbers<[1], [0], [0], [1], [0, 0, 1, 1], [], []>} : vector<8x16xf32>, vector<16x384xf32>, vector<8x384xf32> -> vector<8x384xf32>
    %cst_87 = arith.constant dense<0.000000e+00> : vector<8x384xf32>
    %280 = tpu.matmul %271, %4, %cst_87 {dimension_numbers = #tpu.dot_dimension_numbers<[1], [0], [0], [1], [0, 0, 1, 1], [], []>} : vector<8x128xf32>, vector<128x384xf32>, vector<8x384xf32> -> vector<8x384xf32>
    %281 = arith.addf %279, %280 : vector<8x384xf32>
    %282 = vector.broadcast %6 : vector<1x384xf32> to vector<8x384xf32>
    %283 = arith.addf %281, %282 : vector<8x384xf32>
    %cst_88 = arith.constant dense<0.000000e+00> : vector<8x384xf32>
    %284 = tpu.matmul %268, %5, %cst_88 {dimension_numbers = #tpu.dot_dimension_numbers<[1], [0], [0], [1], [0, 0, 1, 1], [], []>} : vector<8x128xf32>, vector<128x384xf32>, vector<8x384xf32> -> vector<8x384xf32>
    %285 = vector.broadcast %7 : vector<1x384xf32> to vector<8x384xf32>
    %286 = arith.addf %284, %285 : vector<8x384xf32>
    %287 = vector.extract_strided_slice %283 {offsets = [0, 0], sizes = [8, 128], strides = [1, 1]} : vector<8x384xf32> to vector<8x128xf32>
    %288 = vector.extract_strided_slice %286 {offsets = [0, 0], sizes = [8, 128], strides = [1, 1]} : vector<8x384xf32> to vector<8x128xf32>
    %289 = arith.addf %287, %288 : vector<8x128xf32>
    %290 = arith.negf %289 : vector<8x128xf32>
    %291 = math.exp %290 : vector<8x128xf32>
    %cst_89 = arith.constant 1.000000e+00 : f32
    %292 = vector.broadcast %cst_89 : f32 to vector<8x128xf32>
    %293 = arith.addf %292, %291 : vector<8x128xf32>
    %294 = arith.divf %292, %293 : vector<8x128xf32>
    %295 = vector.extract_strided_slice %283 {offsets = [0, 128], sizes = [8, 128], strides = [1, 1]} : vector<8x384xf32> to vector<8x128xf32>
    %296 = vector.extract_strided_slice %286 {offsets = [0, 128], sizes = [8, 128], strides = [1, 1]} : vector<8x384xf32> to vector<8x128xf32>
    %297 = arith.addf %295, %296 : vector<8x128xf32>
    %298 = arith.negf %297 : vector<8x128xf32>
    %299 = math.exp %298 : vector<8x128xf32>
    %cst_90 = arith.constant 1.000000e+00 : f32
    %300 = vector.broadcast %cst_90 : f32 to vector<8x128xf32>
    %301 = arith.addf %300, %299 : vector<8x128xf32>
    %302 = arith.divf %300, %301 : vector<8x128xf32>
    %303 = vector.extract_strided_slice %283 {offsets = [0, 256], sizes = [8, 128], strides = [1, 1]} : vector<8x384xf32> to vector<8x128xf32>
    %304 = vector.extract_strided_slice %286 {offsets = [0, 256], sizes = [8, 128], strides = [1, 1]} : vector<8x384xf32> to vector<8x128xf32>
    %305 = arith.mulf %294, %304 : vector<8x128xf32>
    %306 = arith.addf %303, %305 : vector<8x128xf32>
    %307 = math.tanh %306 : vector<8x128xf32>
    %cst_91 = arith.constant 1.000000e+00 : f32
    %308 = vector.broadcast %cst_91 : f32 to vector<8x128xf32>
    %309 = arith.subf %308, %302 : vector<8x128xf32>
    %310 = arith.mulf %309, %307 : vector<8x128xf32>
    %311 = arith.mulf %302, %268 : vector<8x128xf32>
    %312 = arith.addf %310, %311 : vector<8x128xf32>
    %cst_92 = arith.constant dense<0.000000e+00> : vector<8x128xf32>
    %313 = tpu.matmul %312, %8, %cst_92 {dimension_numbers = #tpu.dot_dimension_numbers<[1], [0], [0], [1], [0, 0, 1, 1], [], []>} : vector<8x128xf32>, vector<128x128xf32>, vector<8x128xf32> -> vector<8x128xf32>
    %314 = vector.broadcast %9 : vector<1x128xf32> to vector<8x128xf32>
    %315 = arith.addf %313, %314 : vector<8x128xf32>
    %316 = arith.index_cast %c6_i32 : i32 to index
    %c0_93 = arith.constant 0 : index
    %c0_94 = arith.constant 0 : index
    %317 = vector.load %arg10[%316, %c0_93, %c0_94] : memref<8x8x128xf32, #tpu.memory_space<vmem>>, vector<1x8x128xf32>
    %318 = vector.shape_cast %317 : vector<1x8x128xf32> to vector<8x128xf32>
    %319 = vector.shape_cast %315 : vector<8x128xf32> to vector<1x8x128xf32>
    tpu.vector_store %arg10[%316, %c0_93, %c0_94], %319 {strides = array<i32>} : memref<8x8x128xf32, #tpu.memory_space<vmem>>, vector<1x8x128xf32>,
    %c7_i32 = arith.constant 7 : i32
    %320 = arith.index_cast %c7_i32 : i32 to index
    %c0_95 = arith.constant 0 : index
    %c0_96 = arith.constant 0 : index
    %321 = vector.load %arg2[%320, %c0_95, %c0_96] : memref<8x8x16xf32, #tpu.memory_space<vmem>>, vector<1x8x16xf32>
    %322 = vector.shape_cast %321 : vector<1x8x16xf32> to vector<8x16xf32>
    %cst_97 = arith.constant dense<0.000000e+00> : vector<8x384xf32>
    %323 = tpu.matmul %322, %3, %cst_97 {dimension_numbers = #tpu.dot_dimension_numbers<[1], [0], [0], [1], [0, 0, 1, 1], [], []>} : vector<8x16xf32>, vector<16x384xf32>, vector<8x384xf32> -> vector<8x384xf32>
    %cst_98 = arith.constant dense<0.000000e+00> : vector<8x384xf32>
    %324 = tpu.matmul %315, %4, %cst_98 {dimension_numbers = #tpu.dot_dimension_numbers<[1], [0], [0], [1], [0, 0, 1, 1], [], []>} : vector<8x128xf32>, vector<128x384xf32>, vector<8x384xf32> -> vector<8x384xf32>
    %325 = arith.addf %323, %324 : vector<8x384xf32>
    %326 = vector.broadcast %6 : vector<1x384xf32> to vector<8x384xf32>
    %327 = arith.addf %325, %326 : vector<8x384xf32>
    %cst_99 = arith.constant dense<0.000000e+00> : vector<8x384xf32>
    %328 = tpu.matmul %312, %5, %cst_99 {dimension_numbers = #tpu.dot_dimension_numbers<[1], [0], [0], [1], [0, 0, 1, 1], [], []>} : vector<8x128xf32>, vector<128x384xf32>, vector<8x384xf32> -> vector<8x384xf32>
    %329 = vector.broadcast %7 : vector<1x384xf32> to vector<8x384xf32>
    %330 = arith.addf %328, %329 : vector<8x384xf32>
    %331 = vector.extract_strided_slice %327 {offsets = [0, 0], sizes = [8, 128], strides = [1, 1]} : vector<8x384xf32> to vector<8x128xf32>
    %332 = vector.extract_strided_slice %330 {offsets = [0, 0], sizes = [8, 128], strides = [1, 1]} : vector<8x384xf32> to vector<8x128xf32>
    %333 = arith.addf %331, %332 : vector<8x128xf32>
    %334 = arith.negf %333 : vector<8x128xf32>
    %335 = math.exp %334 : vector<8x128xf32>
    %cst_100 = arith.constant 1.000000e+00 : f32
    %336 = vector.broadcast %cst_100 : f32 to vector<8x128xf32>
    %337 = arith.addf %336, %335 : vector<8x128xf32>
    %338 = arith.divf %336, %337 : vector<8x128xf32>
    %339 = vector.extract_strided_slice %327 {offsets = [0, 128], sizes = [8, 128], strides = [1, 1]} : vector<8x384xf32> to vector<8x128xf32>
    %340 = vector.extract_strided_slice %330 {offsets = [0, 128], sizes = [8, 128], strides = [1, 1]} : vector<8x384xf32> to vector<8x128xf32>
    %341 = arith.addf %339, %340 : vector<8x128xf32>
    %342 = arith.negf %341 : vector<8x128xf32>
    %343 = math.exp %342 : vector<8x128xf32>
    %cst_101 = arith.constant 1.000000e+00 : f32
    %344 = vector.broadcast %cst_101 : f32 to vector<8x128xf32>
    %345 = arith.addf %344, %343 : vector<8x128xf32>
    %346 = arith.divf %344, %345 : vector<8x128xf32>
    %347 = vector.extract_strided_slice %327 {offsets = [0, 256], sizes = [8, 128], strides = [1, 1]} : vector<8x384xf32> to vector<8x128xf32>
    %348 = vector.extract_strided_slice %330 {offsets = [0, 256], sizes = [8, 128], strides = [1, 1]} : vector<8x384xf32> to vector<8x128xf32>
    %349 = arith.mulf %338, %348 : vector<8x128xf32>
    %350 = arith.addf %347, %349 : vector<8x128xf32>
    %351 = math.tanh %350 : vector<8x128xf32>
    %cst_102 = arith.constant 1.000000e+00 : f32
    %352 = vector.broadcast %cst_102 : f32 to vector<8x128xf32>
    %353 = arith.subf %352, %346 : vector<8x128xf32>
    %354 = arith.mulf %353, %351 : vector<8x128xf32>
    %355 = arith.mulf %346, %312 : vector<8x128xf32>
    %356 = arith.addf %354, %355 : vector<8x128xf32>
    %cst_103 = arith.constant dense<0.000000e+00> : vector<8x128xf32>
    %357 = tpu.matmul %356, %8, %cst_103 {dimension_numbers = #tpu.dot_dimension_numbers<[1], [0], [0], [1], [0, 0, 1, 1], [], []>} : vector<8x128xf32>, vector<128x128xf32>, vector<8x128xf32> -> vector<8x128xf32>
    %358 = vector.broadcast %9 : vector<1x128xf32> to vector<8x128xf32>
    %359 = arith.addf %357, %358 : vector<8x128xf32>
    %360 = arith.index_cast %c7_i32 : i32 to index
    %c0_104 = arith.constant 0 : index
    %c0_105 = arith.constant 0 : index
    %361 = vector.load %arg10[%360, %c0_104, %c0_105] : memref<8x8x128xf32, #tpu.memory_space<vmem>>, vector<1x8x128xf32>
    %362 = vector.shape_cast %361 : vector<1x8x128xf32> to vector<8x128xf32>
    %363 = vector.shape_cast %359 : vector<8x128xf32> to vector<1x8x128xf32>
    tpu.vector_store %arg10[%360, %c0_104, %c0_105], %363 {strides = array<i32>} : memref<8x8x128xf32, #tpu.memory_space<vmem>>, vector<1x8x128xf32>,
    %c8_i32 = arith.constant 8 : i32
    %c0_106 = arith.constant 0 : index
    %c0_107 = arith.constant 0 : index
    %364 = vector.load %arg11[%c0_106, %c0_107] : memref<8x128xf32, #tpu.memory_space<vmem>>, vector<8x128xf32>
    tpu.vector_store %arg11[%c0_106, %c0_107], %356 {strides = array<i32>} : memref<8x128xf32, #tpu.memory_space<vmem>>, vector<8x128xf32>,
    %c0_108 = arith.constant 0 : index
    %c0_109 = arith.constant 0 : index
    %365 = vector.load %arg12[%c0_108, %c0_109] : memref<8x128xf32, #tpu.memory_space<vmem>>, vector<8x128xf32>
    tpu.vector_store %arg12[%c0_108, %c0_109], %359 {strides = array<i32>} : memref<8x128xf32, #tpu.memory_space<vmem>>, vector<8x128xf32>,
    return
  }
  func.func @transform_0(%arg0: i32, %arg1: i32) -> (i32, i32, i32) {
    %c0_i32 = arith.constant 0 : i32
    %c0_i32_0 = arith.constant 0 : i32
    return %arg1, %arg0, %c0_i32 : i32, i32, i32
  }
  func.func @transform_1(%arg0: i32, %arg1: i32) -> (i32, i32) {
    %c0_i32 = arith.constant 0 : i32
    %c0_i32_0 = arith.constant 0 : i32
    %c0_i32_1 = arith.constant 0 : i32
    return %c0_i32, %c0_i32_0 : i32, i32
  }
  func.func @transform_2(%arg0: i32, %arg1: i32) -> (i32, i32) {
    %c0_i32 = arith.constant 0 : i32
    %c0_i32_0 = arith.constant 0 : i32
    %c0_i32_1 = arith.constant 0 : i32
    return %c0_i32, %c0_i32_0 : i32, i32
  }
  func.func @transform_3(%arg0: i32, %arg1: i32) -> (i32, i32) {
    %c0_i32 = arith.constant 0 : i32
    %c0_i32_0 = arith.constant 0 : i32
    %c0_i32_1 = arith.constant 0 : i32
    return %c0_i32, %c0_i32_0 : i32, i32
  }
  func.func @transform_4(%arg0: i32, %arg1: i32) -> (i32, i32) {
    %c0_i32 = arith.constant 0 : i32
    %c0_i32_0 = arith.constant 0 : i32
    %c0_i32_1 = arith.constant 0 : i32
    return %c0_i32, %c0_i32_0 : i32, i32
  }
  func.func @transform_5(%arg0: i32, %arg1: i32) -> (i32, i32) {
    %c0_i32 = arith.constant 0 : i32
    %c0_i32_0 = arith.constant 0 : i32
    %c0_i32_1 = arith.constant 0 : i32
    return %c0_i32, %c0_i32_0 : i32, i32
  }
  func.func @transform_6(%arg0: i32, %arg1: i32) -> (i32, i32) {
    %c0_i32 = arith.constant 0 : i32
    %c0_i32_0 = arith.constant 0 : i32
    %c0_i32_1 = arith.constant 0 : i32
    return %c0_i32, %c0_i32_0 : i32, i32
  }
  func.func @transform_7(%arg0: i32, %arg1: i32) -> (i32, i32) {
    %c0_i32 = arith.constant 0 : i32
    %c0_i32_0 = arith.constant 0 : i32
    %c0_i32_1 = arith.constant 0 : i32
    return %c0_i32, %c0_i32_0 : i32, i32
  }
  func.func @transform_8(%arg0: i32, %arg1: i32) -> (i32, i32, i32) {
    %c0_i32 = arith.constant 0 : i32
    %c0_i32_0 = arith.constant 0 : i32
    return %arg1, %arg0, %c0_i32 : i32, i32, i32
  }
}

</mosaic_0001>

<llo_original>
// kernel: tpu_custom_call.1
$region0: #{tpu_custom_call.1}
  #allocation0 [shape = 'u32[]', space=smem, size = 0x4, offset = 0x4, fixed_abs, tag = 'smem constant byte address 0x4 - core index']
  #allocation1 [shape = 'u32[144,128]{1,0:T(1,128)}', space=vmem, size = 0x12000, scoped, tag = 'internal scratch']
  #allocation2 [shape = 'f32[8,128]{1,0:T(8,128)}', space=vmem, size = 0x1000, scoped, tag = 'scratch operand']
  #allocation3 [shape = 'f32[8,128]{1,0:T(8,128)}', space=vmem, size = 0x1000, scoped, tag = 'scratch operand']
  %s0 = inlined_call_operand.hbm [shape: f32[8,8,16], index: 0, kind: input, shape index: {}]
  %s1 = inlined_call_operand.hbm [shape: f32[16,384], index: 1, kind: input, shape index: {}]
  %s2 = inlined_call_operand.hbm [shape: f32[128,384], index: 2, kind: input, shape index: {}]
  %s3 = inlined_call_operand.hbm [shape: f32[128,384], index: 3, kind: input, shape index: {}]
  %s4 = inlined_call_operand.vmem [shape: f32[1,384], index: 4, kind: input, shape index: {}]
  %s5 = inlined_call_operand.vmem [shape: f32[1,384], index: 5, kind: input, shape index: {}]
  %s6 = inlined_call_operand.hbm [shape: f32[128,128], index: 6, kind: input, shape index: {}]
  %s7 = inlined_call_operand.vmem [shape: f32[1,128], index: 7, kind: input, shape index: {}]
  %s8 = inlined_call_operand.hbm [shape: f32[8,8,128], index: 8, kind: output, shape index: {}]
  %s9 = sld [smem:[#allocation0]]
  $region66: #{tpu_custom_call.1} parent=0
    _
  %s11 = ssub.s32 1, %s9
  %s12 = scalar_select 0, %s11, %s9
  $region1: #{tpu_custom_call.1} parent=0
    #allocation4 [shape = 'u8[32768]{0}', space=vmem, size = 0x8000, scoped, tag = 'input window, operand 0, single buffered']
    #allocation5 [shape = 's32[1]{0}', space=sflag, size = 0x4, scoped, tag = 'scoped memory for tpu_custom_call.1']
    #allocation6 [shape = 's32[1]{0}', space=sflag, size = 0x4, scoped, tag = 'scoped memory for tpu_custom_call.1']
    #allocation7 [shape = 'u8[24576]{0}', space=vmem, size = 0x6000, scoped, tag = 'input window, operand 1, single buffered']
    #allocation8 [shape = 's32[1]{0}', space=sflag, size = 0x4, scoped, tag = 'scoped memory for tpu_custom_call.1']
    #allocation9 [shape = 'u8[196608]{0}', space=vmem, size = 0x30000, scoped, tag = 'input window, operand 2, single buffered']
    #allocation10 [shape = 'u8[196608]{0}', space=vmem, size = 0x30000, scoped, tag = 'input window, operand 3, single buffered']
    #allocation11 [shape = 's32[1]{0}', space=sflag, size = 0x4, scoped, tag = 'scoped memory for tpu_custom_call.1']
    #allocation12 [shape = 'u8[65536]{0}', space=vmem, size = 0x10000, scoped, tag = 'input window, operand 6, single buffered']
    #allocation13 [shape = 'u8[32768]{0}', space=vmem, size = 0x8000, scoped, tag = 'output window, operand 0, single buffered']
    %13 = vsyncpa [#allocation5], 0
    %14 = vsyncpa [#allocation8], 0
    %15 = vsyncpa [#allocation11], 0
    %16 = vsyncpa [#allocation6], 0
    // Predicated region
    $region2: #{tpu_custom_call.1} parent=1 // pred_check
      _
    $region3: #{tpu_custom_call.1} parent=1 // pred_check_branch
      %18 = sbr.rel (0) target = $region5
    $region4: #{tpu_custom_call.1} parent=1 // pred_region
      %s20 = ssub.s32 1024, 1024
      %21 = vsyncadd [#allocation5], %s20
      %s22 = sshll.u32 [#allocation4], 4
      %s23 = int_to_ptr.vmem [resolvable:$true] %s22
      %28 = dma.hbm_to_vmem [thread:$0]  %s0, 1024, %s23, [#allocation5], 128, 128, 8
    $region5: #{tpu_custom_call.1} parent=1 // pred_fallthru
      _
    // Predicated region
    $region6: #{tpu_custom_call.1} parent=1 // pred_check
      _
    $region7: #{tpu_custom_call.1} parent=1 // pred_check_branch
      %30 = sbr.rel (0) target = $region9
    $region8: #{tpu_custom_call.1} parent=1 // pred_region
      %s32 = ssub.s32 768, 768
      %33 = vsyncadd [#allocation8], %s32
      %s34 = sshll.u32 [#allocation7], 4
      %s35 = int_to_ptr.vmem [resolvable:$true] %s34
      %40 = dma.hbm_to_vmem [thread:$0]  %s1, 768, %s35, [#allocation8], 384, 384, 24
    $region9: #{tpu_custom_call.1} parent=1 // pred_fallthru
      _
    // Predicated region
    $region10: #{tpu_custom_call.1} parent=1 // pred_check
      _
    $region11: #{tpu_custom_call.1} parent=1 // pred_check_branch
      %42 = sbr.rel (0) target = $region13
    $region12: #{tpu_custom_call.1} parent=1 // pred_region
      %s44 = ssub.s32 6144, 6144
      %45 = vsyncadd [#allocation8], %s44
      %s46 = sshll.u32 [#allocation9], 4
      %s47 = int_to_ptr.vmem [resolvable:$true] %s46
      %52 = dma.hbm_to_vmem [thread:$0]  %s2, 6144, %s47, [#allocation8], 384, 384, 24
    $region13: #{tpu_custom_call.1} parent=1 // pred_fallthru
      _
    // Predicated region
    $region14: #{tpu_custom_call.1} parent=1 // pred_check
      _
    $region15: #{tpu_custom_call.1} parent=1 // pred_check_branch
      %54 = sbr.rel (0) target = $region17
    $region16: #{tpu_custom_call.1} parent=1 // pred_region
      %s56 = ssub.s32 6144, 6144
      %57 = vsyncadd [#allocation11], %s56
      %s58 = sshll.u32 [#allocation10], 4
      %s59 = int_to_ptr.vmem [resolvable:$true] %s58
      %64 = dma.hbm_to_vmem [thread:$0]  %s3, 6144, %s59, [#allocation11], 384, 384, 24
    $region17: #{tpu_custom_call.1} parent=1 // pred_fallthru
      _
    // Predicated region
    $region18: #{tpu_custom_call.1} parent=1 // pred_check
      _
    $region19: #{tpu_custom_call.1} parent=1 // pred_check_branch
      %66 = sbr.rel (0) target = $region21
    $region20: #{tpu_custom_call.1} parent=1 // pred_region
      _
    $region21: #{tpu_custom_call.1} parent=1 // pred_fallthru
      _
    // Predicated region
    $region22: #{tpu_custom_call.1} parent=1 // pred_check
      _
    $region23: #{tpu_custom_call.1} parent=1 // pred_check_branch
      %68 = sbr.rel (0) target = $region25
    $region24: #{tpu_custom_call.1} parent=1 // pred_region
      _
    $region25: #{tpu_custom_call.1} parent=1 // pred_fallthru
      _
    // Predicated region
    $region26: #{tpu_custom_call.1} parent=1 // pred_check
      _
    $region27: #{tpu_custom_call.1} parent=1 // pred_check_branch
      %70 = sbr.rel (0) target = $region29
    $region28: #{tpu_custom_call.1} parent=1 // pred_region
      %s72 = ssub.s32 2048, 2048
      %73 = vsyncadd [#allocation11], %s72
      %s74 = sshll.u32 [#allocation12], 4
      %s75 = int_to_ptr.vmem [resolvable:$true] %s74
      %80 = dma.hbm_to_vmem [thread:$0]  %s6, 2048, %s75, [#allocation11], 128, 128, 8
    $region29: #{tpu_custom_call.1} parent=1 // pred_fallthru
      _
    // Predicated region
    $region30: #{tpu_custom_call.1} parent=1 // pred_check
      _
    $region31: #{tpu_custom_call.1} parent=1 // pred_check_branch
      %82 = sbr.rel (0) target = $region33
    $region32: #{tpu_custom_call.1} parent=1 // pred_region
      _
    $region33: #{tpu_custom_call.1} parent=1 // pred_fallthru
      _
    // Predicated region
    $region34: #{tpu_custom_call.1} parent=1 // pred_check
      _
    $region35: #{tpu_custom_call.1} parent=1 // pred_check_branch
      %84 = sbr.rel (0) target = $region37
    $region36: #{tpu_custom_call.1} parent=1 // pred_region
      %85 = dma.done [#allocation5], 1024
    $region37: #{tpu_custom_call.1} parent=1 // pred_fallthru
      _
    // Predicated region
    $region38: #{tpu_custom_call.1} parent=1 // pred_check
      _
    $region39: #{tpu_custom_call.1} parent=1 // pred_check_branch
      %87 = sbr.rel (0) target = $region41
    $region40: #{tpu_custom_call.1} parent=1 // pred_region
      %88 = dma.done [#allocation8], 768
    $region41: #{tpu_custom_call.1} parent=1 // pred_fallthru
      _
    // Predicated region
    $region42: #{tpu_custom_call.1} parent=1 // pred_check
      _
    $region43: #{tpu_custom_call.1} parent=1 // pred_check_branch
      %90 = sbr.rel (0) target = $region45
    $region44: #{tpu_custom_call.1} parent=1 // pred_region
      %91 = dma.done [#allocation8], 6144
    $region45: #{tpu_custom_call.1} parent=1 // pred_fallthru
      _
    // Predicated region
    $region46: #{tpu_custom_call.1} parent=1 // pred_check
      _
    $region47: #{tpu_custom_call.1} parent=1 // pred_check_branch
      %93 = sbr.rel (0) target = $region49
    $region48: #{tpu_custom_call.1} parent=1 // pred_region
      %94 = dma.done [#allocation11], 6144
    $region49: #{tpu_custom_call.1} parent=1 // pred_fallthru
      _
    // Predicated region
    $region50: #{tpu_custom_call.1} parent=1 // pred_check
      _
    $region51: #{tpu_custom_call.1} parent=1 // pred_check_branch
      %96 = sbr.rel (0) target = $region53
    $region52: #{tpu_custom_call.1} parent=1 // pred_region
      %97 = dma.done [#allocation11], 2048
    $region53: #{tpu_custom_call.1} parent=1 // pred_fallthru
      _
    %p98 = scmp.eq.s32.totalorder 0, 0
    // Predicated region
    $region54: #{tpu_custom_call.1} parent=1 // pred_check
      %p99 = pneg %p98
    $region55: #{tpu_custom_call.1} parent=1 // pred_check_branch
      %101 = sbr.rel (%p99) target = $region57
    $region56: #{tpu_custom_call.1} parent=1 // pred_region
      %102 = vst [vmem:[#allocation2] sm:$0xff] 0.0
      %103 = vst [vmem:[#allocation3] sm:$0xff] 0.0
    $region57: #{tpu_custom_call.1} parent=1 // pred_fallthru
      _
    %v104 = vld [vmem:[#allocation7] sm:$0xff]
    %v105 = vld [vmem:[#allocation7 + $0x8] sm:$0xff]
    %v106 = vld [vmem:[#allocation7 + $0x10] sm:$0xff]
    %v107 = vld [vmem:[#allocation7 + $0x18] sm:$0xff]
    %v108 = vld [vmem:[#allocation7 + $0x20] sm:$0xff]
    %v109 = vld [vmem:[#allocation7 + $0x28] sm:$0xff]
    %v110 = vld [vmem:[#allocation9] sm:$0xff]
    %v111 = vld [vmem:[#allocation9 + $0x8] sm:$0xff]
    %v112 = vld [vmem:[#allocation9 + $0x10] sm:$0xff]
    %v113 = vld [vmem:[#allocation9 + $0x18] sm:$0xff]
    %v114 = vld [vmem:[#allocation9 + $0x20] sm:$0xff]
    %v115 = vld [vmem:[#allocation9 + $0x28] sm:$0xff]
    %v116 = vld [vmem:[#allocation9 + $0x30] sm:$0xff]
    %v117 = vld [vmem:[#allocation9 + $0x38] sm:$0xff]
    %v118 = vld [vmem:[#allocation9 + $0x40] sm:$0xff]
    %v119 = vld [vmem:[#allocation9 + $0x48] sm:$0xff]
    %v120 = vld [vmem:[#allocation9 + $0x50] sm:$0xff]
    %v121 = vld [vmem:[#allocation9 + $0x58] sm:$0xff]
    %v122 = vld [vmem:[#allocation9 + $0x60] sm:$0xff]
    %v123 = vld [vmem:[#allocation9 + $0x68] sm:$0xff]
    %v124 = vld [vmem:[#allocation9 + $0x70] sm:$0xff]
    %v125 = vld [vmem:[#allocation9 + $0x78] sm:$0xff]
    %v126 = vld [vmem:[#allocation9 + $0x80] sm:$0xff]
    %v127 = vld [vmem:[#allocation9 + $0x88] sm:$0xff]
    %v128 = vld [vmem:[#allocation9 + $0x90] sm:$0xff]
    %v129 = vld [vmem:[#allocation9 + $0x98] sm:$0xff]
    %v130 = vld [vmem:[#allocation9 + $0xa0] sm:$0xff]
    %v131 = vld [vmem:[#allocation9 + $0xa8] sm:$0xff]
    %v132 = vld [vmem:[#allocation9 + $0xb0] sm:$0xff]
    %v133 = vld [vmem:[#allocation9 + $0xb8] sm:$0xff]
    %v134 = vld [vmem:[#allocation9 + $0xc0] sm:$0xff]
    %v135 = vld [vmem:[#allocation9 + $0xc8] sm:$0xff]
    %v136 = vld [vmem:[#allocation9 + $0xd0] sm:$0xff]
    %v137 = vld [vmem:[#allocation9 + $0xd8] sm:$0xff]
    %v138 = vld [vmem:[#allocation9 + $0xe0] sm:$0xff]
    %v139 = vld [vmem:[#allocation9 + $0xe8] sm:$0xff]
    %v140 = vld [vmem:[#allocation9 + $0xf0] sm:$0xff]
    %v141 = vld [vmem:[#allocation9 + $0xf8] sm:$0xff]
    %v142 = vld [vmem:[#allocation9 + $0x100] sm:$0xff]
    %v143 = vld [vmem:[#allocation9 + $0x108] sm:$0xff]
    %v144 = vld [vmem:[#allocation9 + $0x110] sm:$0xff]
    %v145 = vld [vmem:[#allocation9 + $0x118] sm:$0xff]
    %v146 = vld [vmem:[#allocation9 + $0x120] sm:$0xff]
    %v147 = vld [vmem:[#allocation9 + $0x128] sm:$0xff]
    %v148 = vld [vmem:[#allocation9 + $0x130] sm:$0xff]
    %v149 = vld [vmem:[#allocation9 + $0x138] sm:$0xff]
    %v150 = vld [vmem:[#allocation9 + $0x140] sm:$0xff]
    %v151 = vld [vmem:[#allocation9 + $0x148] sm:$0xff]
    %v152 = vld [vmem:[#allocation9 + $0x150] sm:$0xff]
    %v153 = vld [vmem:[#allocation9 + $0x158] sm:$0xff]
    %v154 = vld [vmem:[#allocation9 + $0x160] sm:$0xff]
    %v155 = vld [vmem:[#allocation9 + $0x168] sm:$0xff]
    %v156 = vld [vmem:[#allocation9 + $0x170] sm:$0xff]
    %v157 = vld [vmem:[#allocation9 + $0x178] sm:$0xff]
    %v158 = vld [vmem:[#allocation10] sm:$0xff]
    %v159 = vld [vmem:[#allocation10 + $0x8] sm:$0xff]
    %v160 = vld [vmem:[#allocation10 + $0x10] sm:$0xff]
    %v161 = vld [vmem:[#allocation10 + $0x18] sm:$0xff]
    %v162 = vld [vmem:[#allocation10 + $0x20] sm:$0xff]
    %v163 = vld [vmem:[#allocation10 + $0x28] sm:$0xff]
    %v164 = vld [vmem:[#allocation10 + $0x30] sm:$0xff]
    %v165 = vld [vmem:[#allocation10 + $0x38] sm:$0xff]
    %v166 = vld [vmem:[#allocation10 + $0x40] sm:$0xff]
    %v167 = vld [vmem:[#allocation10 + $0x48] sm:$0xff]
    %v168 = vld [vmem:[#allocation10 + $0x50] sm:$0xff]
    %v169 = vld [vmem:[#allocation10 + $0x58] sm:$0xff]
    %v170 = vld [vmem:[#allocation10 + $0x60] sm:$0xff]
    %v171 = vld [vmem:[#allocation10 + $0x68] sm:$0xff]
    %v172 = vld [vmem:[#allocation10 + $0x70] sm:$0xff]
    %v173 = vld [vmem:[#allocation10 + $0x78] sm:$0xff]
    %v174 = vld [vmem:[#allocation10 + $0x80] sm:$0xff]
    %v175 = vld [vmem:[#allocation10 + $0x88] sm:$0xff]
    %v176 = vld [vmem:[#allocation10 + $0x90] sm:$0xff]
    %v177 = vld [vmem:[#allocation10 + $0x98] sm:$0xff]
    %v178 = vld [vmem:[#allocation10 + $0xa0] sm:$0xff]
    %v179 = vld [vmem:[#allocation10 + $0xa8] sm:$0xff]
    %v180 = vld [vmem:[#allocation10 + $0xb0] sm:$0xff]
    %v181 = vld [vmem:[#allocation10 + $0xb8] sm:$0xff]
    %v182 = vld [vmem:[#allocation10 + $0xc0] sm:$0xff]
    %v183 = vld [vmem:[#allocation10 + $0xc8] sm:$0xff]
    %v184 = vld [vmem:[#allocation10 + $0xd0] sm:$0xff]
    %v185 = vld [vmem:[#allocation10 + $0xd8] sm:$0xff]
    %v186 = vld [vmem:[#allocation10 + $0xe0] sm:$0xff]
    %v187 = vld [vmem:[#allocation10 + $0xe8] sm:$0xff]
    %v188 = vld [vmem:[#allocation10 + $0xf0] sm:$0xff]
    %v189 = vld [vmem:[#allocation10 + $0xf8] sm:$0xff]
    %v190 = vld [vmem:[#allocation10 + $0x100] sm:$0xff]
    %v191 = vld [vmem:[#allocation10 + $0x108] sm:$0xff]
    %v192 = vld [vmem:[#allocation10 + $0x110] sm:$0xff]
    %v193 = vld [vmem:[#allocation10 + $0x118] sm:$0xff]
    %v194 = vld [vmem:[#allocation10 + $0x120] sm:$0xff]
    %v195 = vld [vmem:[#allocation10 + $0x128] sm:$0xff]
    %v196 = vld [vmem:[#allocation10 + $0x130] sm:$0xff]
    %v197 = vld [vmem:[#allocation10 + $0x138] sm:$0xff]
    %v198 = vld [vmem:[#allocation10 + $0x140] sm:$0xff]
    %v199 = vld [vmem:[#allocation10 + $0x148] sm:$0xff]
    %v200 = vld [vmem:[#allocation10 + $0x150] sm:$0xff]
    %v201 = vld [vmem:[#allocation10 + $0x158] sm:$0xff]
    %v202 = vld [vmem:[#allocation10 + $0x160] sm:$0xff]
    %v203 = vld [vmem:[#allocation10 + $0x168] sm:$0xff]
    %v204 = vld [vmem:[#allocation10 + $0x170] sm:$0xff]
    %v205 = vld [vmem:[#allocation10 + $0x178] sm:$0xff]
    %v206 = vld [vmem:[%s4] sm:$0x7]
    %v207 = vld [vmem:[%s5] sm:$0x7]
    %v208 = vld [vmem:[#allocation12] sm:$0xff]
    %v209 = vld [vmem:[#allocation12 + $0x8] sm:$0xff]
    %v210 = vld [vmem:[#allocation12 + $0x10] sm:$0xff]
    %v211 = vld [vmem:[#allocation12 + $0x18] sm:$0xff]
    %v212 = vld [vmem:[#allocation12 + $0x20] sm:$0xff]
    %v213 = vld [vmem:[#allocation12 + $0x28] sm:$0xff]
    %v214 = vld [vmem:[#allocation12 + $0x30] sm:$0xff]
    %v215 = vld [vmem:[#allocation12 + $0x38] sm:$0xff]
    %v216 = vld [vmem:[#allocation12 + $0x40] sm:$0xff]
    %v217 = vld [vmem:[#allocation12 + $0x48] sm:$0xff]
    %v218 = vld [vmem:[#allocation12 + $0x50] sm:$0xff]
    %v219 = vld [vmem:[#allocation12 + $0x58] sm:$0xff]
    %v220 = vld [vmem:[#allocation12 + $0x60] sm:$0xff]
    %v221 = vld [vmem:[#allocation12 + $0x68] sm:$0xff]
    %v222 = vld [vmem:[#allocation12 + $0x70] sm:$0xff]
    %v223 = vld [vmem:[#allocation12 + $0x78] sm:$0xff]
    %v224 = vld [vmem:[%s7] sm:$0x1]
    %v225 = vld [vmem:[#allocation2] sm:$0xff]
    %v226 = vld [vmem:[#allocation3] sm:$0xff]
    %v227 = vld [vmem:[#allocation4] sm:$0xff]
    %228 = vmatprep.subr.mxu0 %v111
    %229 = vmatpush1.msra.mxu0 %v110
    %230 = vmatprep.subr.mxu0 %v114
    %231 = vmatpush1.msra.mxu0 %v113
    %232 = vmatprep.subr.mxu0 %v117
    %233 = vmatpush1.msra.mxu0 %v116
    %234 = vmatprep.subr.mxu0 %v120
    %235 = vmatpush1.msra.mxu0 %v119
    %236 = vmatprep.subr.mxu0 %v123
    %237 = vmatpush1.msra.mxu0 %v122
    %238 = vmatprep.subr.mxu0 %v126
    %239 = vmatpush1.msra.mxu0 %v125
    %240 = vmatprep.subr.mxu0 %v129
    %241 = vmatpush1.msra.mxu0 %v128
    %242 = vmatprep.subr.mxu0 %v132
    %243 = vmatpush1.msra.mxu0 %v131
    %244 = vmatprep.subr.mxu0 %v135
    %245 = vmatpush1.msra.mxu0 %v134
    %246 = vmatprep.subr.mxu0 %v138
    %247 = vmatpush1.msra.mxu0 %v137
    %248 = vmatprep.subr.mxu0 %v141
    %249 = vmatpush1.msra.mxu0 %v140
    %250 = vmatprep.subr.mxu0 %v144
    %251 = vmatpush1.msra.mxu0 %v143
    %252 = vmatprep.subr.mxu0 %v147
    %253 = vmatpush1.msra.mxu0 %v146
    %254 = vmatprep.subr.mxu0 %v150
    %255 = vmatpush1.msra.mxu0 %v149
    %256 = vmatprep.subr.mxu0 %v153
    %257 = vmatpush1.msra.mxu0 %v152
    %258 = vmatprep.subr.mxu0 %v156
    %259 = vmatpush1.msra.mxu0 %v155
    %260 = vmatprep.subr.mxu0 0.0
    %261 = vmatpush1.msra.mxu0 0.0
    %262 = vmatprep.subr.mxu0 0.0
    %263 = vmatpush1.msra.mxu0 0.0
    %264 = vmatprep.subr.mxu0 0.0
    %265 = vmatpush1.msra.mxu0 0.0
    %266 = vmatprep.subr.mxu0 0.0
    %267 = vmatpush1.msra.mxu0 0.0
    %268 = vmatprep.subr.mxu0 0.0
    %269 = vmatpush1.msra.mxu0 0.0
    %270 = vmatprep.subr.mxu0 0.0
    %271 = vmatpush1.msra.mxu0 0.0
    %272 = vmatprep.subr.mxu0 0.0
    %273 = vmatpush1.msra.mxu0 0.0
    %274 = vmatprep.subr.mxu0 0.0
    %275 = vmatpush1.msra.mxu0 0.0
    %276 = vmatprep.subr.mxu0 0.0
    %277 = vmatpush1.msra.mxu0 0.0
    %278 = vmatprep.subr.mxu0 0.0
    %279 = vmatpush1.msra.mxu0 0.0
    %280 = vmatprep.subr.mxu0 0.0
    %281 = vmatpush1.msra.mxu0 0.0
    %282 = vmatprep.subr.mxu0 0.0
    %283 = vmatpush1.msra.mxu0 0.0
    %284 = vmatprep.subr.mxu0 0.0
    %285 = vmatpush1.msra.mxu0 0.0
    %286 = vmatprep.subr.mxu0 0.0
    %287 = vmatpush1.msra.mxu0 0.0
    %288 = vmatprep.subr.mxu0 0.0
    %289 = vmatpush1.msra.mxu0 0.0
    %290 = vmatprep.subr.mxu0 0.0
    %291 = vmatpush1.msra.mxu0 0.0
    %292 = vmatprep.mubr.f32.mxu0 0.0
    %293 = vmatmul.mubr.f32.gmra.mrb[0].mxu0 %v226
    %v294 = vpop.f32.mrb[0].mxu0
    %v295 = vadd.f32 0.0, %v294
    %v296 = vpop.f32.mrb[0].mxu0
    %v297 = vadd.f32 0.0, %v296
    %298 = vdwg.mxu0
    %299 = vmatprep.subr.mxu0 0.0
    %300 = vmatpush1.msra.mxu0 %v112
    %301 = vmatprep.subr.mxu0 0.0
    %302 = vmatpush1.msra.mxu0 %v115
    %303 = vmatprep.subr.mxu0 0.0
    %304 = vmatpush1.msra.mxu0 %v118
    %305 = vmatprep.subr.mxu0 0.0
    %306 = vmatpush1.msra.mxu0 %v121
    %307 = vmatprep.subr.mxu0 0.0
    %308 = vmatpush1.msra.mxu0 %v124
    %309 = vmatprep.subr.mxu0 0.0
    %310 = vmatpush1.msra.mxu0 %v127
    %311 = vmatprep.subr.mxu0 0.0
    %312 = vmatpush1.msra.mxu0 %v130
    %313 = vmatprep.subr.mxu0 0.0
    %314 = vmatpush1.msra.mxu0 %v133
    %315 = vmatprep.subr.mxu0 0.0
    %316 = vmatpush1.msra.mxu0 %v136
    %317 = vmatprep.subr.mxu0 0.0
    %318 = vmatpush1.msra.mxu0 %v139
    %319 = vmatprep.subr.mxu0 0.0
    %320 = vmatpush1.msra.mxu0 %v142
    %321 = vmatprep.subr.mxu0 0.0
    %322 = vmatpush1.msra.mxu0 %v145
    %323 = vmatprep.subr.mxu0 0.0
    %324 = vmatpush1.msra.mxu0 %v148
    %325 = vmatprep.subr.mxu0 0.0
    %326 = vmatpush1.msra.mxu0 %v151
    %327 = vmatprep.subr.mxu0 0.0
    %328 = vmatpush1.msra.mxu0 %v154
    %329 = vmatprep.subr.mxu0 0.0
    %330 = vmatpush1.msra.mxu0 %v157
    %331 = vmatprep.subr.mxu0 0.0
    %332 = vmatpush1.msra.mxu0 0.0
    %333 = vmatprep.subr.mxu0 0.0
    %334 = vmatpush1.msra.mxu0 0.0
    %335 = vmatprep.subr.mxu0 0.0
    %336 = vmatpush1.msra.mxu0 0.0
    %337 = vmatprep.subr.mxu0 0.0
    %338 = vmatpush1.msra.mxu0 0.0
    %339 = vmatprep.subr.mxu0 0.0
    %340 = vmatpush1.msra.mxu0 0.0
    %341 = vmatprep.subr.mxu0 0.0
    %342 = vmatpush1.msra.mxu0 0.0
    %343 = vmatprep.subr.mxu0 0.0
    %344 = vmatpush1.msra.mxu0 0.0
    %345 = vmatprep.subr.mxu0 0.0
    %346 = vmatpush1.msra.mxu0 0.0
    %347 = vmatprep.subr.mxu0 0.0
    %348 = vmatpush1.msra.mxu0 0.0
    %349 = vmatprep.subr.mxu0 0.0
    %350 = vmatpush1.msra.mxu0 0.0
    %351 = vmatprep.subr.mxu0 0.0
    %352 = vmatpush1.msra.mxu0 0.0
    %353 = vmatprep.subr.mxu0 0.0
    %354 = vmatpush1.msra.mxu0 0.0
    %355 = vmatprep.subr.mxu0 0.0
    %356 = vmatpush1.msra.mxu0 0.0
    %357 = vmatprep.subr.mxu0 0.0
    %358 = vmatpush1.msra.mxu0 0.0
    %359 = vmatprep.subr.mxu0 0.0
    %360 = vmatpush1.msra.mxu0 0.0
    %361 = vmatprep.subr.mxu0 0.0
    %362 = vmatpush1.msra.mxu0 0.0
    %363 = vmatprep.mubr.f32.mxu0 0.0
    %364 = vmatmul.mubr.f32.gmra.mrb[0].mxu0 %v226
    %v365 = vpop.f32.mrb[0].mxu0
    %v366 = vadd.f32 0.0, %v365
    %v367 = vpop.f32.mrb[0].mxu0
    %368 = vdwg.mxu0
    %vm369 = vcmask 130048
    %v371 = vsel %vm369, %v227, 0
    %373 = vmatprep.subr.mxu0 %v105
    %374 = vmatpush1.msra.mxu0 %v104
    %375 = vmatprep.subr.mxu0 %v108
    %376 = vmatpush1.msra.mxu0 %v107
    %377 = vmatprep.subr.mxu0 0.0
    %378 = vmatpush1.msra.mxu0 0.0
    %379 = vmatprep.subr.mxu0 0.0
    %380 = vmatpush1.msra.mxu0 0.0
    %381 = vmatprep.subr.mxu0 0.0
    %382 = vmatpush1.msra.mxu0 0.0
    %383 = vmatprep.subr.mxu0 0.0
    %384 = vmatpush1.msra.mxu0 0.0
    %385 = vmatprep.subr.mxu0 0.0
    %386 = vmatpush1.msra.mxu0 0.0
    %387 = vmatprep.subr.mxu0 0.0
    %388 = vmatpush1.msra.mxu0 0.0
    %389 = vmatprep.subr.mxu0 0.0
    %390 = vmatpush1.msra.mxu0 0.0
    %391 = vmatprep.subr.mxu0 0.0
    %392 = vmatpush1.msra.mxu0 0.0
    %393 = vmatprep.subr.mxu0 0.0
    %394 = vmatpush1.msra.mxu0 0.0
    %395 = vmatprep.subr.mxu0 0.0
    %396 = vmatpush1.msra.mxu0 0.0
    %397 = vmatprep.subr.mxu0 0.0
    %398 = vmatpush1.msra.mxu0 0.0
    %399 = vmatprep.subr.mxu0 0.0
    %400 = vmatpush1.msra.mxu0 0.0
    %401 = vmatprep.subr.mxu0 0.0
    %402 = vmatpush1.msra.mxu0 0.0
    %403 = vmatprep.subr.mxu0 0.0
    %404 = vmatpush1.msra.mxu0 0.0
    %405 = vmatprep.subr.mxu0 0.0
    %406 = vmatpush1.msra.mxu0 0.0
    %407 = vmatprep.subr.mxu0 0.0
    %408 = vmatpush1.msra.mxu0 0.0
    %409 = vmatprep.subr.mxu0 0.0
    %410 = vmatpush1.msra.mxu0 0.0
    %411 = vmatprep.subr.mxu0 0.0
    %412 = vmatpush1.msra.mxu0 0.0
    %413 = vmatprep.subr.mxu0 0.0
    %414 = vmatpush1.msra.mxu0 0.0
    %415 = vmatprep.subr.mxu0 0.0
    %416 = vmatpush1.msra.mxu0 0.0
    %417 = vmatprep.subr.mxu0 0.0
    %418 = vmatpush1.msra.mxu0 0.0
    %419 = vmatprep.subr.mxu0 0.0
    %420 = vmatpush1.msra.mxu0 0.0
    %421 = vmatprep.subr.mxu0 0.0
    %422 = vmatpush1.msra.mxu0 0.0
    %423 = vmatprep.subr.mxu0 0.0
    %424 = vmatpush1.msra.mxu0 0.0
    %425 = vmatprep.subr.mxu0 0.0
    %426 = vmatpush1.msra.mxu0 0.0
    %427 = vmatprep.subr.mxu0 0.0
    %428 = vmatpush1.msra.mxu0 0.0
    %429 = vmatprep.subr.mxu0 0.0
    %430 = vmatpush1.msra.mxu0 0.0
    %431 = vmatprep.subr.mxu0 0.0
    %432 = vmatpush1.msra.mxu0 0.0
    %433 = vmatprep.subr.mxu0 0.0
    %434 = vmatpush1.msra.mxu0 0.0
    %435 = vmatprep.subr.mxu0 0.0
    %436 = vmatpush1.msra.mxu0 0.0
    %437 = vmatprep.mubr.f32.mxu0 0.0
    %438 = vmatmul.mubr.f32.gmra.mrb[0].mxu0 %v371
    %v439 = vpop.f32.mrb[0].mxu0
    %v440 = vadd.f32 %v295, %v439
    %v441 = vpop.f32.mrb[0].mxu0
    %v442 = vadd.f32 %v297, %v441
    %443 = vdwg.mxu0
    %444 = vmatprep.subr.mxu0 0.0
    %445 = vmatpush1.msra.mxu0 %v106
    %446 = vmatprep.subr.mxu0 0.0
    %447 = vmatpush1.msra.mxu0 %v109
    %448 = vmatprep.subr.mxu0 0.0
    %449 = vmatpush1.msra.mxu0 0.0
    %450 = vmatprep.subr.mxu0 0.0
    %451 = vmatpush1.msra.mxu0 0.0
    %452 = vmatprep.subr.mxu0 0.0
    %453 = vmatpush1.msra.mxu0 0.0
    %454 = vmatprep.subr.mxu0 0.0
    %455 = vmatpush1.msra.mxu0 0.0
    %456 = vmatprep.subr.mxu0 0.0
    %457 = vmatpush1.msra.mxu0 0.0
    %458 = vmatprep.subr.mxu0 0.0
    %459 = vmatpush1.msra.mxu0 0.0
    %460 = vmatprep.subr.mxu0 0.0
    %461 = vmatpush1.msra.mxu0 0.0
    %462 = vmatprep.subr.mxu0 0.0
    %463 = vmatpush1.msra.mxu0 0.0
    %464 = vmatprep.subr.mxu0 0.0
    %465 = vmatpush1.msra.mxu0 0.0
    %466 = vmatprep.subr.mxu0 0.0
    %467 = vmatpush1.msra.mxu0 0.0
    %468 = vmatprep.subr.mxu0 0.0
    %469 = vmatpush1.msra.mxu0 0.0
    %470 = vmatprep.subr.mxu0 0.0
    %471 = vmatpush1.msra.mxu0 0.0
    %472 = vmatprep.subr.mxu0 0.0
    %473 = vmatpush1.msra.mxu0 0.0
    %474 = vmatprep.subr.mxu0 0.0
    %475 = vmatpush1.msra.mxu0 0.0
    %476 = vmatprep.subr.mxu0 0.0
    %477 = vmatpush1.msra.mxu0 0.0
    %478 = vmatprep.subr.mxu0 0.0
    %479 = vmatpush1.msra.mxu0 0.0
    %480 = vmatprep.subr.mxu0 0.0
    %481 = vmatpush1.msra.mxu0 0.0
    %482 = vmatprep.subr.mxu0 0.0
    %483 = vmatpush1.msra.mxu0 0.0
    %484 = vmatprep.subr.mxu0 0.0
    %485 = vmatpush1.msra.mxu0 0.0
    %486 = vmatprep.subr.mxu0 0.0
    %487 = vmatpush1.msra.mxu0 0.0
    %488 = vmatprep.subr.mxu0 0.0
    %489 = vmatpush1.msra.mxu0 0.0
    %490 = vmatprep.subr.mxu0 0.0
    %491 = vmatpush1.msra.mxu0 0.0
    %492 = vmatprep.subr.mxu0 0.0
    %493 = vmatpush1.msra.mxu0 0.0
    %494 = vmatprep.subr.mxu0 0.0
    %495 = vmatpush1.msra.mxu0 0.0
    %496 = vmatprep.subr.mxu0 0.0
    %497 = vmatpush1.msra.mxu0 0.0
    %498 = vmatprep.subr.mxu0 0.0
    %499 = vmatpush1.msra.mxu0 0.0
    %500 = vmatprep.subr.mxu0 0.0
    %501 = vmatpush1.msra.mxu0 0.0
    %502 = vmatprep.subr.mxu0 0.0
    %503 = vmatpush1.msra.mxu0 0.0
    %504 = vmatprep.subr.mxu0 0.0
    %505 = vmatpush1.msra.mxu0 0.0
    %506 = vmatprep.subr.mxu0 0.0
    %507 = vmatpush1.msra.mxu0 0.0
    %508 = vmatprep.mubr.f32.mxu0 0.0
    %509 = vmatmul.mubr.f32.gmra.mrb[0].mxu0 %v371
    %v510 = vpop.f32.mrb[0].mxu0
    %v511 = vadd.f32 %v366, %v510
    %v512 = vpop.f32.mrb[0].mxu0
    %513 = vdwg.mxu0
    %v515 = vlaneseq
    %v516 = vshrl.u32 %v515, 7
    %v517 = vsub.s32 0, %v516
    %v518 = vrot.slane %v206, %v517
    %v519 = vlaneseq
    %v520 = vshrl.u32 %v519, 7
    %v521 = vsub.s32 1, %v520
    %v522 = vrot.slane %v206, %v521
    %v523 = vlaneseq
    %v524 = vshrl.u32 %v523, 7
    %v525 = vsub.s32 2, %v524
    %v526 = vrot.slane %v206, %v525
    %v530 = vadd.f32 %v440, %v518
    %v531 = vadd.f32 %v442, %v522
    %v532 = vadd.f32 %v511, %v526
    %v534 = vlaneseq
    %v535 = vshrl.u32 %v534, 7
    %v536 = vsub.s32 0, %v535
    %v537 = vrot.slane %v207, %v536
    %v538 = vlaneseq
    %v539 = vshrl.u32 %v538, 7
    %v540 = vsub.s32 1, %v539
    %v541 = vrot.slane %v207, %v540
    %v542 = vlaneseq
    %v543 = vshrl.u32 %v542, 7
    %v544 = vsub.s32 2, %v543
    %v545 = vrot.slane %v207, %v544
    %549 = vmatprep.subr.mxu0 %v159
    %550 = vmatpush1.msra.mxu0 %v158
    %551 = vmatprep.subr.mxu0 %v162
    %552 = vmatpush1.msra.mxu0 %v161
    %553 = vmatprep.subr.mxu0 %v165
    %554 = vmatpush1.msra.mxu0 %v164
    %555 = vmatprep.subr.mxu0 %v168
    %556 = vmatpush1.msra.mxu0 %v167
    %557 = vmatprep.subr.mxu0 %v171
    %558 = vmatpush1.msra.mxu0 %v170
    %559 = vmatprep.subr.mxu0 %v174
    %560 = vmatpush1.msra.mxu0 %v173
    %561 = vmatprep.subr.mxu0 %v177
    %562 = vmatpush1.msra.mxu0 %v176
    %563 = vmatprep.subr.mxu0 %v180
    %564 = vmatpush1.msra.mxu0 %v179
    %565 = vmatprep.subr.mxu0 %v183
    %566 = vmatpush1.msra.mxu0 %v182
    %567 = vmatprep.subr.mxu0 %v186
    %568 = vmatpush1.msra.mxu0 %v185
    %569 = vmatprep.subr.mxu0 %v189
    %570 = vmatpush1.msra.mxu0 %v188
    %571 = vmatprep.subr.mxu0 %v192
    %572 = vmatpush1.msra.mxu0 %v191
    %573 = vmatprep.subr.mxu0 %v195
    %574 = vmatpush1.msra.mxu0 %v194
    %575 = vmatprep.subr.mxu0 %v198
    %576 = vmatpush1.msra.mxu0 %v197
    %577 = vmatprep.subr.mxu0 %v201
    %578 = vmatpush1.msra.mxu0 %v200
    %579 = vmatprep.subr.mxu0 %v204
    %580 = vmatpush1.msra.mxu0 %v203
    %581 = vmatprep.subr.mxu0 0.0
    %582 = vmatpush1.msra.mxu0 0.0
    %583 = vmatprep.subr.mxu0 0.0
    %584 = vmatpush1.msra.mxu0 0.0
    %585 = vmatprep.subr.mxu0 0.0
    %586 = vmatpush1.msra.mxu0 0.0
    %587 = vmatprep.subr.mxu0 0.0
    %588 = vmatpush1.msra.mxu0 0.0
    %589 = vmatprep.subr.mxu0 0.0
    %590 = vmatpush1.msra.mxu0 0.0
    %591 = vmatprep.subr.mxu0 0.0
    %592 = vmatpush1.msra.mxu0 0.0
    %593 = vmatprep.subr.mxu0 0.0
    %594 = vmatpush1.msra.mxu0 0.0
    %595 = vmatprep.subr.mxu0 0.0
    %596 = vmatpush1.msra.mxu0 0.0
    %597 = vmatprep.subr.mxu0 0.0
    %598 = vmatpush1.msra.mxu0 0.0
    %599 = vmatprep.subr.mxu0 0.0
    %600 = vmatpush1.msra.mxu0 0.0
    %601 = vmatprep.subr.mxu0 0.0
    %602 = vmatpush1.msra.mxu0 0.0
    %603 = vmatprep.subr.mxu0 0.0
    %604 = vmatpush1.msra.mxu0 0.0
    %605 = vmatprep.subr.mxu0 0.0
    %606 = vmatpush1.msra.mxu0 0.0
    %607 = vmatprep.subr.mxu0 0.0
    %608 = vmatpush1.msra.mxu0 0.0
    %609 = vmatprep.subr.mxu0 0.0
    %610 = vmatpush1.msra.mxu0 0.0
    %611 = vmatprep.subr.mxu0 0.0
    %612 = vmatpush1.msra.mxu0 0.0
    %613 = vmatprep.mubr.f32.mxu0 0.0
    %614 = vmatmul.mubr.f32.gmra.mrb[0].mxu0 %v225
    %v615 = vpop.f32.mrb[0].mxu0
    %v616 = vadd.f32 %v537, %v615
    %v617 = vpop.f32.mrb[0].mxu0
    %v618 = vadd.f32 %v541, %v617
    %619 = vdwg.mxu0
    %620 = vmatprep.subr.mxu0 0.0
    %621 = vmatpush1.msra.mxu0 %v160
    %622 = vmatprep.subr.mxu0 0.0
    %623 = vmatpush1.msra.mxu0 %v163
    %624 = vmatprep.subr.mxu0 0.0
    %625 = vmatpush1.msra.mxu0 %v166
    %626 = vmatprep.subr.mxu0 0.0
    %627 = vmatpush1.msra.mxu0 %v169
    %628 = vmatprep.subr.mxu0 0.0
    %629 = vmatpush1.msra.mxu0 %v172
    %630 = vmatprep.subr.mxu0 0.0
    %631 = vmatpush1.msra.mxu0 %v175
    %632 = vmatprep.subr.mxu0 0.0
    %633 = vmatpush1.msra.mxu0 %v178
    %634 = vmatprep.subr.mxu0 0.0
    %635 = vmatpush1.msra.mxu0 %v181
    %636 = vmatprep.subr.mxu0 0.0
    %637 = vmatpush1.msra.mxu0 %v184
    %638 = vmatprep.subr.mxu0 0.0
    %639 = vmatpush1.msra.mxu0 %v187
    %640 = vmatprep.subr.mxu0 0.0
    %641 = vmatpush1.msra.mxu0 %v190
    %642 = vmatprep.subr.mxu0 0.0
    %643 = vmatpush1.msra.mxu0 %v193
    %644 = vmatprep.subr.mxu0 0.0
    %645 = vmatpush1.msra.mxu0 %v196
    %646 = vmatprep.subr.mxu0 0.0
    %647 = vmatpush1.msra.mxu0 %v199
    %648 = vmatprep.subr.mxu0 0.0
    %649 = vmatpush1.msra.mxu0 %v202
    %650 = vmatprep.subr.mxu0 0.0
    %651 = vmatpush1.msra.mxu0 %v205
    %652 = vmatprep.subr.mxu0 0.0
    %653 = vmatpush1.msra.mxu0 0.0
    %654 = vmatprep.subr.mxu0 0.0
    %655 = vmatpush1.msra.mxu0 0.0
    %656 = vmatprep.subr.mxu0 0.0
    %657 = vmatpush1.msra.mxu0 0.0
    %658 = vmatprep.subr.mxu0 0.0
    %659 = vmatpush1.msra.mxu0 0.0
    %660 = vmatprep.subr.mxu0 0.0
    %661 = vmatpush1.msra.mxu0 0.0
    %662 = vmatprep.subr.mxu0 0.0
    %663 = vmatpush1.msra.mxu0 0.0
    %664 = vmatprep.subr.mxu0 0.0
    %665 = vmatpush1.msra.mxu0 0.0
    %666 = vmatprep.subr.mxu0 0.0
    %667 = vmatpush1.msra.mxu0 0.0
    %668 = vmatprep.subr.mxu0 0.0
    %669 = vmatpush1.msra.mxu0 0.0
    %670 = vmatprep.subr.mxu0 0.0
    %671 = vmatpush1.msra.mxu0 0.0
    %672 = vmatprep.subr.mxu0 0.0
    %673 = vmatpush1.msra.mxu0 0.0
    %674 = vmatprep.subr.mxu0 0.0
    %675 = vmatpush1.msra.mxu0 0.0
    %676 = vmatprep.subr.mxu0 0.0
    %677 = vmatpush1.msra.mxu0 0.0
    %678 = vmatprep.subr.mxu0 0.0
    %679 = vmatpush1.msra.mxu0 0.0
    %680 = vmatprep.subr.mxu0 0.0
    %681 = vmatpush1.msra.mxu0 0.0
    %682 = vmatprep.subr.mxu0 0.0
    %683 = vmatpush1.msra.mxu0 0.0
    %684 = vmatprep.mubr.f32.mxu0 0.0
    %685 = vmatmul.mubr.f32.gmra.mrb[0].mxu0 %v225
    %v686 = vpop.f32.mrb[0].mxu0
    %v687 = vadd.f32 %v545, %v686
    %v688 = vpop.f32.mrb[0].mxu0
    %689 = vdwg.mxu0
    %v690 = vadd.f32 %v530, %v616
    %v691 = vxor.u32 %v690, 2147483648
    %v692 = vmul.f32 %v691, 1.442695
    %v693 = vpow.pop %v692
    %v694 = vadd.f32 %v693, 1.0
    %v695 = vrcp.pop %v694
    %v696 = vmul.f32 1.0, %v695
    %v697 = vadd.f32 %v531, %v618
    %v698 = vxor.u32 %v697, 2147483648
    %v699 = vmul.f32 %v698, 1.442695
    %v700 = vpow.pop %v699
    %v701 = vadd.f32 %v700, 1.0
    %v702 = vrcp.pop %v701
    %v703 = vmul.f32 1.0, %v702
    %v704 = vmul.f32 %v696, %v687
    %v705 = vadd.f32 %v532, %v704
    %v706 = vtanh.pop %v705
    %v707 = vsub.f32 1.0, %v703
    %v708 = vmul.f32 %v707, %v706
    %v709 = vmul.f32 %v703, %v225
    %v710 = vadd.f32 %v708, %v709
    %v712 = vlaneseq
    %v713 = vshrl.u32 %v712, 7
    %v714 = vsub.s32 0, %v713
    %v715 = vrot.slane %v224, %v714
    %717 = vmatprep.subr.mxu0 0.0
    %718 = vmatpush1.msra.mxu0 %v208
    %719 = vmatprep.subr.mxu0 0.0
    %720 = vmatpush1.msra.mxu0 %v209
    %721 = vmatprep.subr.mxu0 0.0
    %722 = vmatpush1.msra.mxu0 %v210
    %723 = vmatprep.subr.mxu0 0.0
    %724 = vmatpush1.msra.mxu0 %v211
    %725 = vmatprep.subr.mxu0 0.0
    %726 = vmatpush1.msra.mxu0 %v212
    %727 = vmatprep.subr.mxu0 0.0
    %728 = vmatpush1.msra.mxu0 %v213
    %729 = vmatprep.subr.mxu0 0.0
    %730 = vmatpush1.msra.mxu0 %v214
    %731 = vmatprep.subr.mxu0 0.0
    %732 = vmatpush1.msra.mxu0 %v215
    %733 = vmatprep.subr.mxu0 0.0
    %734 = vmatpush1.msra.mxu0 %v216
    %735 = vmatprep.subr.mxu0 0.0
    %736 = vmatpush1.msra.mxu0 %v217
    %737 = vmatprep.subr.mxu0 0.0
    %738 = vmatpush1.msra.mxu0 %v218
    %739 = vmatprep.subr.mxu0 0.0
    %740 = vmatpush1.msra.mxu0 %v219
    %741 = vmatprep.subr.mxu0 0.0
    %742 = vmatpush1.msra.mxu0 %v220
    %743 = vmatprep.subr.mxu0 0.0
    %744 = vmatpush1.msra.mxu0 %v221
    %745 = vmatprep.subr.mxu0 0.0
    %746 = vmatpush1.msra.mxu0 %v222
    %747 = vmatprep.subr.mxu0 0.0
    %748 = vmatpush1.msra.mxu0 %v223
    %749 = vmatprep.subr.mxu0 0.0
    %750 = vmatpush1.msra.mxu0 0.0
    %751 = vmatprep.subr.mxu0 0.0
    %752 = vmatpush1.msra.mxu0 0.0
    %753 = vmatprep.subr.mxu0 0.0
    %754 = vmatpush1.msra.mxu0 0.0
    %755 = vmatprep.subr.mxu0 0.0
    %756 = vmatpush1.msra.mxu0 0.0
    %757 = vmatprep.subr.mxu0 0.0
    %758 = vmatpush1.msra.mxu0 0.0
    %759 = vmatprep.subr.mxu0 0.0
    %760 = vmatpush1.msra.mxu0 0.0
    %761 = vmatprep.subr.mxu0 0.0
    %762 = vmatpush1.msra.mxu0 0.0
    %763 = vmatprep.subr.mxu0 0.0
    %764 = vmatpush1.msra.mxu0 0.0
    %765 = vmatprep.subr.mxu0 0.0
    %766 = vmatpush1.msra.mxu0 0.0
    %767 = vmatprep.subr.mxu0 0.0
    %768 = vmatpush1.msra.mxu0 0.0
    %769 = vmatprep.subr.mxu0 0.0
    %770 = vmatpush1.msra.mxu0 0.0
    %771 = vmatprep.subr.mxu0 0.0
    %772 = vmatpush1.msra.mxu0 0.0
    %773 = vmatprep.subr.mxu0 0.0
    %774 = vmatpush1.msra.mxu0 0.0
    %775 = vmatprep.subr.mxu0 0.0
    %776 = vmatpush1.msra.mxu0 0.0
    %777 = vmatprep.subr.mxu0 0.0
    %778 = vmatpush1.msra.mxu0 0.0
    %779 = vmatprep.subr.mxu0 0.0
    %780 = vmatpush1.msra.mxu0 0.0
    %781 = vmatprep.mubr.f32.mxu0 0.0
    %782 = vmatmul.mubr.f32.gmra.mrb[0].mxu0 %v710
    %v783 = vpop.f32.mrb[0].mxu0
    %v784 = vadd.f32 %v715, %v783
    %v785 = vpop.f32.mrb[0].mxu0
    %786 = vdwg.mxu0
    %787 = vst [vmem:[#allocation13] sm:$0xff] %v784
    %s788 = scalar_lea.vmem [#allocation4], 8
    %v789 = vld [vmem:[%s788] sm:$0xff]
    %790 = vmatprep.subr.mxu0 %v111
    %791 = vmatpush1.msra.mxu0 %v110
    %792 = vmatprep.subr.mxu0 %v114
    %793 = vmatpush1.msra.mxu0 %v113
    %794 = vmatprep.subr.mxu0 %v117
    %795 = vmatpush1.msra.mxu0 %v116
    %796 = vmatprep.subr.mxu0 %v120
    %797 = vmatpush1.msra.mxu0 %v119
    %798 = vmatprep.subr.mxu0 %v123
    %799 = vmatpush1.msra.mxu0 %v122
    %800 = vmatprep.subr.mxu0 %v126
    %801 = vmatpush1.msra.mxu0 %v125
    %802 = vmatprep.subr.mxu0 %v129
    %803 = vmatpush1.msra.mxu0 %v128
    %804 = vmatprep.subr.mxu0 %v132
    %805 = vmatpush1.msra.mxu0 %v131
    %806 = vmatprep.subr.mxu0 %v135
    %807 = vmatpush1.msra.mxu0 %v134
    %808 = vmatprep.subr.mxu0 %v138
    %809 = vmatpush1.msra.mxu0 %v137
    %810 = vmatprep.subr.mxu0 %v141
    %811 = vmatpush1.msra.mxu0 %v140
    %812 = vmatprep.subr.mxu0 %v144
    %813 = vmatpush1.msra.mxu0 %v143
    %814 = vmatprep.subr.mxu0 %v147
    %815 = vmatpush1.msra.mxu0 %v146
    %816 = vmatprep.subr.mxu0 %v150
    %817 = vmatpush1.msra.mxu0 %v149
    %818 = vmatprep.subr.mxu0 %v153
    %819 = vmatpush1.msra.mxu0 %v152
    %820 = vmatprep.subr.mxu0 %v156
    %821 = vmatpush1.msra.mxu0 %v155
    %822 = vmatprep.subr.mxu0 0.0
    %823 = vmatpush1.msra.mxu0 0.0
    %824 = vmatprep.subr.mxu0 0.0
    %825 = vmatpush1.msra.mxu0 0.0
    %826 = vmatprep.subr.mxu0 0.0
    %827 = vmatpush1.msra.mxu0 0.0
    %828 = vmatprep.subr.mxu0 0.0
    %829 = vmatpush1.msra.mxu0 0.0
    %830 = vmatprep.subr.mxu0 0.0
    %831 = vmatpush1.msra.mxu0 0.0
    %832 = vmatprep.subr.mxu0 0.0
    %833 = vmatpush1.msra.mxu0 0.0
    %834 = vmatprep.subr.mxu0 0.0
    %835 = vmatpush1.msra.mxu0 0.0
    %836 = vmatprep.subr.mxu0 0.0
    %837 = vmatpush1.msra.mxu0 0.0
    %838 = vmatprep.subr.mxu0 0.0
    %839 = vmatpush1.msra.mxu0 0.0
    %840 = vmatprep.subr.mxu0 0.0
    %841 = vmatpush1.msra.mxu0 0.0
    %842 = vmatprep.subr.mxu0 0.0
    %843 = vmatpush1.msra.mxu0 0.0
    %844 = vmatprep.subr.mxu0 0.0
    %845 = vmatpush1.msra.mxu0 0.0
    %846 = vmatprep.subr.mxu0 0.0
    %847 = vmatpush1.msra.mxu0 0.0
    %848 = vmatprep.subr.mxu0 0.0
    %849 = vmatpush1.msra.mxu0 0.0
    %850 = vmatprep.subr.mxu0 0.0
    %851 = vmatpush1.msra.mxu0 0.0
    %852 = vmatprep.subr.mxu0 0.0
    %853 = vmatpush1.msra.mxu0 0.0
    %854 = vmatprep.mubr.f32.mxu0 0.0
    %855 = vmatmul.mubr.f32.gmra.mrb[0].mxu0 %v784
    %v856 = vpop.f32.mrb[0].mxu0
    %v857 = vadd.f32 0.0, %v856
    %v858 = vpop.f32.mrb[0].mxu0
    %v859 = vadd.f32 0.0, %v858
    %860 = vdwg.mxu0
    %861 = vmatprep.subr.mxu0 0.0
    %862 = vmatpush1.msra.mxu0 %v112
    %863 = vmatprep.subr.mxu0 0.0
    %864 = vmatpush1.msra.mxu0 %v115
    %865 = vmatprep.subr.mxu0 0.0
    %866 = vmatpush1.msra.mxu0 %v118
    %867 = vmatprep.subr.mxu0 0.0
    %868 = vmatpush1.msra.mxu0 %v121
    %869 = vmatprep.subr.mxu0 0.0
    %870 = vmatpush1.msra.mxu0 %v124
    %871 = vmatprep.subr.mxu0 0.0
    %872 = vmatpush1.msra.mxu0 %v127
    %873 = vmatprep.subr.mxu0 0.0
    %874 = vmatpush1.msra.mxu0 %v130
    %875 = vmatprep.subr.mxu0 0.0
    %876 = vmatpush1.msra.mxu0 %v133
    %877 = vmatprep.subr.mxu0 0.0
    %878 = vmatpush1.msra.mxu0 %v136
    %879 = vmatprep.subr.mxu0 0.0
    %880 = vmatpush1.msra.mxu0 %v139
    %881 = vmatprep.subr.mxu0 0.0
    %882 = vmatpush1.msra.mxu0 %v142
    %883 = vmatprep.subr.mxu0 0.0
    %884 = vmatpush1.msra.mxu0 %v145
    %885 = vmatprep.subr.mxu0 0.0
    %886 = vmatpush1.msra.mxu0 %v148
    %887 = vmatprep.subr.mxu0 0.0
    %888 = vmatpush1.msra.mxu0 %v151
    %889 = vmatprep.subr.mxu0 0.0
    %890 = vmatpush1.msra.mxu0 %v154
    %891 = vmatprep.subr.mxu0 0.0
    %892 = vmatpush1.msra.mxu0 %v157
    %893 = vmatprep.subr.mxu0 0.0
    %894 = vmatpush1.msra.mxu0 0.0
    %895 = vmatprep.subr.mxu0 0.0
    %896 = vmatpush1.msra.mxu0 0.0
    %897 = vmatprep.subr.mxu0 0.0
    %898 = vmatpush1.msra.mxu0 0.0
    %899 = vmatprep.subr.mxu0 0.0
    %900 = vmatpush1.msra.mxu0 0.0
    %901 = vmatprep.subr.mxu0 0.0
    %902 = vmatpush1.msra.mxu0 0.0
    %903 = vmatprep.subr.mxu0 0.0
    %904 = vmatpush1.msra.mxu0 0.0
    %905 = vmatprep.subr.mxu0 0.0
    %906 = vmatpush1.msra.mxu0 0.0
    %907 = vmatprep.subr.mxu0 0.0
    %908 = vmatpush1.msra.mxu0 0.0
    %909 = vmatprep.subr.mxu0 0.0
    %910 = vmatpush1.msra.mxu0 0.0
    %911 = vmatprep.subr.mxu0 0.0
    %912 = vmatpush1.msra.mxu0 0.0
    %913 = vmatprep.subr.mxu0 0.0
    %914 = vmatpush1.msra.mxu0 0.0
    %915 = vmatprep.subr.mxu0 0.0
    %916 = vmatpush1.msra.mxu0 0.0
    %917 = vmatprep.subr.mxu0 0.0
    %918 = vmatpush1.msra.mxu0 0.0
    %919 = vmatprep.subr.mxu0 0.0
    %920 = vmatpush1.msra.mxu0 0.0
    %921 = vmatprep.subr.mxu0 0.0
    %922 = vmatpush1.msra.mxu0 0.0
    %923 = vmatprep.subr.mxu0 0.0
    %924 = vmatpush1.msra.mxu0 0.0
    %925 = vmatprep.mubr.f32.mxu0 0.0
    %926 = vmatmul.mubr.f32.gmra.mrb[0].mxu0 %v784
    %v927 = vpop.f32.mrb[0].mxu0
    %v928 = vadd.f32 0.0, %v927
    %v929 = vpop.f32.mrb[0].mxu0
    %930 = vdwg.mxu0
    %v932 = vsel %vm369, %v789, 0
    %934 = vmatprep.subr.mxu0 %v105
    %935 = vmatpush1.msra.mxu0 %v104
    %936 = vmatprep.subr.mxu0 %v108
    %937 = vmatpush1.msra.mxu0 %v107
    %938 = vmatprep.subr.mxu0 0.0
    %939 = vmatpush1.msra.mxu0 0.0
    %940 = vmatprep.subr.mxu0 0.0
    %941 = vmatpush1.msra.mxu0 0.0
    %942 = vmatprep.subr.mxu0 0.0
    %943 = vmatpush1.msra.mxu0 0.0
    %944 = vmatprep.subr.mxu0 0.0
    %945 = vmatpush1.msra.mxu0 0.0
    %946 = vmatprep.subr.mxu0 0.0
    %947 = vmatpush1.msra.mxu0 0.0
    %948 = vmatprep.subr.mxu0 0.0
    %949 = vmatpush1.msra.mxu0 0.0
    %950 = vmatprep.subr.mxu0 0.0
    %951 = vmatpush1.msra.mxu0 0.0
    %952 = vmatprep.subr.mxu0 0.0
    %953 = vmatpush1.msra.mxu0 0.0
    %954 = vmatprep.subr.mxu0 0.0
    %955 = vmatpush1.msra.mxu0 0.0
    %956 = vmatprep.subr.mxu0 0.0
    %957 = vmatpush1.msra.mxu0 0.0
    %958 = vmatprep.subr.mxu0 0.0
    %959 = vmatpush1.msra.mxu0 0.0
    %960 = vmatprep.subr.mxu0 0.0
    %961 = vmatpush1.msra.mxu0 0.0
    %962 = vmatprep.subr.mxu0 0.0
    %963 = vmatpush1.msra.mxu0 0.0
    %964 = vmatprep.subr.mxu0 0.0
    %965 = vmatpush1.msra.mxu0 0.0
    %966 = vmatprep.subr.mxu0 0.0
    %967 = vmatpush1.msra.mxu0 0.0
    %968 = vmatprep.subr.mxu0 0.0
    %969 = vmatpush1.msra.mxu0 0.0
    %970 = vmatprep.subr.mxu0 0.0
    %971 = vmatpush1.msra.mxu0 0.0
    %972 = vmatprep.subr.mxu0 0.0
    %973 = vmatpush1.msra.mxu0 0.0
    %974 = vmatprep.subr.mxu0 0.0
    %975 = vmatpush1.msra.mxu0 0.0
    %976 = vmatprep.subr.mxu0 0.0
    %977 = vmatpush1.msra.mxu0 0.0
    %978 = vmatprep.subr.mxu0 0.0
    %979 = vmatpush1.msra.mxu0 0.0
    %980 = vmatprep.subr.mxu0 0.0
    %981 = vmatpush1.msra.mxu0 0.0
    %982 = vmatprep.subr.mxu0 0.0
    %983 = vmatpush1.msra.mxu0 0.0
    %984 = vmatprep.subr.mxu0 0.0
    %985 = vmatpush1.msra.mxu0 0.0
    %986 = vmatprep.subr.mxu0 0.0
    %987 = vmatpush1.msra.mxu0 0.0
    %988 = vmatprep.subr.mxu0 0.0
    %989 = vmatpush1.msra.mxu0 0.0
    %990 = vmatprep.subr.mxu0 0.0
    %991 = vmatpush1.msra.mxu0 0.0
    %992 = vmatprep.subr.mxu0 0.0
    %993 = vmatpush1.msra.mxu0 0.0
    %994 = vmatprep.subr.mxu0 0.0
    %995 = vmatpush1.msra.mxu0 0.0
    %996 = vmatprep.subr.mxu0 0.0
    %997 = vmatpush1.msra.mxu0 0.0
    %998 = vmatprep.mubr.f32.mxu0 0.0
    %999 = vmatmul.mubr.f32.gmra.mrb[0].mxu0 %v932
    %v1000 = vpop.f32.mrb[0].mxu0
    %v1001 = vadd.f32 %v857, %v1000
    %v1002 = vpop.f32.mrb[0].mxu0
    %v1003 = vadd.f32 %v859, %v1002
    %1004 = vdwg.mxu0
    %1005 = vmatprep.subr.mxu0 0.0
    %1006 = vmatpush1.msra.mxu0 %v106
    %1007 = vmatprep.subr.mxu0 0.0
    %1008 = vmatpush1.msra.mxu0 %v109
    %1009 = vmatprep.subr.mxu0 0.0
    %1010 = vmatpush1.msra.mxu0 0.0
    %1011 = vmatprep.subr.mxu0 0.0
    %1012 = vmatpush1.msra.mxu0 0.0
    %1013 = vmatprep.subr.mxu0 0.0
    %1014 = vmatpush1.msra.mxu0 0.0
    %1015 = vmatprep.subr.mxu0 0.0
    %1016 = vmatpush1.msra.mxu0 0.0
    %1017 = vmatprep.subr.mxu0 0.0
    %1018 = vmatpush1.msra.mxu0 0.0
    %1019 = vmatprep.subr.mxu0 0.0
    %1020 = vmatpush1.msra.mxu0 0.0
    %1021 = vmatprep.subr.mxu0 0.0
    %1022 = vmatpush1.msra.mxu0 0.0
    %1023 = vmatprep.subr.mxu0 0.0
    %1024 = vmatpush1.msra.mxu0 0.0
    %1025 = vmatprep.subr.mxu0 0.0
    %1026 = vmatpush1.msra.mxu0 0.0
    %1027 = vmatprep.subr.mxu0 0.0
    %1028 = vmatpush1.msra.mxu0 0.0
    %1029 = vmatprep.subr.mxu0 0.0
    %1030 = vmatpush1.msra.mxu0 0.0
    %1031 = vmatprep.subr.mxu0 0.0
    %1032 = vmatpush1.msra.mxu0 0.0
    %1033 = vmatprep.subr.mxu0 0.0
    %1034 = vmatpush1.msra.mxu0 0.0
    %1035 = vmatprep.subr.mxu0 0.0
    %1036 = vmatpush1.msra.mxu0 0.0
    %1037 = vmatprep.subr.mxu0 0.0
    %1038 = vmatpush1.msra.mxu0 0.0
    %1039 = vmatprep.subr.mxu0 0.0
    %1040 = vmatpush1.msra.mxu0 0.0
    %1041 = vmatprep.subr.mxu0 0.0
    %1042 = vmatpush1.msra.mxu0 0.0
    %1043 = vmatprep.subr.mxu0 0.0
    %1044 = vmatpush1.msra.mxu0 0.0
    %1045 = vmatprep.subr.mxu0 0.0
    %1046 = vmatpush1.msra.mxu0 0.0
    %1047 = vmatprep.subr.mxu0 0.0
    %1048 = vmatpush1.msra.mxu0 0.0
    %1049 = vmatprep.subr.mxu0 0.0
    %1050 = vmatpush1.msra.mxu0 0.0
    %1051 = vmatprep.subr.mxu0 0.0
    %1052 = vmatpush1.msra.mxu0 0.0
    %1053 = vmatprep.subr.mxu0 0.0
    %1054 = vmatpush1.msra.mxu0 0.0
    %1055 = vmatprep.subr.mxu0 0.0
    %1056 = vmatpush1.msra.mxu0 0.0
    %1057 = vmatprep.subr.mxu0 0.0
    %1058 = vmatpush1.msra.mxu0 0.0
    %1059 = vmatprep.subr.mxu0 0.0
    %1060 = vmatpush1.msra.mxu0 0.0
    %1061 = vmatprep.subr.mxu0 0.0
    %1062 = vmatpush1.msra.mxu0 0.0
    %1063 = vmatprep.subr.mxu0 0.0
    %1064 = vmatpush1.msra.mxu0 0.0
    %1065 = vmatprep.subr.mxu0 0.0
    %1066 = vmatpush1.msra.mxu0 0.0
    %1067 = vmatprep.subr.mxu0 0.0
    %1068 = vmatpush1.msra.mxu0 0.0
    %1069 = vmatprep.mubr.f32.mxu0 0.0
    %1070 = vmatmul.mubr.f32.gmra.mrb[0].mxu0 %v932
    %v1071 = vpop.f32.mrb[0].mxu0
    %v1072 = vadd.f32 %v928, %v1071
    %v1073 = vpop.f32.mrb[0].mxu0
    %1074 = vdwg.mxu0
    %v1075 = vadd.f32 %v1001, %v518
    %v1076 = vadd.f32 %v1003, %v522
    %v1077 = vadd.f32 %v1072, %v526
    %1078 = vmatprep.subr.mxu0 %v159
    %1079 = vmatpush1.msra.mxu0 %v158
    %1080 = vmatprep.subr.mxu0 %v162
    %1081 = vmatpush1.msra.mxu0 %v161
    %1082 = vmatprep.subr.mxu0 %v165
    %1083 = vmatpush1.msra.mxu0 %v164
    %1084 = vmatprep.subr.mxu0 %v168
    %1085 = vmatpush1.msra.mxu0 %v167
    %1086 = vmatprep.subr.mxu0 %v171
    %1087 = vmatpush1.msra.mxu0 %v170
    %1088 = vmatprep.subr.mxu0 %v174
    %1089 = vmatpush1.msra.mxu0 %v173
    %1090 = vmatprep.subr.mxu0 %v177
    %1091 = vmatpush1.msra.mxu0 %v176
    %1092 = vmatprep.subr.mxu0 %v180
    %1093 = vmatpush1.msra.mxu0 %v179
    %1094 = vmatprep.subr.mxu0 %v183
    %1095 = vmatpush1.msra.mxu0 %v182
    %1096 = vmatprep.subr.mxu0 %v186
    %1097 = vmatpush1.msra.mxu0 %v185
    %1098 = vmatprep.subr.mxu0 %v189
    %1099 = vmatpush1.msra.mxu0 %v188
    %1100 = vmatprep.subr.mxu0 %v192
    %1101 = vmatpush1.msra.mxu0 %v191
    %1102 = vmatprep.subr.mxu0 %v195
    %1103 = vmatpush1.msra.mxu0 %v194
    %1104 = vmatprep.subr.mxu0 %v198
    %1105 = vmatpush1.msra.mxu0 %v197
    %1106 = vmatprep.subr.mxu0 %v201
    %1107 = vmatpush1.msra.mxu0 %v200
    %1108 = vmatprep.subr.mxu0 %v204
    %1109 = vmatpush1.msra.mxu0 %v203
    %1110 = vmatprep.subr.mxu0 0.0
    %1111 = vmatpush1.msra.mxu0 0.0
    %1112 = vmatprep.subr.mxu0 0.0
    %1113 = vmatpush1.msra.mxu0 0.0
    %1114 = vmatprep.subr.mxu0 0.0
    %1115 = vmatpush1.msra.mxu0 0.0
    %1116 = vmatprep.subr.mxu0 0.0
    %1117 = vmatpush1.msra.mxu0 0.0
    %1118 = vmatprep.subr.mxu0 0.0
    %1119 = vmatpush1.msra.mxu0 0.0
    %1120 = vmatprep.subr.mxu0 0.0
    %1121 = vmatpush1.msra.mxu0 0.0
    %1122 = vmatprep.subr.mxu0 0.0
    %1123 = vmatpush1.msra.mxu0 0.0
    %1124 = vmatprep.subr.mxu0 0.0
    %1125 = vmatpush1.msra.mxu0 0.0
    %1126 = vmatprep.subr.mxu0 0.0
    %1127 = vmatpush1.msra.mxu0 0.0
    %1128 = vmatprep.subr.mxu0 0.0
    %1129 = vmatpush1.msra.mxu0 0.0
    %1130 = vmatprep.subr.mxu0 0.0
    %1131 = vmatpush1.msra.mxu0 0.0
    %1132 = vmatprep.subr.mxu0 0.0
    %1133 = vmatpush1.msra.mxu0 0.0
    %1134 = vmatprep.subr.mxu0 0.0
    %1135 = vmatpush1.msra.mxu0 0.0
    %1136 = vmatprep.subr.mxu0 0.0
    %1137 = vmatpush1.msra.mxu0 0.0
    %1138 = vmatprep.subr.mxu0 0.0
    %1139 = vmatpush1.msra.mxu0 0.0
    %1140 = vmatprep.subr.mxu0 0.0
    %1141 = vmatpush1.msra.mxu0 0.0
    %1142 = vmatprep.mubr.f32.mxu0 0.0
    %1143 = vmatmul.mubr.f32.gmra.mrb[0].mxu0 %v710
    %v1144 = vpop.f32.mrb[0].mxu0
    %v1145 = vadd.f32 %v537, %v1144
    %v1146 = vpop.f32.mrb[0].mxu0
    %v1147 = vadd.f32 %v541, %v1146
    %1148 = vdwg.mxu0
    %1149 = vmatprep.subr.mxu0 0.0
    %1150 = vmatpush1.msra.mxu0 %v160
    %1151 = vmatprep.subr.mxu0 0.0
    %1152 = vmatpush1.msra.mxu0 %v163
    %1153 = vmatprep.subr.mxu0 0.0
    %1154 = vmatpush1.msra.mxu0 %v166
    %1155 = vmatprep.subr.mxu0 0.0
    %1156 = vmatpush1.msra.mxu0 %v169
    %1157 = vmatprep.subr.mxu0 0.0
    %1158 = vmatpush1.msra.mxu0 %v172
    %1159 = vmatprep.subr.mxu0 0.0
    %1160 = vmatpush1.msra.mxu0 %v175
    %1161 = vmatprep.subr.mxu0 0.0
    %1162 = vmatpush1.msra.mxu0 %v178
    %1163 = vmatprep.subr.mxu0 0.0
    %1164 = vmatpush1.msra.mxu0 %v181
    %1165 = vmatprep.subr.mxu0 0.0
    %1166 = vmatpush1.msra.mxu0 %v184
    %1167 = vmatprep.subr.mxu0 0.0
    %1168 = vmatpush1.msra.mxu0 %v187
    %1169 = vmatprep.subr.mxu0 0.0
    %1170 = vmatpush1.msra.mxu0 %v190
    %1171 = vmatprep.subr.mxu0 0.0
    %1172 = vmatpush1.msra.mxu0 %v193
    %1173 = vmatprep.subr.mxu0 0.0
    %1174 = vmatpush1.msra.mxu0 %v196
    %1175 = vmatprep.subr.mxu0 0.0
    %1176 = vmatpush1.msra.mxu0 %v199
    %1177 = vmatprep.subr.mxu0 0.0
    %1178 = vmatpush1.msra.mxu0 %v202
    %1179 = vmatprep.subr.mxu0 0.0
    %1180 = vmatpush1.msra.mxu0 %v205
    %1181 = vmatprep.subr.mxu0 0.0
    %1182 = vmatpush1.msra.mxu0 0.0
    %1183 = vmatprep.subr.mxu0 0.0
    %1184 = vmatpush1.msra.mxu0 0.0
    %1185 = vmatprep.subr.mxu0 0.0
    %1186 = vmatpush1.msra.mxu0 0.0
    %1187 = vmatprep.subr.mxu0 0.0
    %1188 = vmatpush1.msra.mxu0 0.0
    %1189 = vmatprep.subr.mxu0 0.0
    %1190 = vmatpush1.msra.mxu0 0.0
    %1191 = vmatprep.subr.mxu0 0.0
    %1192 = vmatpush1.msra.mxu0 0.0
    %1193 = vmatprep.subr.mxu0 0.0
    %1194 = vmatpush1.msra.mxu0 0.0
    %1195 = vmatprep.subr.mxu0 0.0
    %1196 = vmatpush1.msra.mxu0 0.0
    %1197 = vmatprep.subr.mxu0 0.0
    %1198 = vmatpush1.msra.mxu0 0.0
    %1199 = vmatprep.subr.mxu0 0.0
    %1200 = vmatpush1.msra.mxu0 0.0
    %1201 = vmatprep.subr.mxu0 0.0
    %1202 = vmatpush1.msra.mxu0 0.0
    %1203 = vmatprep.subr.mxu0 0.0
    %1204 = vmatpush1.msra.mxu0 0.0
    %1205 = vmatprep.subr.mxu0 0.0
    %1206 = vmatpush1.msra.mxu0 0.0
    %1207 = vmatprep.subr.mxu0 0.0
    %1208 = vmatpush1.msra.mxu0 0.0
    %1209 = vmatprep.subr.mxu0 0.0
    %1210 = vmatpush1.msra.mxu0 0.0
    %1211 = vmatprep.subr.mxu0 0.0
    %1212 = vmatpush1.msra.mxu0 0.0
    %1213 = vmatprep.mubr.f32.mxu0 0.0
    %1214 = vmatmul.mubr.f32.gmra.mrb[0].mxu0 %v710
    %v1215 = vpop.f32.mrb[0].mxu0
    %v1216 = vadd.f32 %v545, %v1215
    %v1217 = vpop.f32.mrb[0].mxu0
    %1218 = vdwg.mxu0
    %v1219 = vadd.f32 %v1075, %v1145
    %v1220 = vxor.u32 %v1219, 2147483648
    %v1221 = vmul.f32 %v1220, 1.442695
    %v1222 = vpow.pop %v1221
    %v1223 = vadd.f32 %v1222, 1.0
    %v1224 = vrcp.pop %v1223
    %v1225 = vmul.f32 1.0, %v1224
    %v1226 = vadd.f32 %v1076, %v1147
    %v1227 = vxor.u32 %v1226, 2147483648
    %v1228 = vmul.f32 %v1227, 1.442695
    %v1229 = vpow.pop %v1228
    %v1230 = vadd.f32 %v1229, 1.0
    %v1231 = vrcp.pop %v1230
    %v1232 = vmul.f32 1.0, %v1231
    %v1233 = vmul.f32 %v1225, %v1216
    %v1234 = vadd.f32 %v1077, %v1233
    %v1235 = vtanh.pop %v1234
    %v1236 = vsub.f32 1.0, %v1232
    %v1237 = vmul.f32 %v1236, %v1235
    %v1238 = vmul.f32 %v1232, %v710
    %v1239 = vadd.f32 %v1237, %v1238
    %1240 = vmatprep.subr.mxu0 0.0
    %1241 = vmatpush1.msra.mxu0 %v208
    %1242 = vmatprep.subr.mxu0 0.0
    %1243 = vmatpush1.msra.mxu0 %v209
    %1244 = vmatprep.subr.mxu0 0.0
    %1245 = vmatpush1.msra.mxu0 %v210
    %1246 = vmatprep.subr.mxu0 0.0
    %1247 = vmatpush1.msra.mxu0 %v211
    %1248 = vmatprep.subr.mxu0 0.0
    %1249 = vmatpush1.msra.mxu0 %v212
    %1250 = vmatprep.subr.mxu0 0.0
    %1251 = vmatpush1.msra.mxu0 %v213
    %1252 = vmatprep.subr.mxu0 0.0
    %1253 = vmatpush1.msra.mxu0 %v214
    %1254 = vmatprep.subr.mxu0 0.0
    %1255 = vmatpush1.msra.mxu0 %v215
    %1256 = vmatprep.subr.mxu0 0.0
    %1257 = vmatpush1.msra.mxu0 %v216
    %1258 = vmatprep.subr.mxu0 0.0
    %1259 = vmatpush1.msra.mxu0 %v217
    %1260 = vmatprep.subr.mxu0 0.0
    %1261 = vmatpush1.msra.mxu0 %v218
    %1262 = vmatprep.subr.mxu0 0.0
    %1263 = vmatpush1.msra.mxu0 %v219
    %1264 = vmatprep.subr.mxu0 0.0
    %1265 = vmatpush1.msra.mxu0 %v220
    %1266 = vmatprep.subr.mxu0 0.0
    %1267 = vmatpush1.msra.mxu0 %v221
    %1268 = vmatprep.subr.mxu0 0.0
    %1269 = vmatpush1.msra.mxu0 %v222
    %1270 = vmatprep.subr.mxu0 0.0
    %1271 = vmatpush1.msra.mxu0 %v223
    %1272 = vmatprep.subr.mxu0 0.0
    %1273 = vmatpush1.msra.mxu0 0.0
    %1274 = vmatprep.subr.mxu0 0.0
    %1275 = vmatpush1.msra.mxu0 0.0
    %1276 = vmatprep.subr.mxu0 0.0
    %1277 = vmatpush1.msra.mxu0 0.0
    %1278 = vmatprep.subr.mxu0 0.0
    %1279 = vmatpush1.msra.mxu0 0.0
    %1280 = vmatprep.subr.mxu0 0.0
    %1281 = vmatpush1.msra.mxu0 0.0
    %1282 = vmatprep.subr.mxu0 0.0
    %1283 = vmatpush1.msra.mxu0 0.0
    %1284 = vmatprep.subr.mxu0 0.0
    %1285 = vmatpush1.msra.mxu0 0.0
    %1286 = vmatprep.subr.mxu0 0.0
    %1287 = vmatpush1.msra.mxu0 0.0
    %1288 = vmatprep.subr.mxu0 0.0
    %1289 = vmatpush1.msra.mxu0 0.0
    %1290 = vmatprep.subr.mxu0 0.0
    %1291 = vmatpush1.msra.mxu0 0.0
    %1292 = vmatprep.subr.mxu0 0.0
    %1293 = vmatpush1.msra.mxu0 0.0
    %1294 = vmatprep.subr.mxu0 0.0
    %1295 = vmatpush1.msra.mxu0 0.0
    %1296 = vmatprep.subr.mxu0 0.0
    %1297 = vmatpush1.msra.mxu0 0.0
    %1298 = vmatprep.subr.mxu0 0.0
    %1299 = vmatpush1.msra.mxu0 0.0
    %1300 = vmatprep.subr.mxu0 0.0
    %1301 = vmatpush1.msra.mxu0 0.0
    %1302 = vmatprep.subr.mxu0 0.0
    %1303 = vmatpush1.msra.mxu0 0.0
    %1304 = vmatprep.mubr.f32.mxu0 0.0
    %1305 = vmatmul.mubr.f32.gmra.mrb[0].mxu0 %v1239
    %v1306 = vpop.f32.mrb[0].mxu0
    %v1307 = vadd.f32 %v715, %v1306
    %v1308 = vpop.f32.mrb[0].mxu0
    %1309 = vdwg.mxu0
    %s1310 = scalar_lea.vmem [#allocation13], 8
    %1311 = vst [vmem:[%s1310] sm:$0xff] %v1307
    %s1312 = scalar_lea.vmem [#allocation4], 16
    %v1313 = vld [vmem:[%s1312] sm:$0xff]
    %1314 = vmatprep.subr.mxu0 %v111
    %1315 = vmatpush1.msra.mxu0 %v110
    %1316 = vmatprep.subr.mxu0 %v114
    %1317 = vmatpush1.msra.mxu0 %v113
    %1318 = vmatprep.subr.mxu0 %v117
    %1319 = vmatpush1.msra.mxu0 %v116
    %1320 = vmatprep.subr.mxu0 %v120
    %1321 = vmatpush1.msra.mxu0 %v119
    %1322 = vmatprep.subr.mxu0 %v123
    %1323 = vmatpush1.msra.mxu0 %v122
    %1324 = vmatprep.subr.mxu0 %v126
    %1325 = vmatpush1.msra.mxu0 %v125
    %1326 = vmatprep.subr.mxu0 %v129
    %1327 = vmatpush1.msra.mxu0 %v128
    %1328 = vmatprep.subr.mxu0 %v132
    %1329 = vmatpush1.msra.mxu0 %v131
    %1330 = vmatprep.subr.mxu0 %v135
    %1331 = vmatpush1.msra.mxu0 %v134
    %1332 = vmatprep.subr.mxu0 %v138
    %1333 = vmatpush1.msra.mxu0 %v137
    %1334 = vmatprep.subr.mxu0 %v141
    %1335 = vmatpush1.msra.mxu0 %v140
    %1336 = vmatprep.subr.mxu0 %v144
    %1337 = vmatpush1.msra.mxu0 %v143
    %1338 = vmatprep.subr.mxu0 %v147
    %1339 = vmatpush1.msra.mxu0 %v146
    %1340 = vmatprep.subr.mxu0 %v150
    %1341 = vmatpush1.msra.mxu0 %v149
    %1342 = vmatprep.subr.mxu0 %v153
    %1343 = vmatpush1.msra.mxu0 %v152
    %1344 = vmatprep.subr.mxu0 %v156
    %1345 = vmatpush1.msra.mxu0 %v155
    %1346 = vmatprep.subr.mxu0 0.0
    %1347 = vmatpush1.msra.mxu0 0.0
    %1348 = vmatprep.subr.mxu0 0.0
    %1349 = vmatpush1.msra.mxu0 0.0
    %1350 = vmatprep.subr.mxu0 0.0
    %1351 = vmatpush1.msra.mxu0 0.0
    %1352 = vmatprep.subr.mxu0 0.0
    %1353 = vmatpush1.msra.mxu0 0.0
    %1354 = vmatprep.subr.mxu0 0.0
    %1355 = vmatpush1.msra.mxu0 0.0
    %1356 = vmatprep.subr.mxu0 0.0
    %1357 = vmatpush1.msra.mxu0 0.0
    %1358 = vmatprep.subr.mxu0 0.0
    %1359 = vmatpush1.msra.mxu0 0.0
    %1360 = vmatprep.subr.mxu0 0.0
    %1361 = vmatpush1.msra.mxu0 0.0
    %1362 = vmatprep.subr.mxu0 0.0
    %1363 = vmatpush1.msra.mxu0 0.0
    %1364 = vmatprep.subr.mxu0 0.0
    %1365 = vmatpush1.msra.mxu0 0.0
    %1366 = vmatprep.subr.mxu0 0.0
    %1367 = vmatpush1.msra.mxu0 0.0
    %1368 = vmatprep.subr.mxu0 0.0
    %1369 = vmatpush1.msra.mxu0 0.0
    %1370 = vmatprep.subr.mxu0 0.0
    %1371 = vmatpush1.msra.mxu0 0.0
    %1372 = vmatprep.subr.mxu0 0.0
    %1373 = vmatpush1.msra.mxu0 0.0
    %1374 = vmatprep.subr.mxu0 0.0
    %1375 = vmatpush1.msra.mxu0 0.0
    %1376 = vmatprep.subr.mxu0 0.0
    %1377 = vmatpush1.msra.mxu0 0.0
    %1378 = vmatprep.mubr.f32.mxu0 0.0
    %1379 = vmatmul.mubr.f32.gmra.mrb[0].mxu0 %v1307
    %v1380 = vpop.f32.mrb[0].mxu0
    %v1381 = vadd.f32 0.0, %v1380
    %v1382 = vpop.f32.mrb[0].mxu0
    %v1383 = vadd.f32 0.0, %v1382
    %1384 = vdwg.mxu0
    %1385 = vmatprep.subr.mxu0 0.0
    %1386 = vmatpush1.msra.mxu0 %v112
    %1387 = vmatprep.subr.mxu0 0.0
    %1388 = vmatpush1.msra.mxu0 %v115
    %1389 = vmatprep.subr.mxu0 0.0
    %1390 = vmatpush1.msra.mxu0 %v118
    %1391 = vmatprep.subr.mxu0 0.0
    %1392 = vmatpush1.msra.mxu0 %v121
    %1393 = vmatprep.subr.mxu0 0.0
    %1394 = vmatpush1.msra.mxu0 %v124
    %1395 = vmatprep.subr.mxu0 0.0
    %1396 = vmatpush1.msra.mxu0 %v127
    %1397 = vmatprep.subr.mxu0 0.0
    %1398 = vmatpush1.msra.mxu0 %v130
    %1399 = vmatprep.subr.mxu0 0.0
    %1400 = vmatpush1.msra.mxu0 %v133
    %1401 = vmatprep.subr.mxu0 0.0
    %1402 = vmatpush1.msra.mxu0 %v136
    %1403 = vmatprep.subr.mxu0 0.0
    %1404 = vmatpush1.msra.mxu0 %v139
    %1405 = vmatprep.subr.mxu0 0.0
    %1406 = vmatpush1.msra.mxu0 %v142
    %1407 = vmatprep.subr.mxu0 0.0
    %1408 = vmatpush1.msra.mxu0 %v145
    %1409 = vmatprep.subr.mxu0 0.0
    %1410 = vmatpush1.msra.mxu0 %v148
    %1411 = vmatprep.subr.mxu0 0.0
    %1412 = vmatpush1.msra.mxu0 %v151
    %1413 = vmatprep.subr.mxu0 0.0
    %1414 = vmatpush1.msra.mxu0 %v154
    %1415 = vmatprep.subr.mxu0 0.0
    %1416 = vmatpush1.msra.mxu0 %v157
    %1417 = vmatprep.subr.mxu0 0.0
    %1418 = vmatpush1.msra.mxu0 0.0
    %1419 = vmatprep.subr.mxu0 0.0
    %1420 = vmatpush1.msra.mxu0 0.0
    %1421 = vmatprep.subr.mxu0 0.0
    %1422 = vmatpush1.msra.mxu0 0.0
    %1423 = vmatprep.subr.mxu0 0.0
    %1424 = vmatpush1.msra.mxu0 0.0
    %1425 = vmatprep.subr.mxu0 0.0
    %1426 = vmatpush1.msra.mxu0 0.0
    %1427 = vmatprep.subr.mxu0 0.0
    %1428 = vmatpush1.msra.mxu0 0.0
    %1429 = vmatprep.subr.mxu0 0.0
    %1430 = vmatpush1.msra.mxu0 0.0
    %1431 = vmatprep.subr.mxu0 0.0
    %1432 = vmatpush1.msra.mxu0 0.0
    %1433 = vmatprep.subr.mxu0 0.0
    %1434 = vmatpush1.msra.mxu0 0.0
    %1435 = vmatprep.subr.mxu0 0.0
    %1436 = vmatpush1.msra.mxu0 0.0
    %1437 = vmatprep.subr.mxu0 0.0
    %1438 = vmatpush1.msra.mxu0 0.0
    %1439 = vmatprep.subr.mxu0 0.0
    %1440 = vmatpush1.msra.mxu0 0.0
    %1441 = vmatprep.subr.mxu0 0.0
    %1442 = vmatpush1.msra.mxu0 0.0
    %1443 = vmatprep.subr.mxu0 0.0
    %1444 = vmatpush1.msra.mxu0 0.0
    %1445 = vmatprep.subr.mxu0 0.0
    %1446 = vmatpush1.msra.mxu0 0.0
    %1447 = vmatprep.subr.mxu0 0.0
    %1448 = vmatpush1.msra.mxu0 0.0
    %1449 = vmatprep.mubr.f32.mxu0 0.0
    %1450 = vmatmul.mubr.f32.gmra.mrb[0].mxu0 %v1307
    %v1451 = vpop.f32.mrb[0].mxu0
    %v1452 = vadd.f32 0.0, %v1451
    %v1453 = vpop.f32.mrb[0].mxu0
    %1454 = vdwg.mxu0
    %v1456 = vsel %vm369, %v1313, 0
    %1458 = vmatprep.subr.mxu0 %v105
    %1459 = vmatpush1.msra.mxu0 %v104
    %1460 = vmatprep.subr.mxu0 %v108
    %1461 = vmatpush1.msra.mxu0 %v107
    %1462 = vmatprep.subr.mxu0 0.0
    %1463 = vmatpush1.msra.mxu0 0.0
    %1464 = vmatprep.subr.mxu0 0.0
    %1465 = vmatpush1.msra.mxu0 0.0
    %1466 = vmatprep.subr.mxu0 0.0
    %1467 = vmatpush1.msra.mxu0 0.0
    %1468 = vmatprep.subr.mxu0 0.0
    %1469 = vmatpush1.msra.mxu0 0.0
    %1470 = vmatprep.subr.mxu0 0.0
    %1471 = vmatpush1.msra.mxu0 0.0
    %1472 = vmatprep.subr.mxu0 0.0
    %1473 = vmatpush1.msra.mxu0 0.0
    %1474 = vmatprep.subr.mxu0 0.0
    %1475 = vmatpush1.msra.mxu0 0.0
    %1476 = vmatprep.subr.mxu0 0.0
    %1477 = vmatpush1.msra.mxu0 0.0
    %1478 = vmatprep.subr.mxu0 0.0
    %1479 = vmatpush1.msra.mxu0 0.0
    %1480 = vmatprep.subr.mxu0 0.0
    %1481 = vmatpush1.msra.mxu0 0.0
    %1482 = vmatprep.subr.mxu0 0.0
    %1483 = vmatpush1.msra.mxu0 0.0
    %1484 = vmatprep.subr.mxu0 0.0
    %1485 = vmatpush1.msra.mxu0 0.0
    %1486 = vmatprep.subr.mxu0 0.0
    %1487 = vmatpush1.msra.mxu0 0.0
    %1488 = vmatprep.subr.mxu0 0.0
    %1489 = vmatpush1.msra.mxu0 0.0
    %1490 = vmatprep.subr.mxu0 0.0
    %1491 = vmatpush1.msra.mxu0 0.0
    %1492 = vmatprep.subr.mxu0 0.0
    %1493 = vmatpush1.msra.mxu0 0.0
    %1494 = vmatprep.subr.mxu0 0.0
    %1495 = vmatpush1.msra.mxu0 0.0
    %1496 = vmatprep.subr.mxu0 0.0
    %1497 = vmatpush1.msra.mxu0 0.0
    %1498 = vmatprep.subr.mxu0 0.0
    %1499 = vmatpush1.msra.mxu0 0.0
    %1500 = vmatprep.subr.mxu0 0.0
    %1501 = vmatpush1.msra.mxu0 0.0
    %1502 = vmatprep.subr.mxu0 0.0
    %1503 = vmatpush1.msra.mxu0 0.0
    %1504 = vmatprep.subr.mxu0 0.0
    %1505 = vmatpush1.msra.mxu0 0.0
    %1506 = vmatprep.subr.mxu0 0.0
    %1507 = vmatpush1.msra.mxu0 0.0
    %1508 = vmatprep.subr.mxu0 0.0
    %1509 = vmatpush1.msra.mxu0 0.0
    %1510 = vmatprep.subr.mxu0 0.0
    %1511 = vmatpush1.msra.mxu0 0.0
    %1512 = vmatprep.subr.mxu0 0.0
    %1513 = vmatpush1.msra.mxu0 0.0
    %1514 = vmatprep.subr.mxu0 0.0
    %1515 = vmatpush1.msra.mxu0 0.0
    %1516 = vmatprep.subr.mxu0 0.0
    %1517 = vmatpush1.msra.mxu0 0.0
    %1518 = vmatprep.subr.mxu0 0.0
    %1519 = vmatpush1.msra.mxu0 0.0
    %1520 = vmatprep.subr.mxu0 0.0
    %1521 = vmatpush1.msra.mxu0 0.0
    %1522 = vmatprep.mubr.f32.mxu0 0.0
    %1523 = vmatmul.mubr.f32.gmra.mrb[0].mxu0 %v1456
    %v1524 = vpop.f32.mrb[0].mxu0
    %v1525 = vadd.f32 %v1381, %v1524
    %v1526 = vpop.f32.mrb[0].mxu0
    %v1527 = vadd.f32 %v1383, %v1526
    %1528 = vdwg.mxu0
    %1529 = vmatprep.subr.mxu0 0.0
    %1530 = vmatpush1.msra.mxu0 %v106
    %1531 = vmatprep.subr.mxu0 0.0
    %1532 = vmatpush1.msra.mxu0 %v109
    %1533 = vmatprep.subr.mxu0 0.0
    %1534 = vmatpush1.msra.mxu0 0.0
    %1535 = vmatprep.subr.mxu0 0.0
    %1536 = vmatpush1.msra.mxu0 0.0
    %1537 = vmatprep.subr.mxu0 0.0
    %1538 = vmatpush1.msra.mxu0 0.0
    %1539 = vmatprep.subr.mxu0 0.0
    %1540 = vmatpush1.msra.mxu0 0.0
    %1541 = vmatprep.subr.mxu0 0.0
    %1542 = vmatpush1.msra.mxu0 0.0
    %1543 = vmatprep.subr.mxu0 0.0
    %1544 = vmatpush1.msra.mxu0 0.0
    %1545 = vmatprep.subr.mxu0 0.0
    %1546 = vmatpush1.msra.mxu0 0.0
    %1547 = vmatprep.subr.mxu0 0.0
    %1548 = vmatpush1.msra.mxu0 0.0
    %1549 = vmatprep.subr.mxu0 0.0
    %1550 = vmatpush1.msra.mxu0 0.0
    %1551 = vmatprep.subr.mxu0 0.0
    %1552 = vmatpush1.msra.mxu0 0.0
    %1553 = vmatprep.subr.mxu0 0.0
    %1554 = vmatpush1.msra.mxu0 0.0
    %1555 = vmatprep.subr.mxu0 0.0
    %1556 = vmatpush1.msra.mxu0 0.0
    %1557 = vmatprep.subr.mxu0 0.0
    %1558 = vmatpush1.msra.mxu0 0.0
    %1559 = vmatprep.subr.mxu0 0.0
    %1560 = vmatpush1.msra.mxu0 0.0
    %1561 = vmatprep.subr.mxu0 0.0
    %1562 = vmatpush1.msra.mxu0 0.0
    %1563 = vmatprep.subr.mxu0 0.0
    %1564 = vmatpush1.msra.mxu0 0.0
    %1565 = vmatprep.subr.mxu0 0.0
    %1566 = vmatpush1.msra.mxu0 0.0
    %1567 = vmatprep.subr.mxu0 0.0
    %1568 = vmatpush1.msra.mxu0 0.0
    %1569 = vmatprep.subr.mxu0 0.0
    %1570 = vmatpush1.msra.mxu0 0.0
    %1571 = vmatprep.subr.mxu0 0.0
    %1572 = vmatpush1.msra.mxu0 0.0
    %1573 = vmatprep.subr.mxu0 0.0
    %1574 = vmatpush1.msra.mxu0 0.0
    %1575 = vmatprep.subr.mxu0 0.0
    %1576 = vmatpush1.msra.mxu0 0.0
    %1577 = vmatprep.subr.mxu0 0.0
    %1578 = vmatpush1.msra.mxu0 0.0
    %1579 = vmatprep.subr.mxu0 0.0
    %1580 = vmatpush1.msra.mxu0 0.0
    %1581 = vmatprep.subr.mxu0 0.0
    %1582 = vmatpush1.msra.mxu0 0.0
    %1583 = vmatprep.subr.mxu0 0.0
    %1584 = vmatpush1.msra.mxu0 0.0
    %1585 = vmatprep.subr.mxu0 0.0
    %1586 = vmatpush1.msra.mxu0 0.0
    %1587 = vmatprep.subr.mxu0 0.0
    %1588 = vmatpush1.msra.mxu0 0.0
    %1589 = vmatprep.subr.mxu0 0.0
    %1590 = vmatpush1.msra.mxu0 0.0
    %1591 = vmatprep.subr.mxu0 0.0
    %1592 = vmatpush1.msra.mxu0 0.0
    %1593 = vmatprep.mubr.f32.mxu0 0.0
    %1594 = vmatmul.mubr.f32.gmra.mrb[0].mxu0 %v1456
    %v1595 = vpop.f32.mrb[0].mxu0
    %v1596 = vadd.f32 %v1452, %v1595
    %v1597 = vpop.f32.mrb[0].mxu0
    %1598 = vdwg.mxu0
    %v1599 = vadd.f32 %v1525, %v518
    %v1600 = vadd.f32 %v1527, %v522
    %v1601 = vadd.f32 %v1596, %v526
    %1602 = vmatprep.subr.mxu0 %v159
    %1603 = vmatpush1.msra.mxu0 %v158
    %1604 = vmatprep.subr.mxu0 %v162
    %1605 = vmatpush1.msra.mxu0 %v161
    %1606 = vmatprep.subr.mxu0 %v165
    %1607 = vmatpush1.msra.mxu0 %v164
    %1608 = vmatprep.subr.mxu0 %v168
    %1609 = vmatpush1.msra.mxu0 %v167
    %1610 = vmatprep.subr.mxu0 %v171
    %1611 = vmatpush1.msra.mxu0 %v170
    %1612 = vmatprep.subr.mxu0 %v174
    %1613 = vmatpush1.msra.mxu0 %v173
    %1614 = vmatprep.subr.mxu0 %v177
    %1615 = vmatpush1.msra.mxu0 %v176
    %1616 = vmatprep.subr.mxu0 %v180
    %1617 = vmatpush1.msra.mxu0 %v179
    %1618 = vmatprep.subr.mxu0 %v183
    %1619 = vmatpush1.msra.mxu0 %v182
    %1620 = vmatprep.subr.mxu0 %v186
    %1621 = vmatpush1.msra.mxu0 %v185
    %1622 = vmatprep.subr.mxu0 %v189
    %1623 = vmatpush1.msra.mxu0 %v188
    %1624 = vmatprep.subr.mxu0 %v192
    %1625 = vmatpush1.msra.mxu0 %v191
    %1626 = vmatprep.subr.mxu0 %v195
    %1627 = vmatpush1.msra.mxu0 %v194
    %1628 = vmatprep.subr.mxu0 %v198
    %1629 = vmatpush1.msra.mxu0 %v197
    %1630 = vmatprep.subr.mxu0 %v201
    %1631 = vmatpush1.msra.mxu0 %v200
    %1632 = vmatprep.subr.mxu0 %v204
    %1633 = vmatpush1.msra.mxu0 %v203
    %1634 = vmatprep.subr.mxu0 0.0
    %1635 = vmatpush1.msra.mxu0 0.0
    %1636 = vmatprep.subr.mxu0 0.0
    %1637 = vmatpush1.msra.mxu0 0.0
    %1638 = vmatprep.subr.mxu0 0.0
    %1639 = vmatpush1.msra.mxu0 0.0
    %1640 = vmatprep.subr.mxu0 0.0
    %1641 = vmatpush1.msra.mxu0 0.0
    %1642 = vmatprep.subr.mxu0 0.0
    %1643 = vmatpush1.msra.mxu0 0.0
    %1644 = vmatprep.subr.mxu0 0.0
    %1645 = vmatpush1.msra.mxu0 0.0
    %1646 = vmatprep.subr.mxu0 0.0
    %1647 = vmatpush1.msra.mxu0 0.0
    %1648 = vmatprep.subr.mxu0 0.0
    %1649 = vmatpush1.msra.mxu0 0.0
    %1650 = vmatprep.subr.mxu0 0.0
    %1651 = vmatpush1.msra.mxu0 0.0
    %1652 = vmatprep.subr.mxu0 0.0
    %1653 = vmatpush1.msra.mxu0 0.0
    %1654 = vmatprep.subr.mxu0 0.0
    %1655 = vmatpush1.msra.mxu0 0.0
    %1656 = vmatprep.subr.mxu0 0.0
    %1657 = vmatpush1.msra.mxu0 0.0
    %1658 = vmatprep.subr.mxu0 0.0
    %1659 = vmatpush1.msra.mxu0 0.0
    %1660 = vmatprep.subr.mxu0 0.0
    %1661 = vmatpush1.msra.mxu0 0.0
    %1662 = vmatprep.subr.mxu0 0.0
    %1663 = vmatpush1.msra.mxu0 0.0
    %1664 = vmatprep.subr.mxu0 0.0
    %1665 = vmatpush1.msra.mxu0 0.0
    %1666 = vmatprep.mubr.f32.mxu0 0.0
    %1667 = vmatmul.mubr.f32.gmra.mrb[0].mxu0 %v1239
    %v1668 = vpop.f32.mrb[0].mxu0
    %v1669 = vadd.f32 %v537, %v1668
    %v1670 = vpop.f32.mrb[0].mxu0
    %v1671 = vadd.f32 %v541, %v1670
    %1672 = vdwg.mxu0
    %1673 = vmatprep.subr.mxu0 0.0
    %1674 = vmatpush1.msra.mxu0 %v160
    %1675 = vmatprep.subr.mxu0 0.0
    %1676 = vmatpush1.msra.mxu0 %v163
    %1677 = vmatprep.subr.mxu0 0.0
    %1678 = vmatpush1.msra.mxu0 %v166
    %1679 = vmatprep.subr.mxu0 0.0
    %1680 = vmatpush1.msra.mxu0 %v169
    %1681 = vmatprep.subr.mxu0 0.0
    %1682 = vmatpush1.msra.mxu0 %v172
    %1683 = vmatprep.subr.mxu0 0.0
    %1684 = vmatpush1.msra.mxu0 %v175
    %1685 = vmatprep.subr.mxu0 0.0
    %1686 = vmatpush1.msra.mxu0 %v178
    %1687 = vmatprep.subr.mxu0 0.0
    %1688 = vmatpush1.msra.mxu0 %v181
    %1689 = vmatprep.subr.mxu0 0.0
    %1690 = vmatpush1.msra.mxu0 %v184
    %1691 = vmatprep.subr.mxu0 0.0
    %1692 = vmatpush1.msra.mxu0 %v187
    %1693 = vmatprep.subr.mxu0 0.0
    %1694 = vmatpush1.msra.mxu0 %v190
    %1695 = vmatprep.subr.mxu0 0.0
    %1696 = vmatpush1.msra.mxu0 %v193
    %1697 = vmatprep.subr.mxu0 0.0
    %1698 = vmatpush1.msra.mxu0 %v196
    %1699 = vmatprep.subr.mxu0 0.0
    %1700 = vmatpush1.msra.mxu0 %v199
    %1701 = vmatprep.subr.mxu0 0.0
    %1702 = vmatpush1.msra.mxu0 %v202
    %1703 = vmatprep.subr.mxu0 0.0
    %1704 = vmatpush1.msra.mxu0 %v205
    %1705 = vmatprep.subr.mxu0 0.0
    %1706 = vmatpush1.msra.mxu0 0.0
    %1707 = vmatprep.subr.mxu0 0.0
    %1708 = vmatpush1.msra.mxu0 0.0
    %1709 = vmatprep.subr.mxu0 0.0
    %1710 = vmatpush1.msra.mxu0 0.0
    %1711 = vmatprep.subr.mxu0 0.0
    %1712 = vmatpush1.msra.mxu0 0.0
    %1713 = vmatprep.subr.mxu0 0.0
    %1714 = vmatpush1.msra.mxu0 0.0
    %1715 = vmatprep.subr.mxu0 0.0
    %1716 = vmatpush1.msra.mxu0 0.0
    %1717 = vmatprep.subr.mxu0 0.0
    %1718 = vmatpush1.msra.mxu0 0.0
    %1719 = vmatprep.subr.mxu0 0.0
    %1720 = vmatpush1.msra.mxu0 0.0
    %1721 = vmatprep.subr.mxu0 0.0
    %1722 = vmatpush1.msra.mxu0 0.0
    %1723 = vmatprep.subr.mxu0 0.0
    %1724 = vmatpush1.msra.mxu0 0.0
    %1725 = vmatprep.subr.mxu0 0.0
    %1726 = vmatpush1.msra.mxu0 0.0
    %1727 = vmatprep.subr.mxu0 0.0
    %1728 = vmatpush1.msra.mxu0 0.0
    %1729 = vmatprep.subr.mxu0 0.0
    %1730 = vmatpush1.msra.mxu0 0.0
    %1731 = vmatprep.subr.mxu0 0.0
    %1732 = vmatpush1.msra.mxu0 0.0
    %1733 = vmatprep.subr.mxu0 0.0
    %1734 = vmatpush1.msra.mxu0 0.0
    %1735 = vmatprep.subr.mxu0 0.0
    %1736 = vmatpush1.msra.mxu0 0.0
    %1737 = vmatprep.mubr.f32.mxu0 0.0
    %1738 = vmatmul.mubr.f32.gmra.mrb[0].mxu0 %v1239
    %v1739 = vpop.f32.mrb[0].mxu0
    %v1740 = vadd.f32 %v545, %v1739
    %v1741 = vpop.f32.mrb[0].mxu0
    %1742 = vdwg.mxu0
    %v1743 = vadd.f32 %v1599, %v1669
    %v1744 = vxor.u32 %v1743, 2147483648
    %v1745 = vmul.f32 %v1744, 1.442695
    %v1746 = vpow.pop %v1745
    %v1747 = vadd.f32 %v1746, 1.0
    %v1748 = vrcp.pop %v1747
    %v1749 = vmul.f32 1.0, %v1748
    %v1750 = vadd.f32 %v1600, %v1671
    %v1751 = vxor.u32 %v1750, 2147483648
    %v1752 = vmul.f32 %v1751, 1.442695
    %v1753 = vpow.pop %v1752
    %v1754 = vadd.f32 %v1753, 1.0
    %v1755 = vrcp.pop %v1754
    %v1756 = vmul.f32 1.0, %v1755
    %v1757 = vmul.f32 %v1749, %v1740
    %v1758 = vadd.f32 %v1601, %v1757
    %v1759 = vtanh.pop %v1758
    %v1760 = vsub.f32 1.0, %v1756
    %v1761 = vmul.f32 %v1760, %v1759
    %v1762 = vmul.f32 %v1756, %v1239
    %v1763 = vadd.f32 %v1761, %v1762
    %1764 = vmatprep.subr.mxu0 0.0
    %1765 = vmatpush1.msra.mxu0 %v208
    %1766 = vmatprep.subr.mxu0 0.0
    %1767 = vmatpush1.msra.mxu0 %v209
    %1768 = vmatprep.subr.mxu0 0.0
    %1769 = vmatpush1.msra.mxu0 %v210
    %1770 = vmatprep.subr.mxu0 0.0
    %1771 = vmatpush1.msra.mxu0 %v211
    %1772 = vmatprep.subr.mxu0 0.0
    %1773 = vmatpush1.msra.mxu0 %v212
    %1774 = vmatprep.subr.mxu0 0.0
    %1775 = vmatpush1.msra.mxu0 %v213
    %1776 = vmatprep.subr.mxu0 0.0
    %1777 = vmatpush1.msra.mxu0 %v214
    %1778 = vmatprep.subr.mxu0 0.0
    %1779 = vmatpush1.msra.mxu0 %v215
    %1780 = vmatprep.subr.mxu0 0.0
    %1781 = vmatpush1.msra.mxu0 %v216
    %1782 = vmatprep.subr.mxu0 0.0
    %1783 = vmatpush1.msra.mxu0 %v217
    %1784 = vmatprep.subr.mxu0 0.0
    %1785 = vmatpush1.msra.mxu0 %v218
    %1786 = vmatprep.subr.mxu0 0.0
    %1787 = vmatpush1.msra.mxu0 %v219
    %1788 = vmatprep.subr.mxu0 0.0
    %1789 = vmatpush1.msra.mxu0 %v220
    %1790 = vmatprep.subr.mxu0 0.0
    %1791 = vmatpush1.msra.mxu0 %v221
    %1792 = vmatprep.subr.mxu0 0.0
    %1793 = vmatpush1.msra.mxu0 %v222
    %1794 = vmatprep.subr.mxu0 0.0
    %1795 = vmatpush1.msra.mxu0 %v223
    %1796 = vmatprep.subr.mxu0 0.0
    %1797 = vmatpush1.msra.mxu0 0.0
    %1798 = vmatprep.subr.mxu0 0.0
    %1799 = vmatpush1.msra.mxu0 0.0
    %1800 = vmatprep.subr.mxu0 0.0
    %1801 = vmatpush1.msra.mxu0 0.0
    %1802 = vmatprep.subr.mxu0 0.0
    %1803 = vmatpush1.msra.mxu0 0.0
    %1804 = vmatprep.subr.mxu0 0.0
    %1805 = vmatpush1.msra.mxu0 0.0
    %1806 = vmatprep.subr.mxu0 0.0
    %1807 = vmatpush1.msra.mxu0 0.0
    %1808 = vmatprep.subr.mxu0 0.0
    %1809 = vmatpush1.msra.mxu0 0.0
    %1810 = vmatprep.subr.mxu0 0.0
    %1811 = vmatpush1.msra.mxu0 0.0
    %1812 = vmatprep.subr.mxu0 0.0
    %1813 = vmatpush1.msra.mxu0 0.0
    %1814 = vmatprep.subr.mxu0 0.0
    %1815 = vmatpush1.msra.mxu0 0.0
    %1816 = vmatprep.subr.mxu0 0.0
    %1817 = vmatpush1.msra.mxu0 0.0
    %1818 = vmatprep.subr.mxu0 0.0
    %1819 = vmatpush1.msra.mxu0 0.0
    %1820 = vmatprep.subr.mxu0 0.0
    %1821 = vmatpush1.msra.mxu0 0.0
    %1822 = vmatprep.subr.mxu0 0.0
    %1823 = vmatpush1.msra.mxu0 0.0
    %1824 = vmatprep.subr.mxu0 0.0
    %1825 = vmatpush1.msra.mxu0 0.0
    %1826 = vmatprep.subr.mxu0 0.0
    %1827 = vmatpush1.msra.mxu0 0.0
    %1828 = vmatprep.mubr.f32.mxu0 0.0
    %1829 = vmatmul.mubr.f32.gmra.mrb[0].mxu0 %v1763
    %v1830 = vpop.f32.mrb[0].mxu0
    %v1831 = vadd.f32 %v715, %v1830
    %v1832 = vpop.f32.mrb[0].mxu0
    %1833 = vdwg.mxu0
    %s1834 = scalar_lea.vmem [#allocation13], 16
    %1835 = vst [vmem:[%s1834] sm:$0xff] %v1831
    %s1836 = scalar_lea.vmem [#allocation4], 24
    %v1837 = vld [vmem:[%s1836] sm:$0xff]
    %1838 = vmatprep.subr.mxu0 %v111
    %1839 = vmatpush1.msra.mxu0 %v110
    %1840 = vmatprep.subr.mxu0 %v114
    %1841 = vmatpush1.msra.mxu0 %v113
    %1842 = vmatprep.subr.mxu0 %v117
    %1843 = vmatpush1.msra.mxu0 %v116
    %1844 = vmatprep.subr.mxu0 %v120
    %1845 = vmatpush1.msra.mxu0 %v119
    %1846 = vmatprep.subr.mxu0 %v123
    %1847 = vmatpush1.msra.mxu0 %v122
    %1848 = vmatprep.subr.mxu0 %v126
    %1849 = vmatpush1.msra.mxu0 %v125
    %1850 = vmatprep.subr.mxu0 %v129
    %1851 = vmatpush1.msra.mxu0 %v128
    %1852 = vmatprep.subr.mxu0 %v132
    %1853 = vmatpush1.msra.mxu0 %v131
    %1854 = vmatprep.subr.mxu0 %v135
    %1855 = vmatpush1.msra.mxu0 %v134
    %1856 = vmatprep.subr.mxu0 %v138
    %1857 = vmatpush1.msra.mxu0 %v137
    %1858 = vmatprep.subr.mxu0 %v141
    %1859 = vmatpush1.msra.mxu0 %v140
    %1860 = vmatprep.subr.mxu0 %v144
    %1861 = vmatpush1.msra.mxu0 %v143
    %1862 = vmatprep.subr.mxu0 %v147
    %1863 = vmatpush1.msra.mxu0 %v146
    %1864 = vmatprep.subr.mxu0 %v150
    %1865 = vmatpush1.msra.mxu0 %v149
    %1866 = vmatprep.subr.mxu0 %v153
    %1867 = vmatpush1.msra.mxu0 %v152
    %1868 = vmatprep.subr.mxu0 %v156
    %1869 = vmatpush1.msra.mxu0 %v155
    %1870 = vmatprep.subr.mxu0 0.0
    %1871 = vmatpush1.msra.mxu0 0.0
    %1872 = vmatprep.subr.mxu0 0.0
    %1873 = vmatpush1.msra.mxu0 0.0
    %1874 = vmatprep.subr.mxu0 0.0
    %1875 = vmatpush1.msra.mxu0 0.0
    %1876 = vmatprep.subr.mxu0 0.0
    %1877 = vmatpush1.msra.mxu0 0.0
    %1878 = vmatprep.subr.mxu0 0.0
    %1879 = vmatpush1.msra.mxu0 0.0
    %1880 = vmatprep.subr.mxu0 0.0
    %1881 = vmatpush1.msra.mxu0 0.0
    %1882 = vmatprep.subr.mxu0 0.0
    %1883 = vmatpush1.msra.mxu0 0.0
    %1884 = vmatprep.subr.mxu0 0.0
    %1885 = vmatpush1.msra.mxu0 0.0
    %1886 = vmatprep.subr.mxu0 0.0
    %1887 = vmatpush1.msra.mxu0 0.0
    %1888 = vmatprep.subr.mxu0 0.0
    %1889 = vmatpush1.msra.mxu0 0.0
    %1890 = vmatprep.subr.mxu0 0.0
    %1891 = vmatpush1.msra.mxu0 0.0
    %1892 = vmatprep.subr.mxu0 0.0
    %1893 = vmatpush1.msra.mxu0 0.0
    %1894 = vmatprep.subr.mxu0 0.0
    %1895 = vmatpush1.msra.mxu0 0.0
    %1896 = vmatprep.subr.mxu0 0.0
    %1897 = vmatpush1.msra.mxu0 0.0
    %1898 = vmatprep.subr.mxu0 0.0
    %1899 = vmatpush1.msra.mxu0 0.0
    %1900 = vmatprep.subr.mxu0 0.0
    %1901 = vmatpush1.msra.mxu0 0.0
    %1902 = vmatprep.mubr.f32.mxu0 0.0
    %1903 = vmatmul.mubr.f32.gmra.mrb[0].mxu0 %v1831
    %v1904 = vpop.f32.mrb[0].mxu0
    %v1905 = vadd.f32 0.0, %v1904
    %v1906 = vpop.f32.mrb[0].mxu0
    %v1907 = vadd.f32 0.0, %v1906
    %1908 = vdwg.mxu0
    %1909 = vmatprep.subr.mxu0 0.0
    %1910 = vmatpush1.msra.mxu0 %v112
    %1911 = vmatprep.subr.mxu0 0.0
    %1912 = vmatpush1.msra.mxu0 %v115
    %1913 = vmatprep.subr.mxu0 0.0
    %1914 = vmatpush1.msra.mxu0 %v118
    %1915 = vmatprep.subr.mxu0 0.0
    %1916 = vmatpush1.msra.mxu0 %v121
    %1917 = vmatprep.subr.mxu0 0.0
    %1918 = vmatpush1.msra.mxu0 %v124
    %1919 = vmatprep.subr.mxu0 0.0
    %1920 = vmatpush1.msra.mxu0 %v127
    %1921 = vmatprep.subr.mxu0 0.0
    %1922 = vmatpush1.msra.mxu0 %v130
    %1923 = vmatprep.subr.mxu0 0.0
    %1924 = vmatpush1.msra.mxu0 %v133
    %1925 = vmatprep.subr.mxu0 0.0
    %1926 = vmatpush1.msra.mxu0 %v136
    %1927 = vmatprep.subr.mxu0 0.0
    %1928 = vmatpush1.msra.mxu0 %v139
    %1929 = vmatprep.subr.mxu0 0.0
    %1930 = vmatpush1.msra.mxu0 %v142
    %1931 = vmatprep.subr.mxu0 0.0
    %1932 = vmatpush1.msra.mxu0 %v145
    %1933 = vmatprep.subr.mxu0 0.0
    %1934 = vmatpush1.msra.mxu0 %v148
    %1935 = vmatprep.subr.mxu0 0.0
    %1936 = vmatpush1.msra.mxu0 %v151
    %1937 = vmatprep.subr.mxu0 0.0
    %1938 = vmatpush1.msra.mxu0 %v154
    %1939 = vmatprep.subr.mxu0 0.0
    %1940 = vmatpush1.msra.mxu0 %v157
    %1941 = vmatprep.subr.mxu0 0.0
    %1942 = vmatpush1.msra.mxu0 0.0
    %1943 = vmatprep.subr.mxu0 0.0
    %1944 = vmatpush1.msra.mxu0 0.0
    %1945 = vmatprep.subr.mxu0 0.0
    %1946 = vmatpush1.msra.mxu0 0.0
    %1947 = vmatprep.subr.mxu0 0.0
    %1948 = vmatpush1.msra.mxu0 0.0
    %1949 = vmatprep.subr.mxu0 0.0
    %1950 = vmatpush1.msra.mxu0 0.0
    %1951 = vmatprep.subr.mxu0 0.0
    %1952 = vmatpush1.msra.mxu0 0.0
    %1953 = vmatprep.subr.mxu0 0.0
    %1954 = vmatpush1.msra.mxu0 0.0
    %1955 = vmatprep.subr.mxu0 0.0
    %1956 = vmatpush1.msra.mxu0 0.0
    %1957 = vmatprep.subr.mxu0 0.0
    %1958 = vmatpush1.msra.mxu0 0.0
    %1959 = vmatprep.subr.mxu0 0.0
    %1960 = vmatpush1.msra.mxu0 0.0
    %1961 = vmatprep.subr.mxu0 0.0
    %1962 = vmatpush1.msra.mxu0 0.0
    %1963 = vmatprep.subr.mxu0 0.0
    %1964 = vmatpush1.msra.mxu0 0.0
    %1965 = vmatprep.subr.mxu0 0.0
    %1966 = vmatpush1.msra.mxu0 0.0
    %1967 = vmatprep.subr.mxu0 0.0
    %1968 = vmatpush1.msra.mxu0 0.0
    %1969 = vmatprep.subr.mxu0 0.0
    %1970 = vmatpush1.msra.mxu0 0.0
    %1971 = vmatprep.subr.mxu0 0.0
    %1972 = vmatpush1.msra.mxu0 0.0
    %1973 = vmatprep.mubr.f32.mxu0 0.0
    %1974 = vmatmul.mubr.f32.gmra.mrb[0].mxu0 %v1831
    %v1975 = vpop.f32.mrb[0].mxu0
    %v1976 = vadd.f32 0.0, %v1975
    %v1977 = vpop.f32.mrb[0].mxu0
    %1978 = vdwg.mxu0
    %v1980 = vsel %vm369, %v1837, 0
    %1982 = vmatprep.subr.mxu0 %v105
    %1983 = vmatpush1.msra.mxu0 %v104
    %1984 = vmatprep.subr.mxu0 %v108
    %1985 = vmatpush1.msra.mxu0 %v107
    %1986 = vmatprep.subr.mxu0 0.0
    %1987 = vmatpush1.msra.mxu0 0.0
    %1988 = vmatprep.subr.mxu0 0.0
    %1989 = vmatpush1.msra.mxu0 0.0
    %1990 = vmatprep.subr.mxu0 0.0
    %1991 = vmatpush1.msra.mxu0 0.0
    %1992 = vmatprep.subr.mxu0 0.0
    %1993 = vmatpush1.msra.mxu0 0.0
    %1994 = vmatprep.subr.mxu0 0.0
    %1995 = vmatpush1.msra.mxu0 0.0
    %1996 = vmatprep.subr.mxu0 0.0
    %1997 = vmatpush1.msra.mxu0 0.0
    %1998 = vmatprep.subr.mxu0 0.0
    %1999 = vmatpush1.msra.mxu0 0.0
    %2000 = vmatprep.subr.mxu0 0.0
    %2001 = vmatpush1.msra.mxu0 0.0
    %2002 = vmatprep.subr.mxu0 0.0
    %2003 = vmatpush1.msra.mxu0 0.0
    %2004 = vmatprep.subr.mxu0 0.0
    %2005 = vmatpush1.msra.mxu0 0.0
    %2006 = vmatprep.subr.mxu0 0.0
    %2007 = vmatpush1.msra.mxu0 0.0
    %2008 = vmatprep.subr.mxu0 0.0
    %2009 = vmatpush1.msra.mxu0 0.0
    %2010 = vmatprep.subr.mxu0 0.0
    %2011 = vmatpush1.msra.mxu0 0.0
    %2012 = vmatprep.subr.mxu0 0.0
    %2013 = vmatpush1.msra.mxu0 0.0
    %2014 = vmatprep.subr.mxu0 0.0
    %2015 = vmatpush1.msra.mxu0 0.0
    %2016 = vmatprep.subr.mxu0 0.0
    %2017 = vmatpush1.msra.mxu0 0.0
    %2018 = vmatprep.subr.mxu0 0.0
    %2019 = vmatpush1.msra.mxu0 0.0
    %2020 = vmatprep.subr.mxu0 0.0
    %2021 = vmatpush1.msra.mxu0 0.0
    %2022 = vmatprep.subr.mxu0 0.0
    %2023 = vmatpush1.msra.mxu0 0.0
    %2024 = vmatprep.subr.mxu0 0.0
    %2025 = vmatpush1.msra.mxu0 0.0
    %2026 = vmatprep.subr.mxu0 0.0
    %2027 = vmatpush1.msra.mxu0 0.0
    %2028 = vmatprep.subr.mxu0 0.0
    %2029 = vmatpush1.msra.mxu0 0.0
    %2030 = vmatprep.subr.mxu0 0.0
    %2031 = vmatpush1.msra.mxu0 0.0
    %2032 = vmatprep.subr.mxu0 0.0
    %2033 = vmatpush1.msra.mxu0 0.0
    %2034 = vmatprep.subr.mxu0 0.0
    %2035 = vmatpush1.msra.mxu0 0.0
    %2036 = vmatprep.subr.mxu0 0.0
    %2037 = vmatpush1.msra.mxu0 0.0
    %2038 = vmatprep.subr.mxu0 0.0
    %2039 = vmatpush1.msra.mxu0 0.0
    %2040 = vmatprep.subr.mxu0 0.0
    %2041 = vmatpush1.msra.mxu0 0.0
    %2042 = vmatprep.subr.mxu0 0.0
    %2043 = vmatpush1.msra.mxu0 0.0
    %2044 = vmatprep.subr.mxu0 0.0
    %2045 = vmatpush1.msra.mxu0 0.0
    %2046 = vmatprep.mubr.f32.mxu0 0.0
    %2047 = vmatmul.mubr.f32.gmra.mrb[0].mxu0 %v1980
    %v2048 = vpop.f32.mrb[0].mxu0
    %v2049 = vadd.f32 %v1905, %v2048
    %v2050 = vpop.f32.mrb[0].mxu0
    %v2051 = vadd.f32 %v1907, %v2050
    %2052 = vdwg.mxu0
    %2053 = vmatprep.subr.mxu0 0.0
    %2054 = vmatpush1.msra.mxu0 %v106
    %2055 = vmatprep.subr.mxu0 0.0
    %2056 = vmatpush1.msra.mxu0 %v109
    %2057 = vmatprep.subr.mxu0 0.0
    %2058 = vmatpush1.msra.mxu0 0.0
    %2059 = vmatprep.subr.mxu0 0.0
    %2060 = vmatpush1.msra.mxu0 0.0
    %2061 = vmatprep.subr.mxu0 0.0
    %2062 = vmatpush1.msra.mxu0 0.0
    %2063 = vmatprep.subr.mxu0 0.0
    %2064 = vmatpush1.msra.mxu0 0.0
    %2065 = vmatprep.subr.mxu0 0.0
    %2066 = vmatpush1.msra.mxu0 0.0
    %2067 = vmatprep.subr.mxu0 0.0
    %2068 = vmatpush1.msra.mxu0 0.0
    %2069 = vmatprep.subr.mxu0 0.0
    %2070 = vmatpush1.msra.mxu0 0.0
    %2071 = vmatprep.subr.mxu0 0.0
    %2072 = vmatpush1.msra.mxu0 0.0
    %2073 = vmatprep.subr.mxu0 0.0
    %2074 = vmatpush1.msra.mxu0 0.0
    %2075 = vmatprep.subr.mxu0 0.0
    %2076 = vmatpush1.msra.mxu0 0.0
    %2077 = vmatprep.subr.mxu0 0.0
    %2078 = vmatpush1.msra.mxu0 0.0
    %2079 = vmatprep.subr.mxu0 0.0
    %2080 = vmatpush1.msra.mxu0 0.0
    %2081 = vmatprep.subr.mxu0 0.0
    %2082 = vmatpush1.msra.mxu0 0.0
    %2083 = vmatprep.subr.mxu0 0.0
    %2084 = vmatpush1.msra.mxu0 0.0
    %2085 = vmatprep.subr.mxu0 0.0
    %2086 = vmatpush1.msra.mxu0 0.0
    %2087 = vmatprep.subr.mxu0 0.0
    %2088 = vmatpush1.msra.mxu0 0.0
    %2089 = vmatprep.subr.mxu0 0.0
    %2090 = vmatpush1.msra.mxu0 0.0
    %2091 = vmatprep.subr.mxu0 0.0
    %2092 = vmatpush1.msra.mxu0 0.0
    %2093 = vmatprep.subr.mxu0 0.0
    %2094 = vmatpush1.msra.mxu0 0.0
    %2095 = vmatprep.subr.mxu0 0.0
    %2096 = vmatpush1.msra.mxu0 0.0
    %2097 = vmatprep.subr.mxu0 0.0
    %2098 = vmatpush1.msra.mxu0 0.0
    %2099 = vmatprep.subr.mxu0 0.0
    %2100 = vmatpush1.msra.mxu0 0.0
    %2101 = vmatprep.subr.mxu0 0.0
    %2102 = vmatpush1.msra.mxu0 0.0
    %2103 = vmatprep.subr.mxu0 0.0
    %2104 = vmatpush1.msra.mxu0 0.0
    %2105 = vmatprep.subr.mxu0 0.0
    %2106 = vmatpush1.msra.mxu0 0.0
    %2107 = vmatprep.subr.mxu0 0.0
    %2108 = vmatpush1.msra.mxu0 0.0
    %2109 = vmatprep.subr.mxu0 0.0
    %2110 = vmatpush1.msra.mxu0 0.0
    %2111 = vmatprep.subr.mxu0 0.0
    %2112 = vmatpush1.msra.mxu0 0.0
    %2113 = vmatprep.subr.mxu0 0.0
    %2114 = vmatpush1.msra.mxu0 0.0
    %2115 = vmatprep.subr.mxu0 0.0
    %2116 = vmatpush1.msra.mxu0 0.0
    %2117 = vmatprep.mubr.f32.mxu0 0.0
    %2118 = vmatmul.mubr.f32.gmra.mrb[0].mxu0 %v1980
    %v2119 = vpop.f32.mrb[0].mxu0
    %v2120 = vadd.f32 %v1976, %v2119
    %v2121 = vpop.f32.mrb[0].mxu0
    %2122 = vdwg.mxu0
    %v2123 = vadd.f32 %v2049, %v518
    %v2124 = vadd.f32 %v2051, %v522
    %v2125 = vadd.f32 %v2120, %v526
    %2126 = vmatprep.subr.mxu0 %v159
    %2127 = vmatpush1.msra.mxu0 %v158
    %2128 = vmatprep.subr.mxu0 %v162
    %2129 = vmatpush1.msra.mxu0 %v161
    %2130 = vmatprep.subr.mxu0 %v165
    %2131 = vmatpush1.msra.mxu0 %v164
    %2132 = vmatprep.subr.mxu0 %v168
    %2133 = vmatpush1.msra.mxu0 %v167
    %2134 = vmatprep.subr.mxu0 %v171
    %2135 = vmatpush1.msra.mxu0 %v170
    %2136 = vmatprep.subr.mxu0 %v174
    %2137 = vmatpush1.msra.mxu0 %v173
    %2138 = vmatprep.subr.mxu0 %v177
    %2139 = vmatpush1.msra.mxu0 %v176
    %2140 = vmatprep.subr.mxu0 %v180
    %2141 = vmatpush1.msra.mxu0 %v179
    %2142 = vmatprep.subr.mxu0 %v183
    %2143 = vmatpush1.msra.mxu0 %v182
    %2144 = vmatprep.subr.mxu0 %v186
    %2145 = vmatpush1.msra.mxu0 %v185
    %2146 = vmatprep.subr.mxu0 %v189
    %2147 = vmatpush1.msra.mxu0 %v188
    %2148 = vmatprep.subr.mxu0 %v192
    %2149 = vmatpush1.msra.mxu0 %v191
    %2150 = vmatprep.subr.mxu0 %v195
    %2151 = vmatpush1.msra.mxu0 %v194
    %2152 = vmatprep.subr.mxu0 %v198
    %2153 = vmatpush1.msra.mxu0 %v197
    %2154 = vmatprep.subr.mxu0 %v201
    %2155 = vmatpush1.msra.mxu0 %v200
    %2156 = vmatprep.subr.mxu0 %v204
    %2157 = vmatpush1.msra.mxu0 %v203
    %2158 = vmatprep.subr.mxu0 0.0
    %2159 = vmatpush1.msra.mxu0 0.0
    %2160 = vmatprep.subr.mxu0 0.0
    %2161 = vmatpush1.msra.mxu0 0.0
    %2162 = vmatprep.subr.mxu0 0.0
    %2163 = vmatpush1.msra.mxu0 0.0
    %2164 = vmatprep.subr.mxu0 0.0
    %2165 = vmatpush1.msra.mxu0 0.0
    %2166 = vmatprep.subr.mxu0 0.0
    %2167 = vmatpush1.msra.mxu0 0.0
    %2168 = vmatprep.subr.mxu0 0.0
    %2169 = vmatpush1.msra.mxu0 0.0
    %2170 = vmatprep.subr.mxu0 0.0
    %2171 = vmatpush1.msra.mxu0 0.0
    %2172 = vmatprep.subr.mxu0 0.0
    %2173 = vmatpush1.msra.mxu0 0.0
    %2174 = vmatprep.subr.mxu0 0.0
    %2175 = vmatpush1.msra.mxu0 0.0
    %2176 = vmatprep.subr.mxu0 0.0
    %2177 = vmatpush1.msra.mxu0 0.0
    %2178 = vmatprep.subr.mxu0 0.0
    %2179 = vmatpush1.msra.mxu0 0.0
    %2180 = vmatprep.subr.mxu0 0.0
    %2181 = vmatpush1.msra.mxu0 0.0
    %2182 = vmatprep.subr.mxu0 0.0
    %2183 = vmatpush1.msra.mxu0 0.0
    %2184 = vmatprep.subr.mxu0 0.0
    %2185 = vmatpush1.msra.mxu0 0.0
    %2186 = vmatprep.subr.mxu0 0.0
    %2187 = vmatpush1.msra.mxu0 0.0
    %2188 = vmatprep.subr.mxu0 0.0
    %2189 = vmatpush1.msra.mxu0 0.0
    %2190 = vmatprep.mubr.f32.mxu0 0.0
    %2191 = vmatmul.mubr.f32.gmra.mrb[0].mxu0 %v1763
    %v2192 = vpop.f32.mrb[0].mxu0
    %v2193 = vadd.f32 %v537, %v2192
    %v2194 = vpop.f32.mrb[0].mxu0
    %v2195 = vadd.f32 %v541, %v2194
    %2196 = vdwg.mxu0
    %2197 = vmatprep.subr.mxu0 0.0
    %2198 = vmatpush1.msra.mxu0 %v160
    %2199 = vmatprep.subr.mxu0 0.0
    %2200 = vmatpush1.msra.mxu0 %v163
    %2201 = vmatprep.subr.mxu0 0.0
    %2202 = vmatpush1.msra.mxu0 %v166
    %2203 = vmatprep.subr.mxu0 0.0
    %2204 = vmatpush1.msra.mxu0 %v169
    %2205 = vmatprep.subr.mxu0 0.0
    %2206 = vmatpush1.msra.mxu0 %v172
    %2207 = vmatprep.subr.mxu0 0.0
    %2208 = vmatpush1.msra.mxu0 %v175
    %2209 = vmatprep.subr.mxu0 0.0
    %2210 = vmatpush1.msra.mxu0 %v178
    %2211 = vmatprep.subr.mxu0 0.0
    %2212 = vmatpush1.msra.mxu0 %v181
    %2213 = vmatprep.subr.mxu0 0.0
    %2214 = vmatpush1.msra.mxu0 %v184
    %2215 = vmatprep.subr.mxu0 0.0
    %2216 = vmatpush1.msra.mxu0 %v187
    %2217 = vmatprep.subr.mxu0 0.0
    %2218 = vmatpush1.msra.mxu0 %v190
    %2219 = vmatprep.subr.mxu0 0.0
    %2220 = vmatpush1.msra.mxu0 %v193
    %2221 = vmatprep.subr.mxu0 0.0
    %2222 = vmatpush1.msra.mxu0 %v196
    %2223 = vmatprep.subr.mxu0 0.0
    %2224 = vmatpush1.msra.mxu0 %v199
    %2225 = vmatprep.subr.mxu0 0.0
    %2226 = vmatpush1.msra.mxu0 %v202
    %2227 = vmatprep.subr.mxu0 0.0
    %2228 = vmatpush1.msra.mxu0 %v205
    %2229 = vmatprep.subr.mxu0 0.0
    %2230 = vmatpush1.msra.mxu0 0.0
    %2231 = vmatprep.subr.mxu0 0.0
    %2232 = vmatpush1.msra.mxu0 0.0
    %2233 = vmatprep.subr.mxu0 0.0
    %2234 = vmatpush1.msra.mxu0 0.0
    %2235 = vmatprep.subr.mxu0 0.0
    %2236 = vmatpush1.msra.mxu0 0.0
    %2237 = vmatprep.subr.mxu0 0.0
    %2238 = vmatpush1.msra.mxu0 0.0
    %2239 = vmatprep.subr.mxu0 0.0
    %2240 = vmatpush1.msra.mxu0 0.0
    %2241 = vmatprep.subr.mxu0 0.0
    %2242 = vmatpush1.msra.mxu0 0.0
    %2243 = vmatprep.subr.mxu0 0.0
    %2244 = vmatpush1.msra.mxu0 0.0
    %2245 = vmatprep.subr.mxu0 0.0
    %2246 = vmatpush1.msra.mxu0 0.0
    %2247 = vmatprep.subr.mxu0 0.0
    %2248 = vmatpush1.msra.mxu0 0.0
    %2249 = vmatprep.subr.mxu0 0.0
    %2250 = vmatpush1.msra.mxu0 0.0
    %2251 = vmatprep.subr.mxu0 0.0
    %2252 = vmatpush1.msra.mxu0 0.0
    %2253 = vmatprep.subr.mxu0 0.0
    %2254 = vmatpush1.msra.mxu0 0.0
    %2255 = vmatprep.subr.mxu0 0.0
    %2256 = vmatpush1.msra.mxu0 0.0
    %2257 = vmatprep.subr.mxu0 0.0
    %2258 = vmatpush1.msra.mxu0 0.0
    %2259 = vmatprep.subr.mxu0 0.0
    %2260 = vmatpush1.msra.mxu0 0.0
    %2261 = vmatprep.mubr.f32.mxu0 0.0
    %2262 = vmatmul.mubr.f32.gmra.mrb[0].mxu0 %v1763
    %v2263 = vpop.f32.mrb[0].mxu0
    %v2264 = vadd.f32 %v545, %v2263
    %v2265 = vpop.f32.mrb[0].mxu0
    %2266 = vdwg.mxu0
    %v2267 = vadd.f32 %v2123, %v2193
    %v2268 = vxor.u32 %v2267, 2147483648
    %v2269 = vmul.f32 %v2268, 1.442695
    %v2270 = vpow.pop %v2269
    %v2271 = vadd.f32 %v2270, 1.0
    %v2272 = vrcp.pop %v2271
    %v2273 = vmul.f32 1.0, %v2272
    %v2274 = vadd.f32 %v2124, %v2195
    %v2275 = vxor.u32 %v2274, 2147483648
    %v2276 = vmul.f32 %v2275, 1.442695
    %v2277 = vpow.pop %v2276
    %v2278 = vadd.f32 %v2277, 1.0
    %v2279 = vrcp.pop %v2278
    %v2280 = vmul.f32 1.0, %v2279
    %v2281 = vmul.f32 %v2273, %v2264
    %v2282 = vadd.f32 %v2125, %v2281
    %v2283 = vtanh.pop %v2282
    %v2284 = vsub.f32 1.0, %v2280
    %v2285 = vmul.f32 %v2284, %v2283
    %v2286 = vmul.f32 %v2280, %v1763
    %v2287 = vadd.f32 %v2285, %v2286
    %2288 = vmatprep.subr.mxu0 0.0
    %2289 = vmatpush1.msra.mxu0 %v208
    %2290 = vmatprep.subr.mxu0 0.0
    %2291 = vmatpush1.msra.mxu0 %v209
    %2292 = vmatprep.subr.mxu0 0.0
    %2293 = vmatpush1.msra.mxu0 %v210
    %2294 = vmatprep.subr.mxu0 0.0
    %2295 = vmatpush1.msra.mxu0 %v211
    %2296 = vmatprep.subr.mxu0 0.0
    %2297 = vmatpush1.msra.mxu0 %v212
    %2298 = vmatprep.subr.mxu0 0.0
    %2299 = vmatpush1.msra.mxu0 %v213
    %2300 = vmatprep.subr.mxu0 0.0
    %2301 = vmatpush1.msra.mxu0 %v214
    %2302 = vmatprep.subr.mxu0 0.0
    %2303 = vmatpush1.msra.mxu0 %v215
    %2304 = vmatprep.subr.mxu0 0.0
    %2305 = vmatpush1.msra.mxu0 %v216
    %2306 = vmatprep.subr.mxu0 0.0
    %2307 = vmatpush1.msra.mxu0 %v217
    %2308 = vmatprep.subr.mxu0 0.0
    %2309 = vmatpush1.msra.mxu0 %v218
    %2310 = vmatprep.subr.mxu0 0.0
    %2311 = vmatpush1.msra.mxu0 %v219
    %2312 = vmatprep.subr.mxu0 0.0
    %2313 = vmatpush1.msra.mxu0 %v220
    %2314 = vmatprep.subr.mxu0 0.0
    %2315 = vmatpush1.msra.mxu0 %v221
    %2316 = vmatprep.subr.mxu0 0.0
    %2317 = vmatpush1.msra.mxu0 %v222
    %2318 = vmatprep.subr.mxu0 0.0
    %2319 = vmatpush1.msra.mxu0 %v223
    %2320 = vmatprep.subr.mxu0 0.0
    %2321 = vmatpush1.msra.mxu0 0.0
    %2322 = vmatprep.subr.mxu0 0.0
    %2323 = vmatpush1.msra.mxu0 0.0
    %2324 = vmatprep.subr.mxu0 0.0
    %2325 = vmatpush1.msra.mxu0 0.0
    %2326 = vmatprep.subr.mxu0 0.0
    %2327 = vmatpush1.msra.mxu0 0.0
    %2328 = vmatprep.subr.mxu0 0.0
    %2329 = vmatpush1.msra.mxu0 0.0
    %2330 = vmatprep.subr.mxu0 0.0
    %2331 = vmatpush1.msra.mxu0 0.0
    %2332 = vmatprep.subr.mxu0 0.0
    %2333 = vmatpush1.msra.mxu0 0.0
    %2334 = vmatprep.subr.mxu0 0.0
    %2335 = vmatpush1.msra.mxu0 0.0
    %2336 = vmatprep.subr.mxu0 0.0
    %2337 = vmatpush1.msra.mxu0 0.0
    %2338 = vmatprep.subr.mxu0 0.0
    %2339 = vmatpush1.msra.mxu0 0.0
    %2340 = vmatprep.subr.mxu0 0.0
    %2341 = vmatpush1.msra.mxu0 0.0
    %2342 = vmatprep.subr.mxu0 0.0
    %2343 = vmatpush1.msra.mxu0 0.0
    %2344 = vmatprep.subr.mxu0 0.0
    %2345 = vmatpush1.msra.mxu0 0.0
    %2346 = vmatprep.subr.mxu0 0.0
    %2347 = vmatpush1.msra.mxu0 0.0
    %2348 = vmatprep.subr.mxu0 0.0
    %2349 = vmatpush1.msra.mxu0 0.0
    %2350 = vmatprep.subr.mxu0 0.0
    %2351 = vmatpush1.msra.mxu0 0.0
    %2352 = vmatprep.mubr.f32.mxu0 0.0
    %2353 = vmatmul.mubr.f32.gmra.mrb[0].mxu0 %v2287
    %v2354 = vpop.f32.mrb[0].mxu0
    %v2355 = vadd.f32 %v715, %v2354
    %v2356 = vpop.f32.mrb[0].mxu0
    %2357 = vdwg.mxu0
    %s2358 = scalar_lea.vmem [#allocation13], 24
    %2359 = vst [vmem:[%s2358] sm:$0xff] %v2355
    %s2360 = scalar_lea.vmem [#allocation4], 32
    %v2361 = vld [vmem:[%s2360] sm:$0xff]
    %2362 = vmatprep.subr.mxu0 %v111
    %2363 = vmatpush1.msra.mxu0 %v110
    %2364 = vmatprep.subr.mxu0 %v114
    %2365 = vmatpush1.msra.mxu0 %v113
    %2366 = vmatprep.subr.mxu0 %v117
    %2367 = vmatpush1.msra.mxu0 %v116
    %2368 = vmatprep.subr.mxu0 %v120
    %2369 = vmatpush1.msra.mxu0 %v119
    %2370 = vmatprep.subr.mxu0 %v123
    %2371 = vmatpush1.msra.mxu0 %v122
    %2372 = vmatprep.subr.mxu0 %v126
    %2373 = vmatpush1.msra.mxu0 %v125
    %2374 = vmatprep.subr.mxu0 %v129
    %2375 = vmatpush1.msra.mxu0 %v128
    %2376 = vmatprep.subr.mxu0 %v132
    %2377 = vmatpush1.msra.mxu0 %v131
    %2378 = vmatprep.subr.mxu0 %v135
    %2379 = vmatpush1.msra.mxu0 %v134
    %2380 = vmatprep.subr.mxu0 %v138
    %2381 = vmatpush1.msra.mxu0 %v137
    %2382 = vmatprep.subr.mxu0 %v141
    %2383 = vmatpush1.msra.mxu0 %v140
    %2384 = vmatprep.subr.mxu0 %v144
    %2385 = vmatpush1.msra.mxu0 %v143
    %2386 = vmatprep.subr.mxu0 %v147
    %2387 = vmatpush1.msra.mxu0 %v146
    %2388 = vmatprep.subr.mxu0 %v150
    %2389 = vmatpush1.msra.mxu0 %v149
    %2390 = vmatprep.subr.mxu0 %v153
    %2391 = vmatpush1.msra.mxu0 %v152
    %2392 = vmatprep.subr.mxu0 %v156
    %2393 = vmatpush1.msra.mxu0 %v155
    %2394 = vmatprep.subr.mxu0 0.0
    %2395 = vmatpush1.msra.mxu0 0.0
    %2396 = vmatprep.subr.mxu0 0.0
    %2397 = vmatpush1.msra.mxu0 0.0
    %2398 = vmatprep.subr.mxu0 0.0
    %2399 = vmatpush1.msra.mxu0 0.0
    %2400 = vmatprep.subr.mxu0 0.0
    %2401 = vmatpush1.msra.mxu0 0.0
    %2402 = vmatprep.subr.mxu0 0.0
    %2403 = vmatpush1.msra.mxu0 0.0
    %2404 = vmatprep.subr.mxu0 0.0
    %2405 = vmatpush1.msra.mxu0 0.0
    %2406 = vmatprep.subr.mxu0 0.0
    %2407 = vmatpush1.msra.mxu0 0.0
    %2408 = vmatprep.subr.mxu0 0.0
    %2409 = vmatpush1.msra.mxu0 0.0
    %2410 = vmatprep.subr.mxu0 0.0
    %2411 = vmatpush1.msra.mxu0 0.0
    %2412 = vmatprep.subr.mxu0 0.0
    %2413 = vmatpush1.msra.mxu0 0.0
    %2414 = vmatprep.subr.mxu0 0.0
    %2415 = vmatpush1.msra.mxu0 0.0
    %2416 = vmatprep.subr.mxu0 0.0
    %2417 = vmatpush1.msra.mxu0 0.0
    %2418 = vmatprep.subr.mxu0 0.0
    %2419 = vmatpush1.msra.mxu0 0.0
    %2420 = vmatprep.subr.mxu0 0.0
    %2421 = vmatpush1.msra.mxu0 0.0
    %2422 = vmatprep.subr.mxu0 0.0
    %2423 = vmatpush1.msra.mxu0 0.0
    %2424 = vmatprep.subr.mxu0 0.0
    %2425 = vmatpush1.msra.mxu0 0.0
    %2426 = vmatprep.mubr.f32.mxu0 0.0
    %2427 = vmatmul.mubr.f32.gmra.mrb[0].mxu0 %v2355
    %v2428 = vpop.f32.mrb[0].mxu0
    %v2429 = vadd.f32 0.0, %v2428
    %v2430 = vpop.f32.mrb[0].mxu0
    %v2431 = vadd.f32 0.0, %v2430
    %2432 = vdwg.mxu0
    %2433 = vmatprep.subr.mxu0 0.0
    %2434 = vmatpush1.msra.mxu0 %v112
    %2435 = vmatprep.subr.mxu0 0.0
    %2436 = vmatpush1.msra.mxu0 %v115
    %2437 = vmatprep.subr.mxu0 0.0
    %2438 = vmatpush1.msra.mxu0 %v118
    %2439 = vmatprep.subr.mxu0 0.0
    %2440 = vmatpush1.msra.mxu0 %v121
    %2441 = vmatprep.subr.mxu0 0.0
    %2442 = vmatpush1.msra.mxu0 %v124
    %2443 = vmatprep.subr.mxu0 0.0
    %2444 = vmatpush1.msra.mxu0 %v127
    %2445 = vmatprep.subr.mxu0 0.0
    %2446 = vmatpush1.msra.mxu0 %v130
    %2447 = vmatprep.subr.mxu0 0.0
    %2448 = vmatpush1.msra.mxu0 %v133
    %2449 = vmatprep.subr.mxu0 0.0
    %2450 = vmatpush1.msra.mxu0 %v136
    %2451 = vmatprep.subr.mxu0 0.0
    %2452 = vmatpush1.msra.mxu0 %v139
    %2453 = vmatprep.subr.mxu0 0.0
    %2454 = vmatpush1.msra.mxu0 %v142
    %2455 = vmatprep.subr.mxu0 0.0
    %2456 = vmatpush1.msra.mxu0 %v145
    %2457 = vmatprep.subr.mxu0 0.0
    %2458 = vmatpush1.msra.mxu0 %v148
    %2459 = vmatprep.subr.mxu0 0.0
    %2460 = vmatpush1.msra.mxu0 %v151
    %2461 = vmatprep.subr.mxu0 0.0
    %2462 = vmatpush1.msra.mxu0 %v154
    %2463 = vmatprep.subr.mxu0 0.0
    %2464 = vmatpush1.msra.mxu0 %v157
    %2465 = vmatprep.subr.mxu0 0.0
    %2466 = vmatpush1.msra.mxu0 0.0
    %2467 = vmatprep.subr.mxu0 0.0
    %2468 = vmatpush1.msra.mxu0 0.0
    %2469 = vmatprep.subr.mxu0 0.0
    %2470 = vmatpush1.msra.mxu0 0.0
    %2471 = vmatprep.subr.mxu0 0.0
    %2472 = vmatpush1.msra.mxu0 0.0
    %2473 = vmatprep.subr.mxu0 0.0
    %2474 = vmatpush1.msra.mxu0 0.0
    %2475 = vmatprep.subr.mxu0 0.0
    %2476 = vmatpush1.msra.mxu0 0.0
    %2477 = vmatprep.subr.mxu0 0.0
    %2478 = vmatpush1.msra.mxu0 0.0
    %2479 = vmatprep.subr.mxu0 0.0
    %2480 = vmatpush1.msra.mxu0 0.0
    %2481 = vmatprep.subr.mxu0 0.0
    %2482 = vmatpush1.msra.mxu0 0.0
    %2483 = vmatprep.subr.mxu0 0.0
    %2484 = vmatpush1.msra.mxu0 0.0
    %2485 = vmatprep.subr.mxu0 0.0
    %2486 = vmatpush1.msra.mxu0 0.0
    %2487 = vmatprep.subr.mxu0 0.0
    %2488 = vmatpush1.msra.mxu0 0.0
    %2489 = vmatprep.subr.mxu0 0.0
    %2490 = vmatpush1.msra.mxu0 0.0
    %2491 = vmatprep.subr.mxu0 0.0
    %2492 = vmatpush1.msra.mxu0 0.0
    %2493 = vmatprep.subr.mxu0 0.0
    %2494 = vmatpush1.msra.mxu0 0.0
    %2495 = vmatprep.subr.mxu0 0.0
    %2496 = vmatpush1.msra.mxu0 0.0
    %2497 = vmatprep.mubr.f32.mxu0 0.0
    %2498 = vmatmul.mubr.f32.gmra.mrb[0].mxu0 %v2355
    %v2499 = vpop.f32.mrb[0].mxu0
    %v2500 = vadd.f32 0.0, %v2499
    %v2501 = vpop.f32.mrb[0].mxu0
    %2502 = vdwg.mxu0
    %v2504 = vsel %vm369, %v2361, 0
    %2506 = vmatprep.subr.mxu0 %v105
    %2507 = vmatpush1.msra.mxu0 %v104
    %2508 = vmatprep.subr.mxu0 %v108
    %2509 = vmatpush1.msra.mxu0 %v107
    %2510 = vmatprep.subr.mxu0 0.0
    %2511 = vmatpush1.msra.mxu0 0.0
    %2512 = vmatprep.subr.mxu0 0.0
    %2513 = vmatpush1.msra.mxu0 0.0
    %2514 = vmatprep.subr.mxu0 0.0
    %2515 = vmatpush1.msra.mxu0 0.0
    %2516 = vmatprep.subr.mxu0 0.0
    %2517 = vmatpush1.msra.mxu0 0.0
    %2518 = vmatprep.subr.mxu0 0.0
    %2519 = vmatpush1.msra.mxu0 0.0
    %2520 = vmatprep.subr.mxu0 0.0
    %2521 = vmatpush1.msra.mxu0 0.0
    %2522 = vmatprep.subr.mxu0 0.0
    %2523 = vmatpush1.msra.mxu0 0.0
    %2524 = vmatprep.subr.mxu0 0.0
    %2525 = vmatpush1.msra.mxu0 0.0
    %2526 = vmatprep.subr.mxu0 0.0
    %2527 = vmatpush1.msra.mxu0 0.0
    %2528 = vmatprep.subr.mxu0 0.0
    %2529 = vmatpush1.msra.mxu0 0.0
    %2530 = vmatprep.subr.mxu0 0.0
    %2531 = vmatpush1.msra.mxu0 0.0
    %2532 = vmatprep.subr.mxu0 0.0
    %2533 = vmatpush1.msra.mxu0 0.0
    %2534 = vmatprep.subr.mxu0 0.0
    %2535 = vmatpush1.msra.mxu0 0.0
    %2536 = vmatprep.subr.mxu0 0.0
    %2537 = vmatpush1.msra.mxu0 0.0
    %2538 = vmatprep.subr.mxu0 0.0
    %2539 = vmatpush1.msra.mxu0 0.0
    %2540 = vmatprep.subr.mxu0 0.0
    %2541 = vmatpush1.msra.mxu0 0.0
    %2542 = vmatprep.subr.mxu0 0.0
    %2543 = vmatpush1.msra.mxu0 0.0
    %2544 = vmatprep.subr.mxu0 0.0
    %2545 = vmatpush1.msra.mxu0 0.0
    %2546 = vmatprep.subr.mxu0 0.0
    %2547 = vmatpush1.msra.mxu0 0.0
    %2548 = vmatprep.subr.mxu0 0.0
    %2549 = vmatpush1.msra.mxu0 0.0
    %2550 = vmatprep.subr.mxu0 0.0
    %2551 = vmatpush1.msra.mxu0 0.0
    %2552 = vmatprep.subr.mxu0 0.0
    %2553 = vmatpush1.msra.mxu0 0.0
    %2554 = vmatprep.subr.mxu0 0.0
    %2555 = vmatpush1.msra.mxu0 0.0
    %2556 = vmatprep.subr.mxu0 0.0
    %2557 = vmatpush1.msra.mxu0 0.0
    %2558 = vmatprep.subr.mxu0 0.0
    %2559 = vmatpush1.msra.mxu0 0.0
    %2560 = vmatprep.subr.mxu0 0.0
    %2561 = vmatpush1.msra.mxu0 0.0
    %2562 = vmatprep.subr.mxu0 0.0
    %2563 = vmatpush1.msra.mxu0 0.0
    %2564 = vmatprep.subr.mxu0 0.0
    %2565 = vmatpush1.msra.mxu0 0.0
    %2566 = vmatprep.subr.mxu0 0.0
    %2567 = vmatpush1.msra.mxu0 0.0
    %2568 = vmatprep.subr.mxu0 0.0
    %2569 = vmatpush1.msra.mxu0 0.0
    %2570 = vmatprep.mubr.f32.mxu0 0.0
    %2571 = vmatmul.mubr.f32.gmra.mrb[0].mxu0 %v2504
    %v2572 = vpop.f32.mrb[0].mxu0
    %v2573 = vadd.f32 %v2429, %v2572
    %v2574 = vpop.f32.mrb[0].mxu0
    %v2575 = vadd.f32 %v2431, %v2574
    %2576 = vdwg.mxu0
    %2577 = vmatprep.subr.mxu0 0.0
    %2578 = vmatpush1.msra.mxu0 %v106
    %2579 = vmatprep.subr.mxu0 0.0
    %2580 = vmatpush1.msra.mxu0 %v109
    %2581 = vmatprep.subr.mxu0 0.0
    %2582 = vmatpush1.msra.mxu0 0.0
    %2583 = vmatprep.subr.mxu0 0.0
    %2584 = vmatpush1.msra.mxu0 0.0
    %2585 = vmatprep.subr.mxu0 0.0
    %2586 = vmatpush1.msra.mxu0 0.0
    %2587 = vmatprep.subr.mxu0 0.0
    %2588 = vmatpush1.msra.mxu0 0.0
    %2589 = vmatprep.subr.mxu0 0.0
    %2590 = vmatpush1.msra.mxu0 0.0
    %2591 = vmatprep.subr.mxu0 0.0
    %2592 = vmatpush1.msra.mxu0 0.0
    %2593 = vmatprep.subr.mxu0 0.0
    %2594 = vmatpush1.msra.mxu0 0.0
    %2595 = vmatprep.subr.mxu0 0.0
    %2596 = vmatpush1.msra.mxu0 0.0
    %2597 = vmatprep.subr.mxu0 0.0
    %2598 = vmatpush1.msra.mxu0 0.0
    %2599 = vmatprep.subr.mxu0 0.0
    %2600 = vmatpush1.msra.mxu0 0.0
    %2601 = vmatprep.subr.mxu0 0.0
    %2602 = vmatpush1.msra.mxu0 0.0
    %2603 = vmatprep.subr.mxu0 0.0
    %2604 = vmatpush1.msra.mxu0 0.0
    %2605 = vmatprep.subr.mxu0 0.0
    %2606 = vmatpush1.msra.mxu0 0.0
    %2607 = vmatprep.subr.mxu0 0.0
    %2608 = vmatpush1.msra.mxu0 0.0
    %2609 = vmatprep.subr.mxu0 0.0
    %2610 = vmatpush1.msra.mxu0 0.0
    %2611 = vmatprep.subr.mxu0 0.0
    %2612 = vmatpush1.msra.mxu0 0.0
    %2613 = vmatprep.subr.mxu0 0.0
    %2614 = vmatpush1.msra.mxu0 0.0
    %2615 = vmatprep.subr.mxu0 0.0
    %2616 = vmatpush1.msra.mxu0 0.0
    %2617 = vmatprep.subr.mxu0 0.0
    %2618 = vmatpush1.msra.mxu0 0.0
    %2619 = vmatprep.subr.mxu0 0.0
    %2620 = vmatpush1.msra.mxu0 0.0
    %2621 = vmatprep.subr.mxu0 0.0
    %2622 = vmatpush1.msra.mxu0 0.0
    %2623 = vmatprep.subr.mxu0 0.0
    %2624 = vmatpush1.msra.mxu0 0.0
    %2625 = vmatprep.subr.mxu0 0.0
    %2626 = vmatpush1.msra.mxu0 0.0
    %2627 = vmatprep.subr.mxu0 0.0
    %2628 = vmatpush1.msra.mxu0 0.0
    %2629 = vmatprep.subr.mxu0 0.0
    %2630 = vmatpush1.msra.mxu0 0.0
    %2631 = vmatprep.subr.mxu0 0.0
    %2632 = vmatpush1.msra.mxu0 0.0
    %2633 = vmatprep.subr.mxu0 0.0
    %2634 = vmatpush1.msra.mxu0 0.0
    %2635 = vmatprep.subr.mxu0 0.0
    %2636 = vmatpush1.msra.mxu0 0.0
    %2637 = vmatprep.subr.mxu0 0.0
    %2638 = vmatpush1.msra.mxu0 0.0
    %2639 = vmatprep.subr.mxu0 0.0
    %2640 = vmatpush1.msra.mxu0 0.0
    %2641 = vmatprep.mubr.f32.mxu0 0.0
    %2642 = vmatmul.mubr.f32.gmra.mrb[0].mxu0 %v2504
    %v2643 = vpop.f32.mrb[0].mxu0
    %v2644 = vadd.f32 %v2500, %v2643
    %v2645 = vpop.f32.mrb[0].mxu0
    %2646 = vdwg.mxu0
    %v2647 = vadd.f32 %v2573, %v518
    %v2648 = vadd.f32 %v2575, %v522
    %v2649 = vadd.f32 %v2644, %v526
    %2650 = vmatprep.subr.mxu0 %v159
    %2651 = vmatpush1.msra.mxu0 %v158
    %2652 = vmatprep.subr.mxu0 %v162
    %2653 = vmatpush1.msra.mxu0 %v161
    %2654 = vmatprep.subr.mxu0 %v165
    %2655 = vmatpush1.msra.mxu0 %v164
    %2656 = vmatprep.subr.mxu0 %v168
    %2657 = vmatpush1.msra.mxu0 %v167
    %2658 = vmatprep.subr.mxu0 %v171
    %2659 = vmatpush1.msra.mxu0 %v170
    %2660 = vmatprep.subr.mxu0 %v174
    %2661 = vmatpush1.msra.mxu0 %v173
    %2662 = vmatprep.subr.mxu0 %v177
    %2663 = vmatpush1.msra.mxu0 %v176
    %2664 = vmatprep.subr.mxu0 %v180
    %2665 = vmatpush1.msra.mxu0 %v179
    %2666 = vmatprep.subr.mxu0 %v183
    %2667 = vmatpush1.msra.mxu0 %v182
    %2668 = vmatprep.subr.mxu0 %v186
    %2669 = vmatpush1.msra.mxu0 %v185
    %2670 = vmatprep.subr.mxu0 %v189
    %2671 = vmatpush1.msra.mxu0 %v188
    %2672 = vmatprep.subr.mxu0 %v192
    %2673 = vmatpush1.msra.mxu0 %v191
    %2674 = vmatprep.subr.mxu0 %v195
    %2675 = vmatpush1.msra.mxu0 %v194
    %2676 = vmatprep.subr.mxu0 %v198
    %2677 = vmatpush1.msra.mxu0 %v197
    %2678 = vmatprep.subr.mxu0 %v201
    %2679 = vmatpush1.msra.mxu0 %v200
    %2680 = vmatprep.subr.mxu0 %v204
    %2681 = vmatpush1.msra.mxu0 %v203
    %2682 = vmatprep.subr.mxu0 0.0
    %2683 = vmatpush1.msra.mxu0 0.0
    %2684 = vmatprep.subr.mxu0 0.0
    %2685 = vmatpush1.msra.mxu0 0.0
    %2686 = vmatprep.subr.mxu0 0.0
    %2687 = vmatpush1.msra.mxu0 0.0
    %2688 = vmatprep.subr.mxu0 0.0
    %2689 = vmatpush1.msra.mxu0 0.0
    %2690 = vmatprep.subr.mxu0 0.0
    %2691 = vmatpush1.msra.mxu0 0.0
    %2692 = vmatprep.subr.mxu0 0.0
    %2693 = vmatpush1.msra.mxu0 0.0
    %2694 = vmatprep.subr.mxu0 0.0
    %2695 = vmatpush1.msra.mxu0 0.0
    %2696 = vmatprep.subr.mxu0 0.0
    %2697 = vmatpush1.msra.mxu0 0.0
    %2698 = vmatprep.subr.mxu0 0.0
    %2699 = vmatpush1.msra.mxu0 0.0
    %2700 = vmatprep.subr.mxu0 0.0
    %2701 = vmatpush1.msra.mxu0 0.0
    %2702 = vmatprep.subr.mxu0 0.0
    %2703 = vmatpush1.msra.mxu0 0.0
    %2704 = vmatprep.subr.mxu0 0.0
    %2705 = vmatpush1.msra.mxu0 0.0
    %2706 = vmatprep.subr.mxu0 0.0
    %2707 = vmatpush1.msra.mxu0 0.0
    %2708 = vmatprep.subr.mxu0 0.0
    %2709 = vmatpush1.msra.mxu0 0.0
    %2710 = vmatprep.subr.mxu0 0.0
    %2711 = vmatpush1.msra.mxu0 0.0
    %2712 = vmatprep.subr.mxu0 0.0
    %2713 = vmatpush1.msra.mxu0 0.0
    %2714 = vmatprep.mubr.f32.mxu0 0.0
    %2715 = vmatmul.mubr.f32.gmra.mrb[0].mxu0 %v2287
    %v2716 = vpop.f32.mrb[0].mxu0
    %v2717 = vadd.f32 %v537, %v2716
    %v2718 = vpop.f32.mrb[0].mxu0
    %v2719 = vadd.f32 %v541, %v2718
    %2720 = vdwg.mxu0
    %2721 = vmatprep.subr.mxu0 0.0
    %2722 = vmatpush1.msra.mxu0 %v160
    %2723 = vmatprep.subr.mxu0 0.0
    %2724 = vmatpush1.msra.mxu0 %v163
    %2725 = vmatprep.subr.mxu0 0.0
    %2726 = vmatpush1.msra.mxu0 %v166
    %2727 = vmatprep.subr.mxu0 0.0
    %2728 = vmatpush1.msra.mxu0 %v169
    %2729 = vmatprep.subr.mxu0 0.0
    %2730 = vmatpush1.msra.mxu0 %v172
    %2731 = vmatprep.subr.mxu0 0.0
    %2732 = vmatpush1.msra.mxu0 %v175
    %2733 = vmatprep.subr.mxu0 0.0
    %2734 = vmatpush1.msra.mxu0 %v178
    %2735 = vmatprep.subr.mxu0 0.0
    %2736 = vmatpush1.msra.mxu0 %v181
    %2737 = vmatprep.subr.mxu0 0.0
    %2738 = vmatpush1.msra.mxu0 %v184
    %2739 = vmatprep.subr.mxu0 0.0
    %2740 = vmatpush1.msra.mxu0 %v187
    %2741 = vmatprep.subr.mxu0 0.0
    %2742 = vmatpush1.msra.mxu0 %v190
    %2743 = vmatprep.subr.mxu0 0.0
    %2744 = vmatpush1.msra.mxu0 %v193
    %2745 = vmatprep.subr.mxu0 0.0
    %2746 = vmatpush1.msra.mxu0 %v196
    %2747 = vmatprep.subr.mxu0 0.0
    %2748 = vmatpush1.msra.mxu0 %v199
    %2749 = vmatprep.subr.mxu0 0.0
    %2750 = vmatpush1.msra.mxu0 %v202
    %2751 = vmatprep.subr.mxu0 0.0
    %2752 = vmatpush1.msra.mxu0 %v205
    %2753 = vmatprep.subr.mxu0 0.0
    %2754 = vmatpush1.msra.mxu0 0.0
    %2755 = vmatprep.subr.mxu0 0.0
    %2756 = vmatpush1.msra.mxu0 0.0
    %2757 = vmatprep.subr.mxu0 0.0
    %2758 = vmatpush1.msra.mxu0 0.0
    %2759 = vmatprep.subr.mxu0 0.0
    %2760 = vmatpush1.msra.mxu0 0.0
    %2761 = vmatprep.subr.mxu0 0.0
    %2762 = vmatpush1.msra.mxu0 0.0
    %2763 = vmatprep.subr.mxu0 0.0
    %2764 = vmatpush1.msra.mxu0 0.0
    %2765 = vmatprep.subr.mxu0 0.0
    %2766 = vmatpush1.msra.mxu0 0.0
    %2767 = vmatprep.subr.mxu0 0.0
    %2768 = vmatpush1.msra.mxu0 0.0
    %2769 = vmatprep.subr.mxu0 0.0
    %2770 = vmatpush1.msra.mxu0 0.0
    %2771 = vmatprep.subr.mxu0 0.0
    %2772 = vmatpush1.msra.mxu0 0.0
    %2773 = vmatprep.subr.mxu0 0.0
    %2774 = vmatpush1.msra.mxu0 0.0
    %2775 = vmatprep.subr.mxu0 0.0
    %2776 = vmatpush1.msra.mxu0 0.0
    %2777 = vmatprep.subr.mxu0 0.0
    %2778 = vmatpush1.msra.mxu0 0.0
    %2779 = vmatprep.subr.mxu0 0.0
    %2780 = vmatpush1.msra.mxu0 0.0
    %2781 = vmatprep.subr.mxu0 0.0
    %2782 = vmatpush1.msra.mxu0 0.0
    %2783 = vmatprep.subr.mxu0 0.0
    %2784 = vmatpush1.msra.mxu0 0.0
    %2785 = vmatprep.mubr.f32.mxu0 0.0
    %2786 = vmatmul.mubr.f32.gmra.mrb[0].mxu0 %v2287
    %v2787 = vpop.f32.mrb[0].mxu0
    %v2788 = vadd.f32 %v545, %v2787
    %v2789 = vpop.f32.mrb[0].mxu0
    %2790 = vdwg.mxu0
    %v2791 = vadd.f32 %v2647, %v2717
    %v2792 = vxor.u32 %v2791, 2147483648
    %v2793 = vmul.f32 %v2792, 1.442695
    %v2794 = vpow.pop %v2793
    %v2795 = vadd.f32 %v2794, 1.0
    %v2796 = vrcp.pop %v2795
    %v2797 = vmul.f32 1.0, %v2796
    %v2798 = vadd.f32 %v2648, %v2719
    %v2799 = vxor.u32 %v2798, 2147483648
    %v2800 = vmul.f32 %v2799, 1.442695
    %v2801 = vpow.pop %v2800
    %v2802 = vadd.f32 %v2801, 1.0
    %v2803 = vrcp.pop %v2802
    %v2804 = vmul.f32 1.0, %v2803
    %v2805 = vmul.f32 %v2797, %v2788
    %v2806 = vadd.f32 %v2649, %v2805
    %v2807 = vtanh.pop %v2806
    %v2808 = vsub.f32 1.0, %v2804
    %v2809 = vmul.f32 %v2808, %v2807
    %v2810 = vmul.f32 %v2804, %v2287
    %v2811 = vadd.f32 %v2809, %v2810
    %2812 = vmatprep.subr.mxu0 0.0
    %2813 = vmatpush1.msra.mxu0 %v208
    %2814 = vmatprep.subr.mxu0 0.0
    %2815 = vmatpush1.msra.mxu0 %v209
    %2816 = vmatprep.subr.mxu0 0.0
    %2817 = vmatpush1.msra.mxu0 %v210
    %2818 = vmatprep.subr.mxu0 0.0
    %2819 = vmatpush1.msra.mxu0 %v211
    %2820 = vmatprep.subr.mxu0 0.0
    %2821 = vmatpush1.msra.mxu0 %v212
    %2822 = vmatprep.subr.mxu0 0.0
    %2823 = vmatpush1.msra.mxu0 %v213
    %2824 = vmatprep.subr.mxu0 0.0
    %2825 = vmatpush1.msra.mxu0 %v214
    %2826 = vmatprep.subr.mxu0 0.0
    %2827 = vmatpush1.msra.mxu0 %v215
    %2828 = vmatprep.subr.mxu0 0.0
    %2829 = vmatpush1.msra.mxu0 %v216
    %2830 = vmatprep.subr.mxu0 0.0
    %2831 = vmatpush1.msra.mxu0 %v217
    %2832 = vmatprep.subr.mxu0 0.0
    %2833 = vmatpush1.msra.mxu0 %v218
    %2834 = vmatprep.subr.mxu0 0.0
    %2835 = vmatpush1.msra.mxu0 %v219
    %2836 = vmatprep.subr.mxu0 0.0
    %2837 = vmatpush1.msra.mxu0 %v220
    %2838 = vmatprep.subr.mxu0 0.0
    %2839 = vmatpush1.msra.mxu0 %v221
    %2840 = vmatprep.subr.mxu0 0.0
    %2841 = vmatpush1.msra.mxu0 %v222
    %2842 = vmatprep.subr.mxu0 0.0
    %2843 = vmatpush1.msra.mxu0 %v223
    %2844 = vmatprep.subr.mxu0 0.0
    %2845 = vmatpush1.msra.mxu0 0.0
    %2846 = vmatprep.subr.mxu0 0.0
    %2847 = vmatpush1.msra.mxu0 0.0
    %2848 = vmatprep.subr.mxu0 0.0
    %2849 = vmatpush1.msra.mxu0 0.0
    %2850 = vmatprep.subr.mxu0 0.0
    %2851 = vmatpush1.msra.mxu0 0.0
    %2852 = vmatprep.subr.mxu0 0.0
    %2853 = vmatpush1.msra.mxu0 0.0
    %2854 = vmatprep.subr.mxu0 0.0
    %2855 = vmatpush1.msra.mxu0 0.0
    %2856 = vmatprep.subr.mxu0 0.0
    %2857 = vmatpush1.msra.mxu0 0.0
    %2858 = vmatprep.subr.mxu0 0.0
    %2859 = vmatpush1.msra.mxu0 0.0
    %2860 = vmatprep.subr.mxu0 0.0
    %2861 = vmatpush1.msra.mxu0 0.0
    %2862 = vmatprep.subr.mxu0 0.0
    %2863 = vmatpush1.msra.mxu0 0.0
    %2864 = vmatprep.subr.mxu0 0.0
    %2865 = vmatpush1.msra.mxu0 0.0
    %2866 = vmatprep.subr.mxu0 0.0
    %2867 = vmatpush1.msra.mxu0 0.0
    %2868 = vmatprep.subr.mxu0 0.0
    %2869 = vmatpush1.msra.mxu0 0.0
    %2870 = vmatprep.subr.mxu0 0.0
    %2871 = vmatpush1.msra.mxu0 0.0
    %2872 = vmatprep.subr.mxu0 0.0
    %2873 = vmatpush1.msra.mxu0 0.0
    %2874 = vmatprep.subr.mxu0 0.0
    %2875 = vmatpush1.msra.mxu0 0.0
    %2876 = vmatprep.mubr.f32.mxu0 0.0
    %2877 = vmatmul.mubr.f32.gmra.mrb[0].mxu0 %v2811
    %v2878 = vpop.f32.mrb[0].mxu0
    %v2879 = vadd.f32 %v715, %v2878
    %v2880 = vpop.f32.mrb[0].mxu0
    %2881 = vdwg.mxu0
    %s2882 = scalar_lea.vmem [#allocation13], 32
    %2883 = vst [vmem:[%s2882] sm:$0xff] %v2879
    %s2884 = scalar_lea.vmem [#allocation4], 40
    %v2885 = vld [vmem:[%s2884] sm:$0xff]
    %2886 = vmatprep.subr.mxu0 %v111
    %2887 = vmatpush1.msra.mxu0 %v110
    %2888 = vmatprep.subr.mxu0 %v114
    %2889 = vmatpush1.msra.mxu0 %v113
    %2890 = vmatprep.subr.mxu0 %v117
    %2891 = vmatpush1.msra.mxu0 %v116
    %2892 = vmatprep.subr.mxu0 %v120
    %2893 = vmatpush1.msra.mxu0 %v119
    %2894 = vmatprep.subr.mxu0 %v123
    %2895 = vmatpush1.msra.mxu0 %v122
    %2896 = vmatprep.subr.mxu0 %v126
    %2897 = vmatpush1.msra.mxu0 %v125
    %2898 = vmatprep.subr.mxu0 %v129
    %2899 = vmatpush1.msra.mxu0 %v128
    %2900 = vmatprep.subr.mxu0 %v132
    %2901 = vmatpush1.msra.mxu0 %v131
    %2902 = vmatprep.subr.mxu0 %v135
    %2903 = vmatpush1.msra.mxu0 %v134
    %2904 = vmatprep.subr.mxu0 %v138
    %2905 = vmatpush1.msra.mxu0 %v137
    %2906 = vmatprep.subr.mxu0 %v141
    %2907 = vmatpush1.msra.mxu0 %v140
    %2908 = vmatprep.subr.mxu0 %v144
    %2909 = vmatpush1.msra.mxu0 %v143
    %2910 = vmatprep.subr.mxu0 %v147
    %2911 = vmatpush1.msra.mxu0 %v146
    %2912 = vmatprep.subr.mxu0 %v150
    %2913 = vmatpush1.msra.mxu0 %v149
    %2914 = vmatprep.subr.mxu0 %v153
    %2915 = vmatpush1.msra.mxu0 %v152
    %2916 = vmatprep.subr.mxu0 %v156
    %2917 = vmatpush1.msra.mxu0 %v155
    %2918 = vmatprep.subr.mxu0 0.0
    %2919 = vmatpush1.msra.mxu0 0.0
    %2920 = vmatprep.subr.mxu0 0.0
    %2921 = vmatpush1.msra.mxu0 0.0
    %2922 = vmatprep.subr.mxu0 0.0
    %2923 = vmatpush1.msra.mxu0 0.0
    %2924 = vmatprep.subr.mxu0 0.0
    %2925 = vmatpush1.msra.mxu0 0.0
    %2926 = vmatprep.subr.mxu0 0.0
    %2927 = vmatpush1.msra.mxu0 0.0
    %2928 = vmatprep.subr.mxu0 0.0
    %2929 = vmatpush1.msra.mxu0 0.0
    %2930 = vmatprep.subr.mxu0 0.0
    %2931 = vmatpush1.msra.mxu0 0.0
    %2932 = vmatprep.subr.mxu0 0.0
    %2933 = vmatpush1.msra.mxu0 0.0
    %2934 = vmatprep.subr.mxu0 0.0
    %2935 = vmatpush1.msra.mxu0 0.0
    %2936 = vmatprep.subr.mxu0 0.0
    %2937 = vmatpush1.msra.mxu0 0.0
    %2938 = vmatprep.subr.mxu0 0.0
    %2939 = vmatpush1.msra.mxu0 0.0
    %2940 = vmatprep.subr.mxu0 0.0
    %2941 = vmatpush1.msra.mxu0 0.0
    %2942 = vmatprep.subr.mxu0 0.0
    %2943 = vmatpush1.msra.mxu0 0.0
    %2944 = vmatprep.subr.mxu0 0.0
    %2945 = vmatpush1.msra.mxu0 0.0
    %2946 = vmatprep.subr.mxu0 0.0
    %2947 = vmatpush1.msra.mxu0 0.0
    %2948 = vmatprep.subr.mxu0 0.0
    %2949 = vmatpush1.msra.mxu0 0.0
    %2950 = vmatprep.mubr.f32.mxu0 0.0
    %2951 = vmatmul.mubr.f32.gmra.mrb[0].mxu0 %v2879
    %v2952 = vpop.f32.mrb[0].mxu0
    %v2953 = vadd.f32 0.0, %v2952
    %v2954 = vpop.f32.mrb[0].mxu0
    %v2955 = vadd.f32 0.0, %v2954
    %2956 = vdwg.mxu0
    %2957 = vmatprep.subr.mxu0 0.0
    %2958 = vmatpush1.msra.mxu0 %v112
    %2959 = vmatprep.subr.mxu0 0.0
    %2960 = vmatpush1.msra.mxu0 %v115
    %2961 = vmatprep.subr.mxu0 0.0
    %2962 = vmatpush1.msra.mxu0 %v118
    %2963 = vmatprep.subr.mxu0 0.0
    %2964 = vmatpush1.msra.mxu0 %v121
    %2965 = vmatprep.subr.mxu0 0.0
    %2966 = vmatpush1.msra.mxu0 %v124
    %2967 = vmatprep.subr.mxu0 0.0
    %2968 = vmatpush1.msra.mxu0 %v127
    %2969 = vmatprep.subr.mxu0 0.0
    %2970 = vmatpush1.msra.mxu0 %v130
    %2971 = vmatprep.subr.mxu0 0.0
    %2972 = vmatpush1.msra.mxu0 %v133
    %2973 = vmatprep.subr.mxu0 0.0
    %2974 = vmatpush1.msra.mxu0 %v136
    %2975 = vmatprep.subr.mxu0 0.0
    %2976 = vmatpush1.msra.mxu0 %v139
    %2977 = vmatprep.subr.mxu0 0.0
    %2978 = vmatpush1.msra.mxu0 %v142
    %2979 = vmatprep.subr.mxu0 0.0
    %2980 = vmatpush1.msra.mxu0 %v145
    %2981 = vmatprep.subr.mxu0 0.0
    %2982 = vmatpush1.msra.mxu0 %v148
    %2983 = vmatprep.subr.mxu0 0.0
    %2984 = vmatpush1.msra.mxu0 %v151
    %2985 = vmatprep.subr.mxu0 0.0
    %2986 = vmatpush1.msra.mxu0 %v154
    %2987 = vmatprep.subr.mxu0 0.0
    %2988 = vmatpush1.msra.mxu0 %v157
    %2989 = vmatprep.subr.mxu0 0.0
    %2990 = vmatpush1.msra.mxu0 0.0
    %2991 = vmatprep.subr.mxu0 0.0
    %2992 = vmatpush1.msra.mxu0 0.0
    %2993 = vmatprep.subr.mxu0 0.0
    %2994 = vmatpush1.msra.mxu0 0.0
    %2995 = vmatprep.subr.mxu0 0.0
    %2996 = vmatpush1.msra.mxu0 0.0
    %2997 = vmatprep.subr.mxu0 0.0
    %2998 = vmatpush1.msra.mxu0 0.0
    %2999 = vmatprep.subr.mxu0 0.0
    %3000 = vmatpush1.msra.mxu0 0.0
    %3001 = vmatprep.subr.mxu0 0.0
    %3002 = vmatpush1.msra.mxu0 0.0
    %3003 = vmatprep.subr.mxu0 0.0
    %3004 = vmatpush1.msra.mxu0 0.0
    %3005 = vmatprep.subr.mxu0 0.0
    %3006 = vmatpush1.msra.mxu0 0.0
    %3007 = vmatprep.subr.mxu0 0.0
    %3008 = vmatpush1.msra.mxu0 0.0
    %3009 = vmatprep.subr.mxu0 0.0
    %3010 = vmatpush1.msra.mxu0 0.0
    %3011 = vmatprep.subr.mxu0 0.0
    %3012 = vmatpush1.msra.mxu0 0.0
    %3013 = vmatprep.subr.mxu0 0.0
    %3014 = vmatpush1.msra.mxu0 0.0
    %3015 = vmatprep.subr.mxu0 0.0
    %3016 = vmatpush1.msra.mxu0 0.0
    %3017 = vmatprep.subr.mxu0 0.0
    %3018 = vmatpush1.msra.mxu0 0.0
    %3019 = vmatprep.subr.mxu0 0.0
    %3020 = vmatpush1.msra.mxu0 0.0
    %3021 = vmatprep.mubr.f32.mxu0 0.0
    %3022 = vmatmul.mubr.f32.gmra.mrb[0].mxu0 %v2879
    %v3023 = vpop.f32.mrb[0].mxu0
    %v3024 = vadd.f32 0.0, %v3023
    %v3025 = vpop.f32.mrb[0].mxu0
    %3026 = vdwg.mxu0
    %v3028 = vsel %vm369, %v2885, 0
    %3030 = vmatprep.subr.mxu0 %v105
    %3031 = vmatpush1.msra.mxu0 %v104
    %3032 = vmatprep.subr.mxu0 %v108
    %3033 = vmatpush1.msra.mxu0 %v107
    %3034 = vmatprep.subr.mxu0 0.0
    %3035 = vmatpush1.msra.mxu0 0.0
    %3036 = vmatprep.subr.mxu0 0.0
    %3037 = vmatpush1.msra.mxu0 0.0
    %3038 = vmatprep.subr.mxu0 0.0
    %3039 = vmatpush1.msra.mxu0 0.0
    %3040 = vmatprep.subr.mxu0 0.0
    %3041 = vmatpush1.msra.mxu0 0.0
    %3042 = vmatprep.subr.mxu0 0.0
    %3043 = vmatpush1.msra.mxu0 0.0
    %3044 = vmatprep.subr.mxu0 0.0
    %3045 = vmatpush1.msra.mxu0 0.0
    %3046 = vmatprep.subr.mxu0 0.0
    %3047 = vmatpush1.msra.mxu0 0.0
    %3048 = vmatprep.subr.mxu0 0.0
    %3049 = vmatpush1.msra.mxu0 0.0
    %3050 = vmatprep.subr.mxu0 0.0
    %3051 = vmatpush1.msra.mxu0 0.0
    %3052 = vmatprep.subr.mxu0 0.0
    %3053 = vmatpush1.msra.mxu0 0.0
    %3054 = vmatprep.subr.mxu0 0.0
    %3055 = vmatpush1.msra.mxu0 0.0
    %3056 = vmatprep.subr.mxu0 0.0
    %3057 = vmatpush1.msra.mxu0 0.0
    %3058 = vmatprep.subr.mxu0 0.0
    %3059 = vmatpush1.msra.mxu0 0.0
    %3060 = vmatprep.subr.mxu0 0.0
    %3061 = vmatpush1.msra.mxu0 0.0
    %3062 = vmatprep.subr.mxu0 0.0
    %3063 = vmatpush1.msra.mxu0 0.0
    %3064 = vmatprep.subr.mxu0 0.0
    %3065 = vmatpush1.msra.mxu0 0.0
    %3066 = vmatprep.subr.mxu0 0.0
    %3067 = vmatpush1.msra.mxu0 0.0
    %3068 = vmatprep.subr.mxu0 0.0
    %3069 = vmatpush1.msra.mxu0 0.0
    %3070 = vmatprep.subr.mxu0 0.0
    %3071 = vmatpush1.msra.mxu0 0.0
    %3072 = vmatprep.subr.mxu0 0.0
    %3073 = vmatpush1.msra.mxu0 0.0
    %3074 = vmatprep.subr.mxu0 0.0
    %3075 = vmatpush1.msra.mxu0 0.0
    %3076 = vmatprep.subr.mxu0 0.0
    %3077 = vmatpush1.msra.mxu0 0.0
    %3078 = vmatprep.subr.mxu0 0.0
    %3079 = vmatpush1.msra.mxu0 0.0
    %3080 = vmatprep.subr.mxu0 0.0
    %3081 = vmatpush1.msra.mxu0 0.0
    %3082 = vmatprep.subr.mxu0 0.0
    %3083 = vmatpush1.msra.mxu0 0.0
    %3084 = vmatprep.subr.mxu0 0.0
    %3085 = vmatpush1.msra.mxu0 0.0
    %3086 = vmatprep.subr.mxu0 0.0
    %3087 = vmatpush1.msra.mxu0 0.0
    %3088 = vmatprep.subr.mxu0 0.0
    %3089 = vmatpush1.msra.mxu0 0.0
    %3090 = vmatprep.subr.mxu0 0.0
    %3091 = vmatpush1.msra.mxu0 0.0
    %3092 = vmatprep.subr.mxu0 0.0
    %3093 = vmatpush1.msra.mxu0 0.0
    %3094 = vmatprep.mubr.f32.mxu0 0.0
    %3095 = vmatmul.mubr.f32.gmra.mrb[0].mxu0 %v3028
    %v3096 = vpop.f32.mrb[0].mxu0
    %v3097 = vadd.f32 %v2953, %v3096
    %v3098 = vpop.f32.mrb[0].mxu0
    %v3099 = vadd.f32 %v2955, %v3098
    %3100 = vdwg.mxu0
    %3101 = vmatprep.subr.mxu0 0.0
    %3102 = vmatpush1.msra.mxu0 %v106
    %3103 = vmatprep.subr.mxu0 0.0
    %3104 = vmatpush1.msra.mxu0 %v109
    %3105 = vmatprep.subr.mxu0 0.0
    %3106 = vmatpush1.msra.mxu0 0.0
    %3107 = vmatprep.subr.mxu0 0.0
    %3108 = vmatpush1.msra.mxu0 0.0
    %3109 = vmatprep.subr.mxu0 0.0
    %3110 = vmatpush1.msra.mxu0 0.0
    %3111 = vmatprep.subr.mxu0 0.0
    %3112 = vmatpush1.msra.mxu0 0.0
    %3113 = vmatprep.subr.mxu0 0.0
    %3114 = vmatpush1.msra.mxu0 0.0
    %3115 = vmatprep.subr.mxu0 0.0
    %3116 = vmatpush1.msra.mxu0 0.0
    %3117 = vmatprep.subr.mxu0 0.0
    %3118 = vmatpush1.msra.mxu0 0.0
    %3119 = vmatprep.subr.mxu0 0.0
    %3120 = vmatpush1.msra.mxu0 0.0
    %3121 = vmatprep.subr.mxu0 0.0
    %3122 = vmatpush1.msra.mxu0 0.0
    %3123 = vmatprep.subr.mxu0 0.0
    %3124 = vmatpush1.msra.mxu0 0.0
    %3125 = vmatprep.subr.mxu0 0.0
    %3126 = vmatpush1.msra.mxu0 0.0
    %3127 = vmatprep.subr.mxu0 0.0
    %3128 = vmatpush1.msra.mxu0 0.0
    %3129 = vmatprep.subr.mxu0 0.0
    %3130 = vmatpush1.msra.mxu0 0.0
    %3131 = vmatprep.subr.mxu0 0.0
    %3132 = vmatpush1.msra.mxu0 0.0
    %3133 = vmatprep.subr.mxu0 0.0
    %3134 = vmatpush1.msra.mxu0 0.0
    %3135 = vmatprep.subr.mxu0 0.0
    %3136 = vmatpush1.msra.mxu0 0.0
    %3137 = vmatprep.subr.mxu0 0.0
    %3138 = vmatpush1.msra.mxu0 0.0
    %3139 = vmatprep.subr.mxu0 0.0
    %3140 = vmatpush1.msra.mxu0 0.0
    %3141 = vmatprep.subr.mxu0 0.0
    %3142 = vmatpush1.msra.mxu0 0.0
    %3143 = vmatprep.subr.mxu0 0.0
    %3144 = vmatpush1.msra.mxu0 0.0
    %3145 = vmatprep.subr.mxu0 0.0
    %3146 = vmatpush1.msra.mxu0 0.0
    %3147 = vmatprep.subr.mxu0 0.0
    %3148 = vmatpush1.msra.mxu0 0.0
    %3149 = vmatprep.subr.mxu0 0.0
    %3150 = vmatpush1.msra.mxu0 0.0
    %3151 = vmatprep.subr.mxu0 0.0
    %3152 = vmatpush1.msra.mxu0 0.0
    %3153 = vmatprep.subr.mxu0 0.0
    %3154 = vmatpush1.msra.mxu0 0.0
    %3155 = vmatprep.subr.mxu0 0.0
    %3156 = vmatpush1.msra.mxu0 0.0
    %3157 = vmatprep.subr.mxu0 0.0
    %3158 = vmatpush1.msra.mxu0 0.0
    %3159 = vmatprep.subr.mxu0 0.0
    %3160 = vmatpush1.msra.mxu0 0.0
    %3161 = vmatprep.subr.mxu0 0.0
    %3162 = vmatpush1.msra.mxu0 0.0
    %3163 = vmatprep.subr.mxu0 0.0
    %3164 = vmatpush1.msra.mxu0 0.0
    %3165 = vmatprep.mubr.f32.mxu0 0.0
    %3166 = vmatmul.mubr.f32.gmra.mrb[0].mxu0 %v3028
    %v3167 = vpop.f32.mrb[0].mxu0
    %v3168 = vadd.f32 %v3024, %v3167
    %v3169 = vpop.f32.mrb[0].mxu0
    %3170 = vdwg.mxu0
    %v3171 = vadd.f32 %v3097, %v518
    %v3172 = vadd.f32 %v3099, %v522
    %v3173 = vadd.f32 %v3168, %v526
    %3174 = vmatprep.subr.mxu0 %v159
    %3175 = vmatpush1.msra.mxu0 %v158
    %3176 = vmatprep.subr.mxu0 %v162
    %3177 = vmatpush1.msra.mxu0 %v161
    %3178 = vmatprep.subr.mxu0 %v165
    %3179 = vmatpush1.msra.mxu0 %v164
    %3180 = vmatprep.subr.mxu0 %v168
    %3181 = vmatpush1.msra.mxu0 %v167
    %3182 = vmatprep.subr.mxu0 %v171
    %3183 = vmatpush1.msra.mxu0 %v170
    %3184 = vmatprep.subr.mxu0 %v174
    %3185 = vmatpush1.msra.mxu0 %v173
    %3186 = vmatprep.subr.mxu0 %v177
    %3187 = vmatpush1.msra.mxu0 %v176
    %3188 = vmatprep.subr.mxu0 %v180
    %3189 = vmatpush1.msra.mxu0 %v179
    %3190 = vmatprep.subr.mxu0 %v183
    %3191 = vmatpush1.msra.mxu0 %v182
    %3192 = vmatprep.subr.mxu0 %v186
    %3193 = vmatpush1.msra.mxu0 %v185
    %3194 = vmatprep.subr.mxu0 %v189
    %3195 = vmatpush1.msra.mxu0 %v188
    %3196 = vmatprep.subr.mxu0 %v192
    %3197 = vmatpush1.msra.mxu0 %v191
    %3198 = vmatprep.subr.mxu0 %v195
    %3199 = vmatpush1.msra.mxu0 %v194
    %3200 = vmatprep.subr.mxu0 %v198
    %3201 = vmatpush1.msra.mxu0 %v197
    %3202 = vmatprep.subr.mxu0 %v201
    %3203 = vmatpush1.msra.mxu0 %v200
    %3204 = vmatprep.subr.mxu0 %v204
    %3205 = vmatpush1.msra.mxu0 %v203
    %3206 = vmatprep.subr.mxu0 0.0
    %3207 = vmatpush1.msra.mxu0 0.0
    %3208 = vmatprep.subr.mxu0 0.0
    %3209 = vmatpush1.msra.mxu0 0.0
    %3210 = vmatprep.subr.mxu0 0.0
    %3211 = vmatpush1.msra.mxu0 0.0
    %3212 = vmatprep.subr.mxu0 0.0
    %3213 = vmatpush1.msra.mxu0 0.0
    %3214 = vmatprep.subr.mxu0 0.0
    %3215 = vmatpush1.msra.mxu0 0.0
    %3216 = vmatprep.subr.mxu0 0.0
    %3217 = vmatpush1.msra.mxu0 0.0
    %3218 = vmatprep.subr.mxu0 0.0
    %3219 = vmatpush1.msra.mxu0 0.0
    %3220 = vmatprep.subr.mxu0 0.0
    %3221 = vmatpush1.msra.mxu0 0.0
    %3222 = vmatprep.subr.mxu0 0.0
    %3223 = vmatpush1.msra.mxu0 0.0
    %3224 = vmatprep.subr.mxu0 0.0
    %3225 = vmatpush1.msra.mxu0 0.0
    %3226 = vmatprep.subr.mxu0 0.0
    %3227 = vmatpush1.msra.mxu0 0.0
    %3228 = vmatprep.subr.mxu0 0.0
    %3229 = vmatpush1.msra.mxu0 0.0
    %3230 = vmatprep.subr.mxu0 0.0
    %3231 = vmatpush1.msra.mxu0 0.0
    %3232 = vmatprep.subr.mxu0 0.0
    %3233 = vmatpush1.msra.mxu0 0.0
    %3234 = vmatprep.subr.mxu0 0.0
    %3235 = vmatpush1.msra.mxu0 0.0
    %3236 = vmatprep.subr.mxu0 0.0
    %3237 = vmatpush1.msra.mxu0 0.0
    %3238 = vmatprep.mubr.f32.mxu0 0.0
    %3239 = vmatmul.mubr.f32.gmra.mrb[0].mxu0 %v2811
    %v3240 = vpop.f32.mrb[0].mxu0
    %v3241 = vadd.f32 %v537, %v3240
    %v3242 = vpop.f32.mrb[0].mxu0
    %v3243 = vadd.f32 %v541, %v3242
    %3244 = vdwg.mxu0
    %3245 = vmatprep.subr.mxu0 0.0
    %3246 = vmatpush1.msra.mxu0 %v160
    %3247 = vmatprep.subr.mxu0 0.0
    %3248 = vmatpush1.msra.mxu0 %v163
    %3249 = vmatprep.subr.mxu0 0.0
    %3250 = vmatpush1.msra.mxu0 %v166
    %3251 = vmatprep.subr.mxu0 0.0
    %3252 = vmatpush1.msra.mxu0 %v169
    %3253 = vmatprep.subr.mxu0 0.0
    %3254 = vmatpush1.msra.mxu0 %v172
    %3255 = vmatprep.subr.mxu0 0.0
    %3256 = vmatpush1.msra.mxu0 %v175
    %3257 = vmatprep.subr.mxu0 0.0
    %3258 = vmatpush1.msra.mxu0 %v178
    %3259 = vmatprep.subr.mxu0 0.0
    %3260 = vmatpush1.msra.mxu0 %v181
    %3261 = vmatprep.subr.mxu0 0.0
    %3262 = vmatpush1.msra.mxu0 %v184
    %3263 = vmatprep.subr.mxu0 0.0
    %3264 = vmatpush1.msra.mxu0 %v187
    %3265 = vmatprep.subr.mxu0 0.0
    %3266 = vmatpush1.msra.mxu0 %v190
    %3267 = vmatprep.subr.mxu0 0.0
    %3268 = vmatpush1.msra.mxu0 %v193
    %3269 = vmatprep.subr.mxu0 0.0
    %3270 = vmatpush1.msra.mxu0 %v196
    %3271 = vmatprep.subr.mxu0 0.0
    %3272 = vmatpush1.msra.mxu0 %v199
    %3273 = vmatprep.subr.mxu0 0.0
    %3274 = vmatpush1.msra.mxu0 %v202
    %3275 = vmatprep.subr.mxu0 0.0
    %3276 = vmatpush1.msra.mxu0 %v205
    %3277 = vmatprep.subr.mxu0 0.0
    %3278 = vmatpush1.msra.mxu0 0.0
    %3279 = vmatprep.subr.mxu0 0.0
    %3280 = vmatpush1.msra.mxu0 0.0
    %3281 = vmatprep.subr.mxu0 0.0
    %3282 = vmatpush1.msra.mxu0 0.0
    %3283 = vmatprep.subr.mxu0 0.0
    %3284 = vmatpush1.msra.mxu0 0.0
    %3285 = vmatprep.subr.mxu0 0.0
    %3286 = vmatpush1.msra.mxu0 0.0
    %3287 = vmatprep.subr.mxu0 0.0
    %3288 = vmatpush1.msra.mxu0 0.0
    %3289 = vmatprep.subr.mxu0 0.0
    %3290 = vmatpush1.msra.mxu0 0.0
    %3291 = vmatprep.subr.mxu0 0.0
    %3292 = vmatpush1.msra.mxu0 0.0
    %3293 = vmatprep.subr.mxu0 0.0
    %3294 = vmatpush1.msra.mxu0 0.0
    %3295 = vmatprep.subr.mxu0 0.0
    %3296 = vmatpush1.msra.mxu0 0.0
    %3297 = vmatprep.subr.mxu0 0.0
    %3298 = vmatpush1.msra.mxu0 0.0
    %3299 = vmatprep.subr.mxu0 0.0
    %3300 = vmatpush1.msra.mxu0 0.0
    %3301 = vmatprep.subr.mxu0 0.0
    %3302 = vmatpush1.msra.mxu0 0.0
    %3303 = vmatprep.subr.mxu0 0.0
    %3304 = vmatpush1.msra.mxu0 0.0
    %3305 = vmatprep.subr.mxu0 0.0
    %3306 = vmatpush1.msra.mxu0 0.0
    %3307 = vmatprep.subr.mxu0 0.0
    %3308 = vmatpush1.msra.mxu0 0.0
    %3309 = vmatprep.mubr.f32.mxu0 0.0
    %3310 = vmatmul.mubr.f32.gmra.mrb[0].mxu0 %v2811
    %v3311 = vpop.f32.mrb[0].mxu0
    %v3312 = vadd.f32 %v545, %v3311
    %v3313 = vpop.f32.mrb[0].mxu0
    %3314 = vdwg.mxu0
    %v3315 = vadd.f32 %v3171, %v3241
    %v3316 = vxor.u32 %v3315, 2147483648
    %v3317 = vmul.f32 %v3316, 1.442695
    %v3318 = vpow.pop %v3317
    %v3319 = vadd.f32 %v3318, 1.0
    %v3320 = vrcp.pop %v3319
    %v3321 = vmul.f32 1.0, %v3320
    %v3322 = vadd.f32 %v3172, %v3243
    %v3323 = vxor.u32 %v3322, 2147483648
    %v3324 = vmul.f32 %v3323, 1.442695
    %v3325 = vpow.pop %v3324
    %v3326 = vadd.f32 %v3325, 1.0
    %v3327 = vrcp.pop %v3326
    %v3328 = vmul.f32 1.0, %v3327
    %v3329 = vmul.f32 %v3321, %v3312
    %v3330 = vadd.f32 %v3173, %v3329
    %v3331 = vtanh.pop %v3330
    %v3332 = vsub.f32 1.0, %v3328
    %v3333 = vmul.f32 %v3332, %v3331
    %v3334 = vmul.f32 %v3328, %v2811
    %v3335 = vadd.f32 %v3333, %v3334
    %3336 = vmatprep.subr.mxu0 0.0
    %3337 = vmatpush1.msra.mxu0 %v208
    %3338 = vmatprep.subr.mxu0 0.0
    %3339 = vmatpush1.msra.mxu0 %v209
    %3340 = vmatprep.subr.mxu0 0.0
    %3341 = vmatpush1.msra.mxu0 %v210
    %3342 = vmatprep.subr.mxu0 0.0
    %3343 = vmatpush1.msra.mxu0 %v211
    %3344 = vmatprep.subr.mxu0 0.0
    %3345 = vmatpush1.msra.mxu0 %v212
    %3346 = vmatprep.subr.mxu0 0.0
    %3347 = vmatpush1.msra.mxu0 %v213
    %3348 = vmatprep.subr.mxu0 0.0
    %3349 = vmatpush1.msra.mxu0 %v214
    %3350 = vmatprep.subr.mxu0 0.0
    %3351 = vmatpush1.msra.mxu0 %v215
    %3352 = vmatprep.subr.mxu0 0.0
    %3353 = vmatpush1.msra.mxu0 %v216
    %3354 = vmatprep.subr.mxu0 0.0
    %3355 = vmatpush1.msra.mxu0 %v217
    %3356 = vmatprep.subr.mxu0 0.0
    %3357 = vmatpush1.msra.mxu0 %v218
    %3358 = vmatprep.subr.mxu0 0.0
    %3359 = vmatpush1.msra.mxu0 %v219
    %3360 = vmatprep.subr.mxu0 0.0
    %3361 = vmatpush1.msra.mxu0 %v220
    %3362 = vmatprep.subr.mxu0 0.0
    %3363 = vmatpush1.msra.mxu0 %v221
    %3364 = vmatprep.subr.mxu0 0.0
    %3365 = vmatpush1.msra.mxu0 %v222
    %3366 = vmatprep.subr.mxu0 0.0
    %3367 = vmatpush1.msra.mxu0 %v223
    %3368 = vmatprep.subr.mxu0 0.0
    %3369 = vmatpush1.msra.mxu0 0.0
    %3370 = vmatprep.subr.mxu0 0.0
    %3371 = vmatpush1.msra.mxu0 0.0
    %3372 = vmatprep.subr.mxu0 0.0
    %3373 = vmatpush1.msra.mxu0 0.0
    %3374 = vmatprep.subr.mxu0 0.0
    %3375 = vmatpush1.msra.mxu0 0.0
    %3376 = vmatprep.subr.mxu0 0.0
    %3377 = vmatpush1.msra.mxu0 0.0
    %3378 = vmatprep.subr.mxu0 0.0
    %3379 = vmatpush1.msra.mxu0 0.0
    %3380 = vmatprep.subr.mxu0 0.0
    %3381 = vmatpush1.msra.mxu0 0.0
    %3382 = vmatprep.subr.mxu0 0.0
    %3383 = vmatpush1.msra.mxu0 0.0
    %3384 = vmatprep.subr.mxu0 0.0
    %3385 = vmatpush1.msra.mxu0 0.0
    %3386 = vmatprep.subr.mxu0 0.0
    %3387 = vmatpush1.msra.mxu0 0.0
    %3388 = vmatprep.subr.mxu0 0.0
    %3389 = vmatpush1.msra.mxu0 0.0
    %3390 = vmatprep.subr.mxu0 0.0
    %3391 = vmatpush1.msra.mxu0 0.0
    %3392 = vmatprep.subr.mxu0 0.0
    %3393 = vmatpush1.msra.mxu0 0.0
    %3394 = vmatprep.subr.mxu0 0.0
    %3395 = vmatpush1.msra.mxu0 0.0
    %3396 = vmatprep.subr.mxu0 0.0
    %3397 = vmatpush1.msra.mxu0 0.0
    %3398 = vmatprep.subr.mxu0 0.0
    %3399 = vmatpush1.msra.mxu0 0.0
    %3400 = vmatprep.mubr.f32.mxu0 0.0
    %3401 = vmatmul.mubr.f32.gmra.mrb[0].mxu0 %v3335
    %v3402 = vpop.f32.mrb[0].mxu0
    %v3403 = vadd.f32 %v715, %v3402
    %v3404 = vpop.f32.mrb[0].mxu0
    %3405 = vdwg.mxu0
    %s3406 = scalar_lea.vmem [#allocation13], 40
    %3407 = vst [vmem:[%s3406] sm:$0xff] %v3403
    %s3408 = scalar_lea.vmem [#allocation4], 48
    %v3409 = vld [vmem:[%s3408] sm:$0xff]
    %3410 = vmatprep.subr.mxu0 %v111
    %3411 = vmatpush1.msra.mxu0 %v110
    %3412 = vmatprep.subr.mxu0 %v114
    %3413 = vmatpush1.msra.mxu0 %v113
    %3414 = vmatprep.subr.mxu0 %v117
    %3415 = vmatpush1.msra.mxu0 %v116
    %3416 = vmatprep.subr.mxu0 %v120
    %3417 = vmatpush1.msra.mxu0 %v119
    %3418 = vmatprep.subr.mxu0 %v123
    %3419 = vmatpush1.msra.mxu0 %v122
    %3420 = vmatprep.subr.mxu0 %v126
    %3421 = vmatpush1.msra.mxu0 %v125
    %3422 = vmatprep.subr.mxu0 %v129
    %3423 = vmatpush1.msra.mxu0 %v128
    %3424 = vmatprep.subr.mxu0 %v132
    %3425 = vmatpush1.msra.mxu0 %v131
    %3426 = vmatprep.subr.mxu0 %v135
    %3427 = vmatpush1.msra.mxu0 %v134
    %3428 = vmatprep.subr.mxu0 %v138
    %3429 = vmatpush1.msra.mxu0 %v137
    %3430 = vmatprep.subr.mxu0 %v141
    %3431 = vmatpush1.msra.mxu0 %v140
    %3432 = vmatprep.subr.mxu0 %v144
    %3433 = vmatpush1.msra.mxu0 %v143
    %3434 = vmatprep.subr.mxu0 %v147
    %3435 = vmatpush1.msra.mxu0 %v146
    %3436 = vmatprep.subr.mxu0 %v150
    %3437 = vmatpush1.msra.mxu0 %v149
    %3438 = vmatprep.subr.mxu0 %v153
    %3439 = vmatpush1.msra.mxu0 %v152
    %3440 = vmatprep.subr.mxu0 %v156
    %3441 = vmatpush1.msra.mxu0 %v155
    %3442 = vmatprep.subr.mxu0 0.0
    %3443 = vmatpush1.msra.mxu0 0.0
    %3444 = vmatprep.subr.mxu0 0.0
    %3445 = vmatpush1.msra.mxu0 0.0
    %3446 = vmatprep.subr.mxu0 0.0
    %3447 = vmatpush1.msra.mxu0 0.0
    %3448 = vmatprep.subr.mxu0 0.0
    %3449 = vmatpush1.msra.mxu0 0.0
    %3450 = vmatprep.subr.mxu0 0.0
    %3451 = vmatpush1.msra.mxu0 0.0
    %3452 = vmatprep.subr.mxu0 0.0
    %3453 = vmatpush1.msra.mxu0 0.0
    %3454 = vmatprep.subr.mxu0 0.0
    %3455 = vmatpush1.msra.mxu0 0.0
    %3456 = vmatprep.subr.mxu0 0.0
    %3457 = vmatpush1.msra.mxu0 0.0
    %3458 = vmatprep.subr.mxu0 0.0
    %3459 = vmatpush1.msra.mxu0 0.0
    %3460 = vmatprep.subr.mxu0 0.0
    %3461 = vmatpush1.msra.mxu0 0.0
    %3462 = vmatprep.subr.mxu0 0.0
    %3463 = vmatpush1.msra.mxu0 0.0
    %3464 = vmatprep.subr.mxu0 0.0
    %3465 = vmatpush1.msra.mxu0 0.0
    %3466 = vmatprep.subr.mxu0 0.0
    %3467 = vmatpush1.msra.mxu0 0.0
    %3468 = vmatprep.subr.mxu0 0.0
    %3469 = vmatpush1.msra.mxu0 0.0
    %3470 = vmatprep.subr.mxu0 0.0
    %3471 = vmatpush1.msra.mxu0 0.0
    %3472 = vmatprep.subr.mxu0 0.0
    %3473 = vmatpush1.msra.mxu0 0.0
    %3474 = vmatprep.mubr.f32.mxu0 0.0
    %3475 = vmatmul.mubr.f32.gmra.mrb[0].mxu0 %v3403
    %v3476 = vpop.f32.mrb[0].mxu0
    %v3477 = vadd.f32 0.0, %v3476
    %v3478 = vpop.f32.mrb[0].mxu0
    %v3479 = vadd.f32 0.0, %v3478
    %3480 = vdwg.mxu0
    %3481 = vmatprep.subr.mxu0 0.0
    %3482 = vmatpush1.msra.mxu0 %v112
    %3483 = vmatprep.subr.mxu0 0.0
    %3484 = vmatpush1.msra.mxu0 %v115
    %3485 = vmatprep.subr.mxu0 0.0
    %3486 = vmatpush1.msra.mxu0 %v118
    %3487 = vmatprep.subr.mxu0 0.0
    %3488 = vmatpush1.msra.mxu0 %v121
    %3489 = vmatprep.subr.mxu0 0.0
    %3490 = vmatpush1.msra.mxu0 %v124
    %3491 = vmatprep.subr.mxu0 0.0
    %3492 = vmatpush1.msra.mxu0 %v127
    %3493 = vmatprep.subr.mxu0 0.0
    %3494 = vmatpush1.msra.mxu0 %v130
    %3495 = vmatprep.subr.mxu0 0.0
    %3496 = vmatpush1.msra.mxu0 %v133
    %3497 = vmatprep.subr.mxu0 0.0
    %3498 = vmatpush1.msra.mxu0 %v136
    %3499 = vmatprep.subr.mxu0 0.0
    %3500 = vmatpush1.msra.mxu0 %v139
    %3501 = vmatprep.subr.mxu0 0.0
    %3502 = vmatpush1.msra.mxu0 %v142
    %3503 = vmatprep.subr.mxu0 0.0
    %3504 = vmatpush1.msra.mxu0 %v145
    %3505 = vmatprep.subr.mxu0 0.0
    %3506 = vmatpush1.msra.mxu0 %v148
    %3507 = vmatprep.subr.mxu0 0.0
    %3508 = vmatpush1.msra.mxu0 %v151
    %3509 = vmatprep.subr.mxu0 0.0
    %3510 = vmatpush1.msra.mxu0 %v154
    %3511 = vmatprep.subr.mxu0 0.0
    %3512 = vmatpush1.msra.mxu0 %v157
    %3513 = vmatprep.subr.mxu0 0.0
    %3514 = vmatpush1.msra.mxu0 0.0
    %3515 = vmatprep.subr.mxu0 0.0
    %3516 = vmatpush1.msra.mxu0 0.0
    %3517 = vmatprep.subr.mxu0 0.0
    %3518 = vmatpush1.msra.mxu0 0.0
    %3519 = vmatprep.subr.mxu0 0.0
    %3520 = vmatpush1.msra.mxu0 0.0
    %3521 = vmatprep.subr.mxu0 0.0
    %3522 = vmatpush1.msra.mxu0 0.0
    %3523 = vmatprep.subr.mxu0 0.0
    %3524 = vmatpush1.msra.mxu0 0.0
    %3525 = vmatprep.subr.mxu0 0.0
    %3526 = vmatpush1.msra.mxu0 0.0
    %3527 = vmatprep.subr.mxu0 0.0
    %3528 = vmatpush1.msra.mxu0 0.0
    %3529 = vmatprep.subr.mxu0 0.0
    %3530 = vmatpush1.msra.mxu0 0.0
    %3531 = vmatprep.subr.mxu0 0.0
    %3532 = vmatpush1.msra.mxu0 0.0
    %3533 = vmatprep.subr.mxu0 0.0
    %3534 = vmatpush1.msra.mxu0 0.0
    %3535 = vmatprep.subr.mxu0 0.0
    %3536 = vmatpush1.msra.mxu0 0.0
    %3537 = vmatprep.subr.mxu0 0.0
    %3538 = vmatpush1.msra.mxu0 0.0
    %3539 = vmatprep.subr.mxu0 0.0
    %3540 = vmatpush1.msra.mxu0 0.0
    %3541 = vmatprep.subr.mxu0 0.0
    %3542 = vmatpush1.msra.mxu0 0.0
    %3543 = vmatprep.subr.mxu0 0.0
    %3544 = vmatpush1.msra.mxu0 0.0
    %3545 = vmatprep.mubr.f32.mxu0 0.0
    %3546 = vmatmul.mubr.f32.gmra.mrb[0].mxu0 %v3403
    %v3547 = vpop.f32.mrb[0].mxu0
    %v3548 = vadd.f32 0.0, %v3547
    %v3549 = vpop.f32.mrb[0].mxu0
    %3550 = vdwg.mxu0
    %v3552 = vsel %vm369, %v3409, 0
    %3554 = vmatprep.subr.mxu0 %v105
    %3555 = vmatpush1.msra.mxu0 %v104
    %3556 = vmatprep.subr.mxu0 %v108
    %3557 = vmatpush1.msra.mxu0 %v107
    %3558 = vmatprep.subr.mxu0 0.0
    %3559 = vmatpush1.msra.mxu0 0.0
    %3560 = vmatprep.subr.mxu0 0.0
    %3561 = vmatpush1.msra.mxu0 0.0
    %3562 = vmatprep.subr.mxu0 0.0
    %3563 = vmatpush1.msra.mxu0 0.0
    %3564 = vmatprep.subr.mxu0 0.0
    %3565 = vmatpush1.msra.mxu0 0.0
    %3566 = vmatprep.subr.mxu0 0.0
    %3567 = vmatpush1.msra.mxu0 0.0
    %3568 = vmatprep.subr.mxu0 0.0
    %3569 = vmatpush1.msra.mxu0 0.0
    %3570 = vmatprep.subr.mxu0 0.0
    %3571 = vmatpush1.msra.mxu0 0.0
    %3572 = vmatprep.subr.mxu0 0.0
    %3573 = vmatpush1.msra.mxu0 0.0
    %3574 = vmatprep.subr.mxu0 0.0
    %3575 = vmatpush1.msra.mxu0 0.0
    %3576 = vmatprep.subr.mxu0 0.0
    %3577 = vmatpush1.msra.mxu0 0.0
    %3578 = vmatprep.subr.mxu0 0.0
    %3579 = vmatpush1.msra.mxu0 0.0
    %3580 = vmatprep.subr.mxu0 0.0
    %3581 = vmatpush1.msra.mxu0 0.0
    %3582 = vmatprep.subr.mxu0 0.0
    %3583 = vmatpush1.msra.mxu0 0.0
    %3584 = vmatprep.subr.mxu0 0.0
    %3585 = vmatpush1.msra.mxu0 0.0
    %3586 = vmatprep.subr.mxu0 0.0
    %3587 = vmatpush1.msra.mxu0 0.0
    %3588 = vmatprep.subr.mxu0 0.0
    %3589 = vmatpush1.msra.mxu0 0.0
    %3590 = vmatprep.subr.mxu0 0.0
    %3591 = vmatpush1.msra.mxu0 0.0
    %3592 = vmatprep.subr.mxu0 0.0
    %3593 = vmatpush1.msra.mxu0 0.0
    %3594 = vmatprep.subr.mxu0 0.0
    %3595 = vmatpush1.msra.mxu0 0.0
    %3596 = vmatprep.subr.mxu0 0.0
    %3597 = vmatpush1.msra.mxu0 0.0
    %3598 = vmatprep.subr.mxu0 0.0
    %3599 = vmatpush1.msra.mxu0 0.0
    %3600 = vmatprep.subr.mxu0 0.0
    %3601 = vmatpush1.msra.mxu0 0.0
    %3602 = vmatprep.subr.mxu0 0.0
    %3603 = vmatpush1.msra.mxu0 0.0
    %3604 = vmatprep.subr.mxu0 0.0
    %3605 = vmatpush1.msra.mxu0 0.0
    %3606 = vmatprep.subr.mxu0 0.0
    %3607 = vmatpush1.msra.mxu0 0.0
    %3608 = vmatprep.subr.mxu0 0.0
    %3609 = vmatpush1.msra.mxu0 0.0
    %3610 = vmatprep.subr.mxu0 0.0
    %3611 = vmatpush1.msra.mxu0 0.0
    %3612 = vmatprep.subr.mxu0 0.0
    %3613 = vmatpush1.msra.mxu0 0.0
    %3614 = vmatprep.subr.mxu0 0.0
    %3615 = vmatpush1.msra.mxu0 0.0
    %3616 = vmatprep.subr.mxu0 0.0
    %3617 = vmatpush1.msra.mxu0 0.0
    %3618 = vmatprep.mubr.f32.mxu0 0.0
    %3619 = vmatmul.mubr.f32.gmra.mrb[0].mxu0 %v3552
    %v3620 = vpop.f32.mrb[0].mxu0
    %v3621 = vadd.f32 %v3477, %v3620
    %v3622 = vpop.f32.mrb[0].mxu0
    %v3623 = vadd.f32 %v3479, %v3622
    %3624 = vdwg.mxu0
    %3625 = vmatprep.subr.mxu0 0.0
    %3626 = vmatpush1.msra.mxu0 %v106
    %3627 = vmatprep.subr.mxu0 0.0
    %3628 = vmatpush1.msra.mxu0 %v109
    %3629 = vmatprep.subr.mxu0 0.0
    %3630 = vmatpush1.msra.mxu0 0.0
    %3631 = vmatprep.subr.mxu0 0.0
    %3632 = vmatpush1.msra.mxu0 0.0
    %3633 = vmatprep.subr.mxu0 0.0
    %3634 = vmatpush1.msra.mxu0 0.0
    %3635 = vmatprep.subr.mxu0 0.0
    %3636 = vmatpush1.msra.mxu0 0.0
    %3637 = vmatprep.subr.mxu0 0.0
    %3638 = vmatpush1.msra.mxu0 0.0
    %3639 = vmatprep.subr.mxu0 0.0
    %3640 = vmatpush1.msra.mxu0 0.0
    %3641 = vmatprep.subr.mxu0 0.0
    %3642 = vmatpush1.msra.mxu0 0.0
    %3643 = vmatprep.subr.mxu0 0.0
    %3644 = vmatpush1.msra.mxu0 0.0
    %3645 = vmatprep.subr.mxu0 0.0
    %3646 = vmatpush1.msra.mxu0 0.0
    %3647 = vmatprep.subr.mxu0 0.0
    %3648 = vmatpush1.msra.mxu0 0.0
    %3649 = vmatprep.subr.mxu0 0.0
    %3650 = vmatpush1.msra.mxu0 0.0
    %3651 = vmatprep.subr.mxu0 0.0
    %3652 = vmatpush1.msra.mxu0 0.0
    %3653 = vmatprep.subr.mxu0 0.0
    %3654 = vmatpush1.msra.mxu0 0.0
    %3655 = vmatprep.subr.mxu0 0.0
    %3656 = vmatpush1.msra.mxu0 0.0
    %3657 = vmatprep.subr.mxu0 0.0
    %3658 = vmatpush1.msra.mxu0 0.0
    %3659 = vmatprep.subr.mxu0 0.0
    %3660 = vmatpush1.msra.mxu0 0.0
    %3661 = vmatprep.subr.mxu0 0.0
    %3662 = vmatpush1.msra.mxu0 0.0
    %3663 = vmatprep.subr.mxu0 0.0
    %3664 = vmatpush1.msra.mxu0 0.0
    %3665 = vmatprep.subr.mxu0 0.0
    %3666 = vmatpush1.msra.mxu0 0.0
    %3667 = vmatprep.subr.mxu0 0.0
    %3668 = vmatpush1.msra.mxu0 0.0
    %3669 = vmatprep.subr.mxu0 0.0
    %3670 = vmatpush1.msra.mxu0 0.0
    %3671 = vmatprep.subr.mxu0 0.0
    %3672 = vmatpush1.msra.mxu0 0.0
    %3673 = vmatprep.subr.mxu0 0.0
    %3674 = vmatpush1.msra.mxu0 0.0
    %3675 = vmatprep.subr.mxu0 0.0
    %3676 = vmatpush1.msra.mxu0 0.0
    %3677 = vmatprep.subr.mxu0 0.0
    %3678 = vmatpush1.msra.mxu0 0.0
    %3679 = vmatprep.subr.mxu0 0.0
    %3680 = vmatpush1.msra.mxu0 0.0
    %3681 = vmatprep.subr.mxu0 0.0
    %3682 = vmatpush1.msra.mxu0 0.0
    %3683 = vmatprep.subr.mxu0 0.0
    %3684 = vmatpush1.msra.mxu0 0.0
    %3685 = vmatprep.subr.mxu0 0.0
    %3686 = vmatpush1.msra.mxu0 0.0
    %3687 = vmatprep.subr.mxu0 0.0
    %3688 = vmatpush1.msra.mxu0 0.0
    %3689 = vmatprep.mubr.f32.mxu0 0.0
    %3690 = vmatmul.mubr.f32.gmra.mrb[0].mxu0 %v3552
    %v3691 = vpop.f32.mrb[0].mxu0
    %v3692 = vadd.f32 %v3548, %v3691
    %v3693 = vpop.f32.mrb[0].mxu0
    %3694 = vdwg.mxu0
    %v3695 = vadd.f32 %v3621, %v518
    %v3696 = vadd.f32 %v3623, %v522
    %v3697 = vadd.f32 %v3692, %v526
    %3698 = vmatprep.subr.mxu0 %v159
    %3699 = vmatpush1.msra.mxu0 %v158
    %3700 = vmatprep.subr.mxu0 %v162
    %3701 = vmatpush1.msra.mxu0 %v161
    %3702 = vmatprep.subr.mxu0 %v165
    %3703 = vmatpush1.msra.mxu0 %v164
    %3704 = vmatprep.subr.mxu0 %v168
    %3705 = vmatpush1.msra.mxu0 %v167
    %3706 = vmatprep.subr.mxu0 %v171
    %3707 = vmatpush1.msra.mxu0 %v170
    %3708 = vmatprep.subr.mxu0 %v174
    %3709 = vmatpush1.msra.mxu0 %v173
    %3710 = vmatprep.subr.mxu0 %v177
    %3711 = vmatpush1.msra.mxu0 %v176
    %3712 = vmatprep.subr.mxu0 %v180
    %3713 = vmatpush1.msra.mxu0 %v179
    %3714 = vmatprep.subr.mxu0 %v183
    %3715 = vmatpush1.msra.mxu0 %v182
    %3716 = vmatprep.subr.mxu0 %v186
    %3717 = vmatpush1.msra.mxu0 %v185
    %3718 = vmatprep.subr.mxu0 %v189
    %3719 = vmatpush1.msra.mxu0 %v188
    %3720 = vmatprep.subr.mxu0 %v192
    %3721 = vmatpush1.msra.mxu0 %v191
    %3722 = vmatprep.subr.mxu0 %v195
    %3723 = vmatpush1.msra.mxu0 %v194
    %3724 = vmatprep.subr.mxu0 %v198
    %3725 = vmatpush1.msra.mxu0 %v197
    %3726 = vmatprep.subr.mxu0 %v201
    %3727 = vmatpush1.msra.mxu0 %v200
    %3728 = vmatprep.subr.mxu0 %v204
    %3729 = vmatpush1.msra.mxu0 %v203
    %3730 = vmatprep.subr.mxu0 0.0
    %3731 = vmatpush1.msra.mxu0 0.0
    %3732 = vmatprep.subr.mxu0 0.0
    %3733 = vmatpush1.msra.mxu0 0.0
    %3734 = vmatprep.subr.mxu0 0.0
    %3735 = vmatpush1.msra.mxu0 0.0
    %3736 = vmatprep.subr.mxu0 0.0
    %3737 = vmatpush1.msra.mxu0 0.0
    %3738 = vmatprep.subr.mxu0 0.0
    %3739 = vmatpush1.msra.mxu0 0.0
    %3740 = vmatprep.subr.mxu0 0.0
    %3741 = vmatpush1.msra.mxu0 0.0
    %3742 = vmatprep.subr.mxu0 0.0
    %3743 = vmatpush1.msra.mxu0 0.0
    %3744 = vmatprep.subr.mxu0 0.0
    %3745 = vmatpush1.msra.mxu0 0.0
    %3746 = vmatprep.subr.mxu0 0.0
    %3747 = vmatpush1.msra.mxu0 0.0
    %3748 = vmatprep.subr.mxu0 0.0
    %3749 = vmatpush1.msra.mxu0 0.0
    %3750 = vmatprep.subr.mxu0 0.0
    %3751 = vmatpush1.msra.mxu0 0.0
    %3752 = vmatprep.subr.mxu0 0.0
    %3753 = vmatpush1.msra.mxu0 0.0
    %3754 = vmatprep.subr.mxu0 0.0
    %3755 = vmatpush1.msra.mxu0 0.0
    %3756 = vmatprep.subr.mxu0 0.0
    %3757 = vmatpush1.msra.mxu0 0.0
    %3758 = vmatprep.subr.mxu0 0.0
    %3759 = vmatpush1.msra.mxu0 0.0
    %3760 = vmatprep.subr.mxu0 0.0
    %3761 = vmatpush1.msra.mxu0 0.0
    %3762 = vmatprep.mubr.f32.mxu0 0.0
    %3763 = vmatmul.mubr.f32.gmra.mrb[0].mxu0 %v3335
    %v3764 = vpop.f32.mrb[0].mxu0
    %v3765 = vadd.f32 %v537, %v3764
    %v3766 = vpop.f32.mrb[0].mxu0
    %v3767 = vadd.f32 %v541, %v3766
    %3768 = vdwg.mxu0
    %3769 = vmatprep.subr.mxu0 0.0
    %3770 = vmatpush1.msra.mxu0 %v160
    %3771 = vmatprep.subr.mxu0 0.0
    %3772 = vmatpush1.msra.mxu0 %v163
    %3773 = vmatprep.subr.mxu0 0.0
    %3774 = vmatpush1.msra.mxu0 %v166
    %3775 = vmatprep.subr.mxu0 0.0
    %3776 = vmatpush1.msra.mxu0 %v169
    %3777 = vmatprep.subr.mxu0 0.0
    %3778 = vmatpush1.msra.mxu0 %v172
    %3779 = vmatprep.subr.mxu0 0.0
    %3780 = vmatpush1.msra.mxu0 %v175
    %3781 = vmatprep.subr.mxu0 0.0
    %3782 = vmatpush1.msra.mxu0 %v178
    %3783 = vmatprep.subr.mxu0 0.0
    %3784 = vmatpush1.msra.mxu0 %v181
    %3785 = vmatprep.subr.mxu0 0.0
    %3786 = vmatpush1.msra.mxu0 %v184
    %3787 = vmatprep.subr.mxu0 0.0
    %3788 = vmatpush1.msra.mxu0 %v187
    %3789 = vmatprep.subr.mxu0 0.0
    %3790 = vmatpush1.msra.mxu0 %v190
    %3791 = vmatprep.subr.mxu0 0.0
    %3792 = vmatpush1.msra.mxu0 %v193
    %3793 = vmatprep.subr.mxu0 0.0
    %3794 = vmatpush1.msra.mxu0 %v196
    %3795 = vmatprep.subr.mxu0 0.0
    %3796 = vmatpush1.msra.mxu0 %v199
    %3797 = vmatprep.subr.mxu0 0.0
    %3798 = vmatpush1.msra.mxu0 %v202
    %3799 = vmatprep.subr.mxu0 0.0
    %3800 = vmatpush1.msra.mxu0 %v205
    %3801 = vmatprep.subr.mxu0 0.0
    %3802 = vmatpush1.msra.mxu0 0.0
    %3803 = vmatprep.subr.mxu0 0.0
    %3804 = vmatpush1.msra.mxu0 0.0
    %3805 = vmatprep.subr.mxu0 0.0
    %3806 = vmatpush1.msra.mxu0 0.0
    %3807 = vmatprep.subr.mxu0 0.0
    %3808 = vmatpush1.msra.mxu0 0.0
    %3809 = vmatprep.subr.mxu0 0.0
    %3810 = vmatpush1.msra.mxu0 0.0
    %3811 = vmatprep.subr.mxu0 0.0
    %3812 = vmatpush1.msra.mxu0 0.0
    %3813 = vmatprep.subr.mxu0 0.0
    %3814 = vmatpush1.msra.mxu0 0.0
    %3815 = vmatprep.subr.mxu0 0.0
    %3816 = vmatpush1.msra.mxu0 0.0
    %3817 = vmatprep.subr.mxu0 0.0
    %3818 = vmatpush1.msra.mxu0 0.0
    %3819 = vmatprep.subr.mxu0 0.0
    %3820 = vmatpush1.msra.mxu0 0.0
    %3821 = vmatprep.subr.mxu0 0.0
    %3822 = vmatpush1.msra.mxu0 0.0
    %3823 = vmatprep.subr.mxu0 0.0
    %3824 = vmatpush1.msra.mxu0 0.0
    %3825 = vmatprep.subr.mxu0 0.0
    %3826 = vmatpush1.msra.mxu0 0.0
    %3827 = vmatprep.subr.mxu0 0.0
    %3828 = vmatpush1.msra.mxu0 0.0
    %3829 = vmatprep.subr.mxu0 0.0
    %3830 = vmatpush1.msra.mxu0 0.0
    %3831 = vmatprep.subr.mxu0 0.0
    %3832 = vmatpush1.msra.mxu0 0.0
    %3833 = vmatprep.mubr.f32.mxu0 0.0
    %3834 = vmatmul.mubr.f32.gmra.mrb[0].mxu0 %v3335
    %v3835 = vpop.f32.mrb[0].mxu0
    %v3836 = vadd.f32 %v545, %v3835
    %v3837 = vpop.f32.mrb[0].mxu0
    %3838 = vdwg.mxu0
    %v3839 = vadd.f32 %v3695, %v3765
    %v3840 = vxor.u32 %v3839, 2147483648
    %v3841 = vmul.f32 %v3840, 1.442695
    %v3842 = vpow.pop %v3841
    %v3843 = vadd.f32 %v3842, 1.0
    %v3844 = vrcp.pop %v3843
    %v3845 = vmul.f32 1.0, %v3844
    %v3846 = vadd.f32 %v3696, %v3767
    %v3847 = vxor.u32 %v3846, 2147483648
    %v3848 = vmul.f32 %v3847, 1.442695
    %v3849 = vpow.pop %v3848
    %v3850 = vadd.f32 %v3849, 1.0
    %v3851 = vrcp.pop %v3850
    %v3852 = vmul.f32 1.0, %v3851
    %v3853 = vmul.f32 %v3845, %v3836
    %v3854 = vadd.f32 %v3697, %v3853
    %v3855 = vtanh.pop %v3854
    %v3856 = vsub.f32 1.0, %v3852
    %v3857 = vmul.f32 %v3856, %v3855
    %v3858 = vmul.f32 %v3852, %v3335
    %v3859 = vadd.f32 %v3857, %v3858
    %3860 = vmatprep.subr.mxu0 0.0
    %3861 = vmatpush1.msra.mxu0 %v208
    %3862 = vmatprep.subr.mxu0 0.0
    %3863 = vmatpush1.msra.mxu0 %v209
    %3864 = vmatprep.subr.mxu0 0.0
    %3865 = vmatpush1.msra.mxu0 %v210
    %3866 = vmatprep.subr.mxu0 0.0
    %3867 = vmatpush1.msra.mxu0 %v211
    %3868 = vmatprep.subr.mxu0 0.0
    %3869 = vmatpush1.msra.mxu0 %v212
    %3870 = vmatprep.subr.mxu0 0.0
    %3871 = vmatpush1.msra.mxu0 %v213
    %3872 = vmatprep.subr.mxu0 0.0
    %3873 = vmatpush1.msra.mxu0 %v214
    %3874 = vmatprep.subr.mxu0 0.0
    %3875 = vmatpush1.msra.mxu0 %v215
    %3876 = vmatprep.subr.mxu0 0.0
    %3877 = vmatpush1.msra.mxu0 %v216
    %3878 = vmatprep.subr.mxu0 0.0
    %3879 = vmatpush1.msra.mxu0 %v217
    %3880 = vmatprep.subr.mxu0 0.0
    %3881 = vmatpush1.msra.mxu0 %v218
    %3882 = vmatprep.subr.mxu0 0.0
    %3883 = vmatpush1.msra.mxu0 %v219
    %3884 = vmatprep.subr.mxu0 0.0
    %3885 = vmatpush1.msra.mxu0 %v220
    %3886 = vmatprep.subr.mxu0 0.0
    %3887 = vmatpush1.msra.mxu0 %v221
    %3888 = vmatprep.subr.mxu0 0.0
    %3889 = vmatpush1.msra.mxu0 %v222
    %3890 = vmatprep.subr.mxu0 0.0
    %3891 = vmatpush1.msra.mxu0 %v223
    %3892 = vmatprep.subr.mxu0 0.0
    %3893 = vmatpush1.msra.mxu0 0.0
    %3894 = vmatprep.subr.mxu0 0.0
    %3895 = vmatpush1.msra.mxu0 0.0
    %3896 = vmatprep.subr.mxu0 0.0
    %3897 = vmatpush1.msra.mxu0 0.0
    %3898 = vmatprep.subr.mxu0 0.0
    %3899 = vmatpush1.msra.mxu0 0.0
    %3900 = vmatprep.subr.mxu0 0.0
    %3901 = vmatpush1.msra.mxu0 0.0
    %3902 = vmatprep.subr.mxu0 0.0
    %3903 = vmatpush1.msra.mxu0 0.0
    %3904 = vmatprep.subr.mxu0 0.0
    %3905 = vmatpush1.msra.mxu0 0.0
    %3906 = vmatprep.subr.mxu0 0.0
    %3907 = vmatpush1.msra.mxu0 0.0
    %3908 = vmatprep.subr.mxu0 0.0
    %3909 = vmatpush1.msra.mxu0 0.0
    %3910 = vmatprep.subr.mxu0 0.0
    %3911 = vmatpush1.msra.mxu0 0.0
    %3912 = vmatprep.subr.mxu0 0.0
    %3913 = vmatpush1.msra.mxu0 0.0
    %3914 = vmatprep.subr.mxu0 0.0
    %3915 = vmatpush1.msra.mxu0 0.0
    %3916 = vmatprep.subr.mxu0 0.0
    %3917 = vmatpush1.msra.mxu0 0.0
    %3918 = vmatprep.subr.mxu0 0.0
    %3919 = vmatpush1.msra.mxu0 0.0
    %3920 = vmatprep.subr.mxu0 0.0
    %3921 = vmatpush1.msra.mxu0 0.0
    %3922 = vmatprep.subr.mxu0 0.0
    %3923 = vmatpush1.msra.mxu0 0.0
    %3924 = vmatprep.mubr.f32.mxu0 0.0
    %3925 = vmatmul.mubr.f32.gmra.mrb[0].mxu0 %v3859
    %v3926 = vpop.f32.mrb[0].mxu0
    %v3927 = vadd.f32 %v715, %v3926
    %v3928 = vpop.f32.mrb[0].mxu0
    %3929 = vdwg.mxu0
    %s3930 = scalar_lea.vmem [#allocation13], 48
    %3931 = vst [vmem:[%s3930] sm:$0xff] %v3927
    %s3932 = scalar_lea.vmem [#allocation4], 56
    %v3933 = vld [vmem:[%s3932] sm:$0xff]
    %3934 = vmatprep.subr.mxu0 %v111
    %3935 = vmatpush1.msra.mxu0 %v110
    %3936 = vmatprep.subr.mxu0 %v114
    %3937 = vmatpush1.msra.mxu0 %v113
    %3938 = vmatprep.subr.mxu0 %v117
    %3939 = vmatpush1.msra.mxu0 %v116
    %3940 = vmatprep.subr.mxu0 %v120
    %3941 = vmatpush1.msra.mxu0 %v119
    %3942 = vmatprep.subr.mxu0 %v123
    %3943 = vmatpush1.msra.mxu0 %v122
    %3944 = vmatprep.subr.mxu0 %v126
    %3945 = vmatpush1.msra.mxu0 %v125
    %3946 = vmatprep.subr.mxu0 %v129
    %3947 = vmatpush1.msra.mxu0 %v128
    %3948 = vmatprep.subr.mxu0 %v132
    %3949 = vmatpush1.msra.mxu0 %v131
    %3950 = vmatprep.subr.mxu0 %v135
    %3951 = vmatpush1.msra.mxu0 %v134
    %3952 = vmatprep.subr.mxu0 %v138
    %3953 = vmatpush1.msra.mxu0 %v137
    %3954 = vmatprep.subr.mxu0 %v141
    %3955 = vmatpush1.msra.mxu0 %v140
    %3956 = vmatprep.subr.mxu0 %v144
    %3957 = vmatpush1.msra.mxu0 %v143
    %3958 = vmatprep.subr.mxu0 %v147
    %3959 = vmatpush1.msra.mxu0 %v146
    %3960 = vmatprep.subr.mxu0 %v150
    %3961 = vmatpush1.msra.mxu0 %v149
    %3962 = vmatprep.subr.mxu0 %v153
    %3963 = vmatpush1.msra.mxu0 %v152
    %3964 = vmatprep.subr.mxu0 %v156
    %3965 = vmatpush1.msra.mxu0 %v155
    %3966 = vmatprep.subr.mxu0 0.0
    %3967 = vmatpush1.msra.mxu0 0.0
    %3968 = vmatprep.subr.mxu0 0.0
    %3969 = vmatpush1.msra.mxu0 0.0
    %3970 = vmatprep.subr.mxu0 0.0
    %3971 = vmatpush1.msra.mxu0 0.0
    %3972 = vmatprep.subr.mxu0 0.0
    %3973 = vmatpush1.msra.mxu0 0.0
    %3974 = vmatprep.subr.mxu0 0.0
    %3975 = vmatpush1.msra.mxu0 0.0
    %3976 = vmatprep.subr.mxu0 0.0
    %3977 = vmatpush1.msra.mxu0 0.0
    %3978 = vmatprep.subr.mxu0 0.0
    %3979 = vmatpush1.msra.mxu0 0.0
    %3980 = vmatprep.subr.mxu0 0.0
    %3981 = vmatpush1.msra.mxu0 0.0
    %3982 = vmatprep.subr.mxu0 0.0
    %3983 = vmatpush1.msra.mxu0 0.0
    %3984 = vmatprep.subr.mxu0 0.0
    %3985 = vmatpush1.msra.mxu0 0.0
    %3986 = vmatprep.subr.mxu0 0.0
    %3987 = vmatpush1.msra.mxu0 0.0
    %3988 = vmatprep.subr.mxu0 0.0
    %3989 = vmatpush1.msra.mxu0 0.0
    %3990 = vmatprep.subr.mxu0 0.0
    %3991 = vmatpush1.msra.mxu0 0.0
    %3992 = vmatprep.subr.mxu0 0.0
    %3993 = vmatpush1.msra.mxu0 0.0
    %3994 = vmatprep.subr.mxu0 0.0
    %3995 = vmatpush1.msra.mxu0 0.0
    %3996 = vmatprep.subr.mxu0 0.0
    %3997 = vmatpush1.msra.mxu0 0.0
    %3998 = vmatprep.mubr.f32.mxu0 0.0
    %3999 = vmatmul.mubr.f32.gmra.mrb[0].mxu0 %v3927
    %v4000 = vpop.f32.mrb[0].mxu0
    %v4001 = vadd.f32 0.0, %v4000
    %v4002 = vpop.f32.mrb[0].mxu0
    %v4003 = vadd.f32 0.0, %v4002
    %4004 = vdwg.mxu0
    %4005 = vmatprep.subr.mxu0 0.0
    %4006 = vmatpush1.msra.mxu0 %v112
    %4007 = vmatprep.subr.mxu0 0.0
    %4008 = vmatpush1.msra.mxu0 %v115
    %4009 = vmatprep.subr.mxu0 0.0
    %4010 = vmatpush1.msra.mxu0 %v118
    %4011 = vmatprep.subr.mxu0 0.0
    %4012 = vmatpush1.msra.mxu0 %v121
    %4013 = vmatprep.subr.mxu0 0.0
    %4014 = vmatpush1.msra.mxu0 %v124
    %4015 = vmatprep.subr.mxu0 0.0
    %4016 = vmatpush1.msra.mxu0 %v127
    %4017 = vmatprep.subr.mxu0 0.0
    %4018 = vmatpush1.msra.mxu0 %v130
    %4019 = vmatprep.subr.mxu0 0.0
    %4020 = vmatpush1.msra.mxu0 %v133
    %4021 = vmatprep.subr.mxu0 0.0
    %4022 = vmatpush1.msra.mxu0 %v136
    %4023 = vmatprep.subr.mxu0 0.0
    %4024 = vmatpush1.msra.mxu0 %v139
    %4025 = vmatprep.subr.mxu0 0.0
    %4026 = vmatpush1.msra.mxu0 %v142
    %4027 = vmatprep.subr.mxu0 0.0
    %4028 = vmatpush1.msra.mxu0 %v145
    %4029 = vmatprep.subr.mxu0 0.0
    %4030 = vmatpush1.msra.mxu0 %v148
    %4031 = vmatprep.subr.mxu0 0.0
    %4032 = vmatpush1.msra.mxu0 %v151
    %4033 = vmatprep.subr.mxu0 0.0
    %4034 = vmatpush1.msra.mxu0 %v154
    %4035 = vmatprep.subr.mxu0 0.0
    %4036 = vmatpush1.msra.mxu0 %v157
    %4037 = vmatprep.subr.mxu0 0.0
    %4038 = vmatpush1.msra.mxu0 0.0
    %4039 = vmatprep.subr.mxu0 0.0
    %4040 = vmatpush1.msra.mxu0 0.0
    %4041 = vmatprep.subr.mxu0 0.0
    %4042 = vmatpush1.msra.mxu0 0.0
    %4043 = vmatprep.subr.mxu0 0.0
    %4044 = vmatpush1.msra.mxu0 0.0
    %4045 = vmatprep.subr.mxu0 0.0
    %4046 = vmatpush1.msra.mxu0 0.0
    %4047 = vmatprep.subr.mxu0 0.0
    %4048 = vmatpush1.msra.mxu0 0.0
    %4049 = vmatprep.subr.mxu0 0.0
    %4050 = vmatpush1.msra.mxu0 0.0
    %4051 = vmatprep.subr.mxu0 0.0
    %4052 = vmatpush1.msra.mxu0 0.0
    %4053 = vmatprep.subr.mxu0 0.0
    %4054 = vmatpush1.msra.mxu0 0.0
    %4055 = vmatprep.subr.mxu0 0.0
    %4056 = vmatpush1.msra.mxu0 0.0
    %4057 = vmatprep.subr.mxu0 0.0
    %4058 = vmatpush1.msra.mxu0 0.0
    %4059 = vmatprep.subr.mxu0 0.0
    %4060 = vmatpush1.msra.mxu0 0.0
    %4061 = vmatprep.subr.mxu0 0.0
    %4062 = vmatpush1.msra.mxu0 0.0
    %4063 = vmatprep.subr.mxu0 0.0
    %4064 = vmatpush1.msra.mxu0 0.0
    %4065 = vmatprep.subr.mxu0 0.0
    %4066 = vmatpush1.msra.mxu0 0.0
    %4067 = vmatprep.subr.mxu0 0.0
    %4068 = vmatpush1.msra.mxu0 0.0
    %4069 = vmatprep.mubr.f32.mxu0 0.0
    %4070 = vmatmul.mubr.f32.gmra.mrb[0].mxu0 %v3927
    %v4071 = vpop.f32.mrb[0].mxu0
    %v4072 = vadd.f32 0.0, %v4071
    %v4073 = vpop.f32.mrb[0].mxu0
    %4074 = vdwg.mxu0
    %v4076 = vsel %vm369, %v3933, 0
    %4078 = vmatprep.subr.mxu0 %v105
    %4079 = vmatpush1.msra.mxu0 %v104
    %4080 = vmatprep.subr.mxu0 %v108
    %4081 = vmatpush1.msra.mxu0 %v107
    %4082 = vmatprep.subr.mxu0 0.0
    %4083 = vmatpush1.msra.mxu0 0.0
    %4084 = vmatprep.subr.mxu0 0.0
    %4085 = vmatpush1.msra.mxu0 0.0
    %4086 = vmatprep.subr.mxu0 0.0
    %4087 = vmatpush1.msra.mxu0 0.0
    %4088 = vmatprep.subr.mxu0 0.0
    %4089 = vmatpush1.msra.mxu0 0.0
    %4090 = vmatprep.subr.mxu0 0.0
    %4091 = vmatpush1.msra.mxu0 0.0
    %4092 = vmatprep.subr.mxu0 0.0
    %4093 = vmatpush1.msra.mxu0 0.0
    %4094 = vmatprep.subr.mxu0 0.0
    %4095 = vmatpush1.msra.mxu0 0.0
    %4096 = vmatprep.subr.mxu0 0.0
    %4097 = vmatpush1.msra.mxu0 0.0
    %4098 = vmatprep.subr.mxu0 0.0
    %4099 = vmatpush1.msra.mxu0 0.0
    %4100 = vmatprep.subr.mxu0 0.0
    %4101 = vmatpush1.msra.mxu0 0.0
    %4102 = vmatprep.subr.mxu0 0.0
    %4103 = vmatpush1.msra.mxu0 0.0
    %4104 = vmatprep.subr.mxu0 0.0
    %4105 = vmatpush1.msra.mxu0 0.0
    %4106 = vmatprep.subr.mxu0 0.0
    %4107 = vmatpush1.msra.mxu0 0.0
    %4108 = vmatprep.subr.mxu0 0.0
    %4109 = vmatpush1.msra.mxu0 0.0
    %4110 = vmatprep.subr.mxu0 0.0
    %4111 = vmatpush1.msra.mxu0 0.0
    %4112 = vmatprep.subr.mxu0 0.0
    %4113 = vmatpush1.msra.mxu0 0.0
    %4114 = vmatprep.subr.mxu0 0.0
    %4115 = vmatpush1.msra.mxu0 0.0
    %4116 = vmatprep.subr.mxu0 0.0
    %4117 = vmatpush1.msra.mxu0 0.0
    %4118 = vmatprep.subr.mxu0 0.0
    %4119 = vmatpush1.msra.mxu0 0.0
    %4120 = vmatprep.subr.mxu0 0.0
    %4121 = vmatpush1.msra.mxu0 0.0
    %4122 = vmatprep.subr.mxu0 0.0
    %4123 = vmatpush1.msra.mxu0 0.0
    %4124 = vmatprep.subr.mxu0 0.0
    %4125 = vmatpush1.msra.mxu0 0.0
    %4126 = vmatprep.subr.mxu0 0.0
    %4127 = vmatpush1.msra.mxu0 0.0
    %4128 = vmatprep.subr.mxu0 0.0
    %4129 = vmatpush1.msra.mxu0 0.0
    %4130 = vmatprep.subr.mxu0 0.0
    %4131 = vmatpush1.msra.mxu0 0.0
    %4132 = vmatprep.subr.mxu0 0.0
    %4133 = vmatpush1.msra.mxu0 0.0
    %4134 = vmatprep.subr.mxu0 0.0
    %4135 = vmatpush1.msra.mxu0 0.0
    %4136 = vmatprep.subr.mxu0 0.0
    %4137 = vmatpush1.msra.mxu0 0.0
    %4138 = vmatprep.subr.mxu0 0.0
    %4139 = vmatpush1.msra.mxu0 0.0
    %4140 = vmatprep.subr.mxu0 0.0
    %4141 = vmatpush1.msra.mxu0 0.0
    %4142 = vmatprep.mubr.f32.mxu0 0.0
    %4143 = vmatmul.mubr.f32.gmra.mrb[0].mxu0 %v4076
    %v4144 = vpop.f32.mrb[0].mxu0
    %v4145 = vadd.f32 %v4001, %v4144
    %v4146 = vpop.f32.mrb[0].mxu0
    %v4147 = vadd.f32 %v4003, %v4146
    %4148 = vdwg.mxu0
    %4149 = vmatprep.subr.mxu0 0.0
    %4150 = vmatpush1.msra.mxu0 %v106
    %4151 = vmatprep.subr.mxu0 0.0
    %4152 = vmatpush1.msra.mxu0 %v109
    %4153 = vmatprep.subr.mxu0 0.0
    %4154 = vmatpush1.msra.mxu0 0.0
    %4155 = vmatprep.subr.mxu0 0.0
    %4156 = vmatpush1.msra.mxu0 0.0
    %4157 = vmatprep.subr.mxu0 0.0
    %4158 = vmatpush1.msra.mxu0 0.0
    %4159 = vmatprep.subr.mxu0 0.0
    %4160 = vmatpush1.msra.mxu0 0.0
    %4161 = vmatprep.subr.mxu0 0.0
    %4162 = vmatpush1.msra.mxu0 0.0
    %4163 = vmatprep.subr.mxu0 0.0
    %4164 = vmatpush1.msra.mxu0 0.0
    %4165 = vmatprep.subr.mxu0 0.0
    %4166 = vmatpush1.msra.mxu0 0.0
    %4167 = vmatprep.subr.mxu0 0.0
    %4168 = vmatpush1.msra.mxu0 0.0
    %4169 = vmatprep.subr.mxu0 0.0
    %4170 = vmatpush1.msra.mxu0 0.0
    %4171 = vmatprep.subr.mxu0 0.0
    %4172 = vmatpush1.msra.mxu0 0.0
    %4173 = vmatprep.subr.mxu0 0.0
    %4174 = vmatpush1.msra.mxu0 0.0
    %4175 = vmatprep.subr.mxu0 0.0
    %4176 = vmatpush1.msra.mxu0 0.0
    %4177 = vmatprep.subr.mxu0 0.0
    %4178 = vmatpush1.msra.mxu0 0.0
    %4179 = vmatprep.subr.mxu0 0.0
    %4180 = vmatpush1.msra.mxu0 0.0
    %4181 = vmatprep.subr.mxu0 0.0
    %4182 = vmatpush1.msra.mxu0 0.0
    %4183 = vmatprep.subr.mxu0 0.0
    %4184 = vmatpush1.msra.mxu0 0.0
    %4185 = vmatprep.subr.mxu0 0.0
    %4186 = vmatpush1.msra.mxu0 0.0
    %4187 = vmatprep.subr.mxu0 0.0
    %4188 = vmatpush1.msra.mxu0 0.0
    %4189 = vmatprep.subr.mxu0 0.0
    %4190 = vmatpush1.msra.mxu0 0.0
    %4191 = vmatprep.subr.mxu0 0.0
    %4192 = vmatpush1.msra.mxu0 0.0
    %4193 = vmatprep.subr.mxu0 0.0
    %4194 = vmatpush1.msra.mxu0 0.0
    %4195 = vmatprep.subr.mxu0 0.0
    %4196 = vmatpush1.msra.mxu0 0.0
    %4197 = vmatprep.subr.mxu0 0.0
    %4198 = vmatpush1.msra.mxu0 0.0
    %4199 = vmatprep.subr.mxu0 0.0
    %4200 = vmatpush1.msra.mxu0 0.0
    %4201 = vmatprep.subr.mxu0 0.0
    %4202 = vmatpush1.msra.mxu0 0.0
    %4203 = vmatprep.subr.mxu0 0.0
    %4204 = vmatpush1.msra.mxu0 0.0
    %4205 = vmatprep.subr.mxu0 0.0
    %4206 = vmatpush1.msra.mxu0 0.0
    %4207 = vmatprep.subr.mxu0 0.0
    %4208 = vmatpush1.msra.mxu0 0.0
    %4209 = vmatprep.subr.mxu0 0.0
    %4210 = vmatpush1.msra.mxu0 0.0
    %4211 = vmatprep.subr.mxu0 0.0
    %4212 = vmatpush1.msra.mxu0 0.0
    %4213 = vmatprep.mubr.f32.mxu0 0.0
    %4214 = vmatmul.mubr.f32.gmra.mrb[0].mxu0 %v4076
    %v4215 = vpop.f32.mrb[0].mxu0
    %v4216 = vadd.f32 %v4072, %v4215
    %v4217 = vpop.f32.mrb[0].mxu0
    %4218 = vdwg.mxu0
    %v4219 = vadd.f32 %v4145, %v518
    %v4220 = vadd.f32 %v4147, %v522
    %v4221 = vadd.f32 %v4216, %v526
    %4222 = vmatprep.subr.mxu0 %v159
    %4223 = vmatpush1.msra.mxu0 %v158
    %4224 = vmatprep.subr.mxu0 %v162
    %4225 = vmatpush1.msra.mxu0 %v161
    %4226 = vmatprep.subr.mxu0 %v165
    %4227 = vmatpush1.msra.mxu0 %v164
    %4228 = vmatprep.subr.mxu0 %v168
    %4229 = vmatpush1.msra.mxu0 %v167
    %4230 = vmatprep.subr.mxu0 %v171
    %4231 = vmatpush1.msra.mxu0 %v170
    %4232 = vmatprep.subr.mxu0 %v174
    %4233 = vmatpush1.msra.mxu0 %v173
    %4234 = vmatprep.subr.mxu0 %v177
    %4235 = vmatpush1.msra.mxu0 %v176
    %4236 = vmatprep.subr.mxu0 %v180
    %4237 = vmatpush1.msra.mxu0 %v179
    %4238 = vmatprep.subr.mxu0 %v183
    %4239 = vmatpush1.msra.mxu0 %v182
    %4240 = vmatprep.subr.mxu0 %v186
    %4241 = vmatpush1.msra.mxu0 %v185
    %4242 = vmatprep.subr.mxu0 %v189
    %4243 = vmatpush1.msra.mxu0 %v188
    %4244 = vmatprep.subr.mxu0 %v192
    %4245 = vmatpush1.msra.mxu0 %v191
    %4246 = vmatprep.subr.mxu0 %v195
    %4247 = vmatpush1.msra.mxu0 %v194
    %4248 = vmatprep.subr.mxu0 %v198
    %4249 = vmatpush1.msra.mxu0 %v197
    %4250 = vmatprep.subr.mxu0 %v201
    %4251 = vmatpush1.msra.mxu0 %v200
    %4252 = vmatprep.subr.mxu0 %v204
    %4253 = vmatpush1.msra.mxu0 %v203
    %4254 = vmatprep.subr.mxu0 0.0
    %4255 = vmatpush1.msra.mxu0 0.0
    %4256 = vmatprep.subr.mxu0 0.0
    %4257 = vmatpush1.msra.mxu0 0.0
    %4258 = vmatprep.subr.mxu0 0.0
    %4259 = vmatpush1.msra.mxu0 0.0
    %4260 = vmatprep.subr.mxu0 0.0
    %4261 = vmatpush1.msra.mxu0 0.0
    %4262 = vmatprep.subr.mxu0 0.0
    %4263 = vmatpush1.msra.mxu0 0.0
    %4264 = vmatprep.subr.mxu0 0.0
    %4265 = vmatpush1.msra.mxu0 0.0
    %4266 = vmatprep.subr.mxu0 0.0
    %4267 = vmatpush1.msra.mxu0 0.0
    %4268 = vmatprep.subr.mxu0 0.0
    %4269 = vmatpush1.msra.mxu0 0.0
    %4270 = vmatprep.subr.mxu0 0.0
    %4271 = vmatpush1.msra.mxu0 0.0
    %4272 = vmatprep.subr.mxu0 0.0
    %4273 = vmatpush1.msra.mxu0 0.0
    %4274 = vmatprep.subr.mxu0 0.0
    %4275 = vmatpush1.msra.mxu0 0.0
    %4276 = vmatprep.subr.mxu0 0.0
    %4277 = vmatpush1.msra.mxu0 0.0
    %4278 = vmatprep.subr.mxu0 0.0
    %4279 = vmatpush1.msra.mxu0 0.0
    %4280 = vmatprep.subr.mxu0 0.0
    %4281 = vmatpush1.msra.mxu0 0.0
    %4282 = vmatprep.subr.mxu0 0.0
    %4283 = vmatpush1.msra.mxu0 0.0
    %4284 = vmatprep.subr.mxu0 0.0
    %4285 = vmatpush1.msra.mxu0 0.0
    %4286 = vmatprep.mubr.f32.mxu0 0.0
    %4287 = vmatmul.mubr.f32.gmra.mrb[0].mxu0 %v3859
    %v4288 = vpop.f32.mrb[0].mxu0
    %v4289 = vadd.f32 %v537, %v4288
    %v4290 = vpop.f32.mrb[0].mxu0
    %v4291 = vadd.f32 %v541, %v4290
    %4292 = vdwg.mxu0
    %4293 = vmatprep.subr.mxu0 0.0
    %4294 = vmatpush1.msra.mxu0 %v160
    %4295 = vmatprep.subr.mxu0 0.0
    %4296 = vmatpush1.msra.mxu0 %v163
    %4297 = vmatprep.subr.mxu0 0.0
    %4298 = vmatpush1.msra.mxu0 %v166
    %4299 = vmatprep.subr.mxu0 0.0
    %4300 = vmatpush1.msra.mxu0 %v169
    %4301 = vmatprep.subr.mxu0 0.0
    %4302 = vmatpush1.msra.mxu0 %v172
    %4303 = vmatprep.subr.mxu0 0.0
    %4304 = vmatpush1.msra.mxu0 %v175
    %4305 = vmatprep.subr.mxu0 0.0
    %4306 = vmatpush1.msra.mxu0 %v178
    %4307 = vmatprep.subr.mxu0 0.0
    %4308 = vmatpush1.msra.mxu0 %v181
    %4309 = vmatprep.subr.mxu0 0.0
    %4310 = vmatpush1.msra.mxu0 %v184
    %4311 = vmatprep.subr.mxu0 0.0
    %4312 = vmatpush1.msra.mxu0 %v187
    %4313 = vmatprep.subr.mxu0 0.0
    %4314 = vmatpush1.msra.mxu0 %v190
    %4315 = vmatprep.subr.mxu0 0.0
    %4316 = vmatpush1.msra.mxu0 %v193
    %4317 = vmatprep.subr.mxu0 0.0
    %4318 = vmatpush1.msra.mxu0 %v196
    %4319 = vmatprep.subr.mxu0 0.0
    %4320 = vmatpush1.msra.mxu0 %v199
    %4321 = vmatprep.subr.mxu0 0.0
    %4322 = vmatpush1.msra.mxu0 %v202
    %4323 = vmatprep.subr.mxu0 0.0
    %4324 = vmatpush1.msra.mxu0 %v205
    %4325 = vmatprep.subr.mxu0 0.0
    %4326 = vmatpush1.msra.mxu0 0.0
    %4327 = vmatprep.subr.mxu0 0.0
    %4328 = vmatpush1.msra.mxu0 0.0
    %4329 = vmatprep.subr.mxu0 0.0
    %4330 = vmatpush1.msra.mxu0 0.0
    %4331 = vmatprep.subr.mxu0 0.0
    %4332 = vmatpush1.msra.mxu0 0.0
    %4333 = vmatprep.subr.mxu0 0.0
    %4334 = vmatpush1.msra.mxu0 0.0
    %4335 = vmatprep.subr.mxu0 0.0
    %4336 = vmatpush1.msra.mxu0 0.0
    %4337 = vmatprep.subr.mxu0 0.0
    %4338 = vmatpush1.msra.mxu0 0.0
    %4339 = vmatprep.subr.mxu0 0.0
    %4340 = vmatpush1.msra.mxu0 0.0
    %4341 = vmatprep.subr.mxu0 0.0
    %4342 = vmatpush1.msra.mxu0 0.0
    %4343 = vmatprep.subr.mxu0 0.0
    %4344 = vmatpush1.msra.mxu0 0.0
    %4345 = vmatprep.subr.mxu0 0.0
    %4346 = vmatpush1.msra.mxu0 0.0
    %4347 = vmatprep.subr.mxu0 0.0
    %4348 = vmatpush1.msra.mxu0 0.0
    %4349 = vmatprep.subr.mxu0 0.0
    %4350 = vmatpush1.msra.mxu0 0.0
    %4351 = vmatprep.subr.mxu0 0.0
    %4352 = vmatpush1.msra.mxu0 0.0
    %4353 = vmatprep.subr.mxu0 0.0
    %4354 = vmatpush1.msra.mxu0 0.0
    %4355 = vmatprep.subr.mxu0 0.0
    %4356 = vmatpush1.msra.mxu0 0.0
    %4357 = vmatprep.mubr.f32.mxu0 0.0
    %4358 = vmatmul.mubr.f32.gmra.mrb[0].mxu0 %v3859
    %v4359 = vpop.f32.mrb[0].mxu0
    %v4360 = vadd.f32 %v545, %v4359
    %v4361 = vpop.f32.mrb[0].mxu0
    %4362 = vdwg.mxu0
    %v4363 = vadd.f32 %v4219, %v4289
    %v4364 = vxor.u32 %v4363, 2147483648
    %v4365 = vmul.f32 %v4364, 1.442695
    %v4366 = vpow.pop %v4365
    %v4367 = vadd.f32 %v4366, 1.0
    %v4368 = vrcp.pop %v4367
    %v4369 = vmul.f32 1.0, %v4368
    %v4370 = vadd.f32 %v4220, %v4291
    %v4371 = vxor.u32 %v4370, 2147483648
    %v4372 = vmul.f32 %v4371, 1.442695
    %v4373 = vpow.pop %v4372
    %v4374 = vadd.f32 %v4373, 1.0
    %v4375 = vrcp.pop %v4374
    %v4376 = vmul.f32 1.0, %v4375
    %v4377 = vmul.f32 %v4369, %v4360
    %v4378 = vadd.f32 %v4221, %v4377
    %v4379 = vtanh.pop %v4378
    %v4380 = vsub.f32 1.0, %v4376
    %v4381 = vmul.f32 %v4380, %v4379
    %v4382 = vmul.f32 %v4376, %v3859
    %v4383 = vadd.f32 %v4381, %v4382
    %4384 = vmatprep.subr.mxu0 0.0
    %4385 = vmatpush1.msra.mxu0 %v208
    %4386 = vmatprep.subr.mxu0 0.0
    %4387 = vmatpush1.msra.mxu0 %v209
    %4388 = vmatprep.subr.mxu0 0.0
    %4389 = vmatpush1.msra.mxu0 %v210
    %4390 = vmatprep.subr.mxu0 0.0
    %4391 = vmatpush1.msra.mxu0 %v211
    %4392 = vmatprep.subr.mxu0 0.0
    %4393 = vmatpush1.msra.mxu0 %v212
    %4394 = vmatprep.subr.mxu0 0.0
    %4395 = vmatpush1.msra.mxu0 %v213
    %4396 = vmatprep.subr.mxu0 0.0
    %4397 = vmatpush1.msra.mxu0 %v214
    %4398 = vmatprep.subr.mxu0 0.0
    %4399 = vmatpush1.msra.mxu0 %v215
    %4400 = vmatprep.subr.mxu0 0.0
    %4401 = vmatpush1.msra.mxu0 %v216
    %4402 = vmatprep.subr.mxu0 0.0
    %4403 = vmatpush1.msra.mxu0 %v217
    %4404 = vmatprep.subr.mxu0 0.0
    %4405 = vmatpush1.msra.mxu0 %v218
    %4406 = vmatprep.subr.mxu0 0.0
    %4407 = vmatpush1.msra.mxu0 %v219
    %4408 = vmatprep.subr.mxu0 0.0
    %4409 = vmatpush1.msra.mxu0 %v220
    %4410 = vmatprep.subr.mxu0 0.0
    %4411 = vmatpush1.msra.mxu0 %v221
    %4412 = vmatprep.subr.mxu0 0.0
    %4413 = vmatpush1.msra.mxu0 %v222
    %4414 = vmatprep.subr.mxu0 0.0
    %4415 = vmatpush1.msra.mxu0 %v223
    %4416 = vmatprep.subr.mxu0 0.0
    %4417 = vmatpush1.msra.mxu0 0.0
    %4418 = vmatprep.subr.mxu0 0.0
    %4419 = vmatpush1.msra.mxu0 0.0
    %4420 = vmatprep.subr.mxu0 0.0
    %4421 = vmatpush1.msra.mxu0 0.0
    %4422 = vmatprep.subr.mxu0 0.0
    %4423 = vmatpush1.msra.mxu0 0.0
    %4424 = vmatprep.subr.mxu0 0.0
    %4425 = vmatpush1.msra.mxu0 0.0
    %4426 = vmatprep.subr.mxu0 0.0
    %4427 = vmatpush1.msra.mxu0 0.0
    %4428 = vmatprep.subr.mxu0 0.0
    %4429 = vmatpush1.msra.mxu0 0.0
    %4430 = vmatprep.subr.mxu0 0.0
    %4431 = vmatpush1.msra.mxu0 0.0
    %4432 = vmatprep.subr.mxu0 0.0
    %4433 = vmatpush1.msra.mxu0 0.0
    %4434 = vmatprep.subr.mxu0 0.0
    %4435 = vmatpush1.msra.mxu0 0.0
    %4436 = vmatprep.subr.mxu0 0.0
    %4437 = vmatpush1.msra.mxu0 0.0
    %4438 = vmatprep.subr.mxu0 0.0
    %4439 = vmatpush1.msra.mxu0 0.0
    %4440 = vmatprep.subr.mxu0 0.0
    %4441 = vmatpush1.msra.mxu0 0.0
    %4442 = vmatprep.subr.mxu0 0.0
    %4443 = vmatpush1.msra.mxu0 0.0
    %4444 = vmatprep.subr.mxu0 0.0
    %4445 = vmatpush1.msra.mxu0 0.0
    %4446 = vmatprep.subr.mxu0 0.0
    %4447 = vmatpush1.msra.mxu0 0.0
    %4448 = vmatprep.mubr.f32.mxu0 0.0
    %4449 = vmatmul.mubr.f32.gmra.mrb[0].mxu0 %v4383
    %v4450 = vpop.f32.mrb[0].mxu0
    %v4451 = vadd.f32 %v715, %v4450
    %v4452 = vpop.f32.mrb[0].mxu0
    %4453 = vdwg.mxu0
    %s4454 = scalar_lea.vmem [#allocation13], 56
    %4455 = vst [vmem:[%s4454] sm:$0xff] %v4451
    %4456 = vst [vmem:[#allocation2] sm:$0xff] %v4383
    %4457 = vst [vmem:[#allocation3] sm:$0xff] %v4451
    // Predicated region
    $region58: #{tpu_custom_call.1} parent=1 // pred_check
      _
    $region59: #{tpu_custom_call.1} parent=1 // pred_check_branch
      %4459 = sbr.rel (0) target = $region61
    $region60: #{tpu_custom_call.1} parent=1 // pred_region
      %s4461 = ssub.s32 1024, 1024
      %4462 = vsyncadd [#allocation6], %s4461
      %s4463 = sshll.u32 [#allocation13], 4
      %s4464 = int_to_ptr.vmem [resolvable:$true] %s4463
      %4469 = dma.vmem_to_hbm [thread:$0]  %s4464, 1024, %s8, [#allocation6], 128, 128, 8
    $region61: #{tpu_custom_call.1} parent=1 // pred_fallthru
      _
    // Predicated region
    $region62: #{tpu_custom_call.1} parent=1 // pred_check
      _
    $region63: #{tpu_custom_call.1} parent=1 // pred_check_branch
      %4471 = sbr.rel (0) target = $region65
    $region64: #{tpu_custom_call.1} parent=1 // pred_region
      %4472 = dma.done [#allocation6], 1024
    $region65: #{tpu_custom_call.1} parent=1 // pred_fallthru
      _
    %4473 = vsyncpa [#allocation5], 1
    %4474 = vsyncpa [#allocation8], 1
    %4475 = vsyncpa [#allocation11], 1
    %4476 = vsyncpa [#allocation6], 1

</llo_original>
